<compile_context>
chip_gen: v6e
topology: v6e:2x2x1
jax: 0.10.0
libtpu: 0.0.40
codegen_flags: <defaults>
</compile_context>

<pallas_src>
import functools

import jax
import jax.numpy as jnp
from jax import lax
from jax.experimental import pallas as pl
from jax.experimental.pallas import tpu as pltpu

DROPOUT_P = 0.2


def _round_up(a, b):
    return (a + b - 1) // b * b


def _hash_bits(shape, seed_u32, row0_u32):
    """Counter-based uint32 hash (lowbias32-style mixer) for dropout bits.

    Pure jnp integer ops only -> lowers on Mosaic TPU and in interpret mode.
    Bits depend solely on (seed, global_row, col), so the mask is independent
    of the row tiling and safe under a 'parallel' row grid axis.
    """
    rows = lax.broadcasted_iota(jnp.int32, shape, 0).astype(jnp.uint32) + row0_u32
    cols = lax.broadcasted_iota(jnp.int32, shape, 1).astype(jnp.uint32)
    x = rows * jnp.uint32(0x9E3779B1)
    x = x ^ (cols * jnp.uint32(0x85EBCA6B))
    x = x ^ seed_u32
    x = x ^ (x >> 16)
    x = x * jnp.uint32(0x7FEB352D)
    x = x ^ (x >> 15)
    x = x * jnp.uint32(0x846CA68B)
    x = x ^ (x >> 16)
    return x


def _ffn_kernel(seed_ref,                               # scalar prefetch (SMEM)
                x_ref, w1_ref, b1_ref, w2_ref, b2_ref,  # inputs (VMEM)
                o_ref,                                  # output tile (tm, C)
                *, dropout_p, training, tm):
    # pl.program_id only at the top level of the body (never inside pl.when)
    # so the kernel also lowers in the CPU interpret fallback.
    row0 = pl.program_id(0) * tm

    x = x_ref[...].astype(jnp.bfloat16)                 # cast in-kernel
    # h = relu(x @ W1 + b1): bf16 operands on the MXU, f32 accumulation.
    h = jnp.dot(x, w1_ref[...], preferred_element_type=jnp.float32)
    h = jnp.maximum(h + b1_ref[...], 0.0)
    # y = h @ W2 + b2
    y = jnp.dot(h.astype(jnp.bfloat16), w2_ref[...],
                preferred_element_type=jnp.float32)
    y = y + b2_ref[...]

    if training and dropout_p > 0.0:
        if dropout_p >= 1.0:
            y = jnp.zeros_like(y)                        # torch Dropout(1.0)
        else:
            # Inverted dropout (PyTorch train semantics); keep-mask from the
            # hash PRNG via a single integer-threshold compare.
            # TODO(synk): bit pattern differs from torch's RNG stream.
            seed = seed_ref[0].astype(jnp.uint32)
            bits = _hash_bits(y.shape, seed, row0.astype(jnp.uint32))
            thresh = jnp.uint32(min(int(round(dropout_p * 2.0 ** 32)),
                                    2 ** 32 - 1))
            keep = bits >= thresh
            y = jnp.where(keep, y * (1.0 / (1.0 - dropout_p)), 0.0)

    o_ref[...] = y.astype(o_ref.dtype)


def feed_forward(x, w1, b1, w2, b2, *, seed=0, training=True,
                 dropout_p=DROPOUT_P, tm=None, out_dtype=jnp.bfloat16):
    """x: (B, T, C). w1: (C, 4C), b1: (4C,), w2: (4C, C), b2: (C,).

    Weights are stored (in_features, out_features), i.e. PyTorch's W.T.
    Store w1/w2 in bf16 to avoid a per-call cast. Returns (B, T, C) in
    `out_dtype` (bf16 by default to halve output HBM traffic; pass
    out_dtype=x.dtype for a drop-in torch-like signature).
    """
    B, T, C = x.shape
    H = w1.shape[1]
    M = B * T

    assert C % 128 == 0, C
    assert H % 128 == 0, H

    # Row tile: large enough to amortize per-step overhead and keep the MXU
    # busy, small enough that pad waste stays below one tile of rows.
    if tm is None:
        if M >= 4096:
            tm = 512
        elif M >= 1024:
            tm = 256
        elif M >= 128:
            tm = 128
        else:
            tm = _round_up(M, 16)                        # bf16 sublane packing
    M_pad = _round_up(M, tm)

    x2 = x.reshape(M, C)                                 # bf16 cast happens in-kernel
    if M_pad != M:
        x2 = jnp.pad(x2, ((0, M_pad - M), (0, 0)))
    w1b = w1 if w1.dtype == jnp.bfloat16 else w1.astype(jnp.bfloat16)
    w2b = w2 if w2.dtype == jnp.bfloat16 else w2.astype(jnp.bfloat16)
    b1_2 = b1.reshape(1, H).astype(jnp.float32)
    b2_2 = b2.reshape(1, C).astype(jnp.float32)
    seed_arr = jnp.array([seed], dtype=jnp.int32)

    # VMEM footprint: x/out tiles are double-buffered by the pipeline; the
    # weights/biases have constant index maps so they are fetched once (their
    # buffer pair is still counted, to stay conservative). Weights are assumed
    # fully VMEM-resident — comfortably true for n_embd=384 (~2.4 MB bf16).
    # TODO(synk): add a hidden-dim reduction fallback for n_embd >~ 1024 where
    # resident weights would not fit v7x's 64 MiB VMEM.
    x_bytes = jnp.dtype(x.dtype).itemsize
    o_bytes = jnp.dtype(out_dtype).itemsize
    vmem_need = (2 * tm * C * x_bytes                    # x tile
                 + 2 * (C * H + H * C) * 2               # W1 + W2 (bf16)
                 + 2 * (H + C) * 4                       # biases (f32)
                 + tm * H * (4 + 2)                      # h (f32 + bf16 copy)
                 + tm * C * 4                            # y (f32, pre-cast)
                 + 2 * tm * C * o_bytes)                 # output tile
    vmem_limit = int(min(max(int(vmem_need * 1.25) + (2 << 20), 32 << 20),
                         48 << 20))                      # 48 MiB safe on v7x

    kernel = functools.partial(_ffn_kernel, dropout_p=float(dropout_p),
                               training=training, tm=tm)

    out = pl.pallas_call(
        kernel,
        out_shape=jax.ShapeDtypeStruct((M_pad, C), out_dtype),
        grid_spec=pltpu.PrefetchScalarGridSpec(
            num_scalar_prefetch=1,
            grid=(M_pad // tm,),                         # single parallel row axis
            in_specs=[
                pl.BlockSpec((tm, C), lambda i, seed: (i, 0)),   # x rows
                pl.BlockSpec((C, H), lambda i, seed: (0, 0)),    # W1 (resident)
                pl.BlockSpec((1, H), lambda i, seed: (0, 0)),    # b1 (resident)
                pl.BlockSpec((H, C), lambda i, seed: (0, 0)),    # W2 (resident)
                pl.BlockSpec((1, C), lambda i, seed: (0, 0)),    # b2 (resident)
            ],
            out_specs=pl.BlockSpec((tm, C), lambda i, seed: (i, 0)),
        ),
        compiler_params=pltpu.CompilerParams(
            dimension_semantics=("parallel",),
            vmem_limit_bytes=vmem_limit),
    )(seed_arr, x2, w1b, b1_2, w2b, b2_2)

    return out[:M].reshape(B, T, C)


if __name__ == "__main__":
    # Small shapes consistent with the module: (batch, seq, n_embd=384).
    B, T, C = 2, 8, 384
    H = 4 * C

    key = jax.random.PRNGKey(0)
    kx, k1, k2, k3, k4 = jax.random.split(key, 5)

    x = jax.random.normal(kx, (B, T, C), dtype=jnp.float32)
    # Store weights in bf16 (per perf guidance) so the wrapper never re-casts.
    w1 = (jax.random.normal(k1, (C, H), dtype=jnp.float32) * 0.02).astype(jnp.bfloat16)
    b1 = jax.random.normal(k2, (H,), dtype=jnp.float32) * 0.02
    w2 = (jax.random.normal(k3, (H, C), dtype=jnp.float32) * 0.02).astype(jnp.bfloat16)
    b2 = jax.random.normal(k4, (C,), dtype=jnp.float32) * 0.02

    # Train-mode forward (stochastic dropout from the in-kernel hash PRNG).
    y_train = feed_forward(x, w1, b1, w2, b2, seed=0, training=True)
    jax.block_until_ready(y_train)
    assert y_train.shape == (B, T, C)
    assert bool(jnp.all(jnp.isfinite(y_train.astype(jnp.float32))))
    zero_frac = float(jnp.mean((y_train == 0).astype(jnp.float32)))
    assert 0.05 < zero_frac < 0.5, zero_frac          # p = 0.2 +- slack

    # Eval-mode forward (dropout = identity) vs. a matching-precision reference.
    y_eval = feed_forward(x, w1, b1, w2, b2, training=False)
    jax.block_until_ready(y_eval)
    got = y_eval.reshape(-1, C).astype(jnp.float32)

    xb = x.reshape(-1, C).astype(jnp.bfloat16)
    h_ref = jnp.maximum(
        jnp.dot(xb, w1, preferred_element_type=jnp.float32) + b1, 0.0)
    ref = jnp.dot(h_ref.astype(jnp.bfloat16), w2,
                  preferred_element_type=jnp.float32) + b2
    ref_bf = ref.astype(jnp.bfloat16).astype(jnp.float32)
    err = float(jnp.max(jnp.abs(got - ref_bf)))
    assert err < 2e-2, err

    # Loose sanity check against exact f32 math (bf16 rounding tolerance).
    ref32 = (jnp.maximum(x.reshape(-1, C) @ w1.astype(jnp.float32) + b1, 0.0)
             @ w2.astype(jnp.float32) + b2)
    assert jnp.allclose(got, ref32, atol=5e-2, rtol=5e-2)

    print("KERNEL_OK")
</pallas_src>

<mosaic_0001>
module attributes {stable_mosaic.version = 11 : i64} {
  func.func @_ffn_kernel(%arg0: i32, %arg1: memref<1xi32, #tpu.memory_space<smem>>, %arg2: memref<16x384xf32, #tpu.memory_space<vmem>>, %arg3: memref<384x1536xbf16, #tpu.memory_space<vmem>>, %arg4: memref<1x1536xf32, #tpu.memory_space<vmem>>, %arg5: memref<1536x384xbf16, #tpu.memory_space<vmem>>, %arg6: memref<1x384xf32, #tpu.memory_space<vmem>>, %arg7: memref<16x384xbf16, #tpu.memory_space<vmem>>) attributes {dimension_semantics = [#tpu.dimension_semantics<parallel>], iteration_bounds = array<i64: 1>, scalar_prefetch = 1 : i64, scratch_operands = 0 : i64, tpu.core_type = #tpu.core_type<tc>, window_params = [{transform_indices = @transform_0, window_bounds = array<i64: 16, 384>}, {pipeline_mode = #tpu.pipeline_mode<synchronous>, transform_indices = @transform_1, window_bounds = array<i64: 384, 1536>}, {pipeline_mode = #tpu.pipeline_mode<synchronous>, transform_indices = @transform_2, window_bounds = array<i64: 1, 1536>}, {pipeline_mode = #tpu.pipeline_mode<synchronous>, transform_indices = @transform_3, window_bounds = array<i64: 1536, 384>}, {pipeline_mode = #tpu.pipeline_mode<synchronous>, transform_indices = @transform_4, window_bounds = array<i64: 1, 384>}, {transform_indices = @transform_5, window_bounds = array<i64: 16, 384>}]} {
    %c16_i32 = arith.constant 16 : i32
    %0 = arith.muli %arg0, %c16_i32 : i32
    %c0 = arith.constant 0 : index
    %c0_0 = arith.constant 0 : index
    %1 = vector.load %arg2[%c0, %c0_0] : memref<16x384xf32, #tpu.memory_space<vmem>>, vector<16x384xf32>
    %2 = arith.truncf %1 : vector<16x384xf32> to vector<16x384xbf16>
    %c0_1 = arith.constant 0 : index
    %c0_2 = arith.constant 0 : index
    %3 = vector.load %arg3[%c0_1, %c0_2] : memref<384x1536xbf16, #tpu.memory_space<vmem>>, vector<384x1536xbf16>
    %cst = arith.constant dense<0.000000e+00> : vector<16x1536xf32>
    %4 = tpu.matmul %2, %3, %cst {dimension_numbers = #tpu.dot_dimension_numbers<[1], [0], [0], [1], [0, 0, 1, 1], [], []>} : vector<16x384xbf16>, vector<384x1536xbf16>, vector<16x1536xf32> -> vector<16x1536xf32>
    %c0_3 = arith.constant 0 : index
    %c0_4 = arith.constant 0 : index
    %5 = vector.load %arg4[%c0_3, %c0_4] : memref<1x1536xf32, #tpu.memory_space<vmem>>, vector<1x1536xf32>
    %6 = vector.broadcast %5 : vector<1x1536xf32> to vector<16x1536xf32>
    %7 = arith.addf %4, %6 : vector<16x1536xf32>
    %cst_5 = arith.constant 0.000000e+00 : f32
    %8 = vector.broadcast %cst_5 : f32 to vector<16x1536xf32>
    %9 = arith.maximumf %7, %8 : vector<16x1536xf32>
    %10 = arith.truncf %9 : vector<16x1536xf32> to vector<16x1536xbf16>
    %c0_6 = arith.constant 0 : index
    %c0_7 = arith.constant 0 : index
    %11 = vector.load %arg5[%c0_6, %c0_7] : memref<1536x384xbf16, #tpu.memory_space<vmem>>, vector<1536x384xbf16>
    %cst_8 = arith.constant dense<0.000000e+00> : vector<16x384xf32>
    %12 = tpu.matmul %10, %11, %cst_8 {dimension_numbers = #tpu.dot_dimension_numbers<[1], [0], [0], [1], [0, 0, 1, 1], [], []>} : vector<16x1536xbf16>, vector<1536x384xbf16>, vector<16x384xf32> -> vector<16x384xf32>
    %c0_9 = arith.constant 0 : index
    %c0_10 = arith.constant 0 : index
    %13 = vector.load %arg6[%c0_9, %c0_10] : memref<1x384xf32, #tpu.memory_space<vmem>>, vector<1x384xf32>
    %14 = vector.broadcast %13 : vector<1x384xf32> to vector<16x384xf32>
    %15 = arith.addf %12, %14 : vector<16x384xf32>
    %c0_11 = arith.constant 0 : index
    %16 = memref.load %arg1[%c0_11] : memref<1xi32, #tpu.memory_space<smem>>
    %17 = tpu.iota {dimensions = array<i32: 0>} : vector<16x384xi32>
    %18 = vector.broadcast %0 : i32 to vector<16x384xi32>
    %19 = arith.addi %17, %18 : vector<16x384xi32>
    %20 = tpu.iota {dimensions = array<i32: 1>} : vector<16x384xi32>
    %c-1640531535_i32 = arith.constant -1640531535 : i32
    %21 = vector.broadcast %c-1640531535_i32 : i32 to vector<16x384xi32>
    %22 = arith.muli %19, %21 : vector<16x384xi32>
    %c-2048144789_i32 = arith.constant -2048144789 : i32
    %23 = vector.broadcast %c-2048144789_i32 : i32 to vector<16x384xi32>
    %24 = arith.muli %20, %23 : vector<16x384xi32>
    %25 = arith.xori %22, %24 : vector<16x384xi32>
    %26 = vector.broadcast %16 : i32 to vector<16x384xi32>
    %27 = arith.xori %25, %26 : vector<16x384xi32>
    %c16_i32_12 = arith.constant 16 : i32
    %28 = vector.broadcast %c16_i32_12 : i32 to vector<16x384xi32>
    %29 = arith.shrui %27, %28 : vector<16x384xi32>
    %30 = arith.xori %27, %29 : vector<16x384xi32>
    %c2146121005_i32 = arith.constant 2146121005 : i32
    %31 = vector.broadcast %c2146121005_i32 : i32 to vector<16x384xi32>
    %32 = arith.muli %30, %31 : vector<16x384xi32>
    %c15_i32 = arith.constant 15 : i32
    %33 = vector.broadcast %c15_i32 : i32 to vector<16x384xi32>
    %34 = arith.shrui %32, %33 : vector<16x384xi32>
    %35 = arith.xori %32, %34 : vector<16x384xi32>
    %c-2073254261_i32 = arith.constant -2073254261 : i32
    %36 = vector.broadcast %c-2073254261_i32 : i32 to vector<16x384xi32>
    %37 = arith.muli %35, %36 : vector<16x384xi32>
    %c16_i32_13 = arith.constant 16 : i32
    %38 = vector.broadcast %c16_i32_13 : i32 to vector<16x384xi32>
    %39 = arith.shrui %37, %38 : vector<16x384xi32>
    %40 = arith.xori %37, %39 : vector<16x384xi32>
    %c858993459_i32 = arith.constant 858993459 : i32
    %41 = vector.broadcast %c858993459_i32 : i32 to vector<16x384xi32>
    %42 = arith.cmpi uge, %40, %41 : vector<16x384xi32>
    %cst_14 = arith.constant 1.250000e+00 : f32
    %43 = vector.broadcast %cst_14 : f32 to vector<16x384xf32>
    %44 = arith.mulf %15, %43 : vector<16x384xf32>
    %cst_15 = arith.constant 0.000000e+00 : f32
    %45 = vector.broadcast %cst_15 : f32 to vector<16x384xf32>
    %46 = arith.select %42, %44, %45 : vector<16x384xi1>, vector<16x384xf32>
    %47 = arith.truncf %46 : vector<16x384xf32> to vector<16x384xbf16>
    %c0_16 = arith.constant 0 : index
    %c0_17 = arith.constant 0 : index
    %48 = vector.load %arg7[%c0_16, %c0_17] : memref<16x384xbf16, #tpu.memory_space<vmem>>, vector<16x384xbf16>
    tpu.vector_store %arg7[%c0_16, %c0_17], %47 {strides = array<i32>} : memref<16x384xbf16, #tpu.memory_space<vmem>>, vector<16x384xbf16>,
    return
  }
  func.func @transform_0(%arg0: i32, %arg1: memref<1xi32, #tpu.memory_space<smem>>) -> (i32, i32) {
    %c0_i32 = arith.constant 0 : i32
    %c0_i32_0 = arith.constant 0 : i32
    return %arg0, %c0_i32 : i32, i32
  }
  func.func @transform_1(%arg0: i32, %arg1: memref<1xi32, #tpu.memory_space<smem>>) -> (i32, i32) {
    %c0_i32 = arith.constant 0 : i32
    %c0_i32_0 = arith.constant 0 : i32
    %c0_i32_1 = arith.constant 0 : i32
    return %c0_i32, %c0_i32_0 : i32, i32
  }
  func.func @transform_2(%arg0: i32, %arg1: memref<1xi32, #tpu.memory_space<smem>>) -> (i32, i32) {
    %c0_i32 = arith.constant 0 : i32
    %c0_i32_0 = arith.constant 0 : i32
    %c0_i32_1 = arith.constant 0 : i32
    return %c0_i32, %c0_i32_0 : i32, i32
  }
  func.func @transform_3(%arg0: i32, %arg1: memref<1xi32, #tpu.memory_space<smem>>) -> (i32, i32) {
    %c0_i32 = arith.constant 0 : i32
    %c0_i32_0 = arith.constant 0 : i32
    %c0_i32_1 = arith.constant 0 : i32
    return %c0_i32, %c0_i32_0 : i32, i32
  }
  func.func @transform_4(%arg0: i32, %arg1: memref<1xi32, #tpu.memory_space<smem>>) -> (i32, i32) {
    %c0_i32 = arith.constant 0 : i32
    %c0_i32_0 = arith.constant 0 : i32
    %c0_i32_1 = arith.constant 0 : i32
    return %c0_i32, %c0_i32_0 : i32, i32
  }
  func.func @transform_5(%arg0: i32, %arg1: memref<1xi32, #tpu.memory_space<smem>>) -> (i32, i32) {
    %c0_i32 = arith.constant 0 : i32
    %c0_i32_0 = arith.constant 0 : i32
    return %arg0, %c0_i32 : i32, i32
  }
}

</mosaic_0001>

<llo_original>
// kernel: tpu_custom_call.1
$region0: #{tpu_custom_call.1}
  #allocation0 [shape = 'u32[]', space=smem, size = 0x4, offset = 0x4, fixed_abs, tag = 'smem constant byte address 0x4 - core index']
  #allocation1 [shape = 'u32[144,128]{1,0:T(1,128)}', space=vmem, size = 0x12000, scoped, tag = 'internal scratch']
  #allocation2 [shape = 's32[1]{0}', space=sflag, size = 0x4, scoped, tag = 'scoped memory for tpu_custom_call.1']
  #allocation3 [shape = 's32[1]{0:T(128)S(6)}', space=smem, size = 0x200, scoped, tag = 'prefetched SMEM operand 0']
  %s0 = inlined_call_operand.<no memory space> [shape: s32[1], index: 0, kind: input, shape index: {}]
  %s1 = inlined_call_operand.hbm [shape: f32[16,384], index: 1, kind: input, shape index: {}]
  %s2 = inlined_call_operand.hbm [shape: bf16[384,1536], index: 2, kind: input, shape index: {}]
  %s3 = inlined_call_operand.hbm [shape: f32[1,1536], index: 3, kind: input, shape index: {}]
  %s4 = inlined_call_operand.hbm [shape: bf16[1536,384], index: 4, kind: input, shape index: {}]
  %s5 = inlined_call_operand.hbm [shape: f32[1,384], index: 5, kind: input, shape index: {}]
  %s6 = inlined_call_operand.hbm [shape: bf16[16,384], index: 6, kind: output, shape index: {}]
  %s7 = sld [smem:[#allocation0]]
  $region50: #{tpu_custom_call.1} parent=0
    _
  %s9 = ssub.s32 1, %s7
  %s10 = scalar_select 0, %s9, %s7
  %11 = sst [smem:[#allocation3]] %s0
  $region1: #{tpu_custom_call.1} parent=0
    #allocation4 [shape = 'u8[24576]{0}', space=vmem, size = 0x6000, scoped, tag = 'input window, operand 1, single buffered']
    #allocation5 [shape = 's32[1]{0}', space=sflag, size = 0x4, scoped, tag = 'scoped memory for tpu_custom_call.1']
    #allocation6 [shape = 's32[1]{0}', space=sflag, size = 0x4, scoped, tag = 'scoped memory for tpu_custom_call.1']
    #allocation7 [shape = 'u8[1179648]{0}', space=vmem, size = 0x120000, scoped, tag = 'input window, operand 2, single buffered']
    #allocation8 [shape = 's32[1]{0}', space=sflag, size = 0x4, scoped, tag = 'scoped memory for tpu_custom_call.1']
    #allocation9 [shape = 'u8[6144]{0}', space=vmem, size = 0x1800, scoped, tag = 'input window, operand 3, single buffered']
    #allocation10 [shape = 'u8[1179648]{0}', space=vmem, size = 0x120000, scoped, tag = 'input window, operand 4, single buffered']
    #allocation11 [shape = 's32[1]{0}', space=sflag, size = 0x4, scoped, tag = 'scoped memory for tpu_custom_call.1']
    #allocation12 [shape = 'u8[1536]{0}', space=vmem, size = 0x800, scoped, tag = 'input window, operand 5, single buffered']
    #allocation13 [shape = 'u8[12288]{0}', space=vmem, size = 0x3000, scoped, tag = 'output window, operand 0, single buffered']
    %12 = vsyncpa [#allocation5], 0
    %13 = vsyncpa [#allocation8], 0
    %14 = vsyncpa [#allocation11], 0
    %15 = vsyncpa [#allocation6], 0
    // Predicated region
    $region2: #{tpu_custom_call.1} parent=1 // pred_check
      _
    $region3: #{tpu_custom_call.1} parent=1 // pred_check_branch
      %17 = sbr.rel (0) target = $region5
    $region4: #{tpu_custom_call.1} parent=1 // pred_region
      %s19 = ssub.s32 768, 768
      %20 = vsyncadd [#allocation5], %s19
      %s21 = sshll.u32 [#allocation4], 4
      %s22 = int_to_ptr.vmem [resolvable:$true] %s21
      %27 = dma.hbm_to_vmem [thread:$0]  %s1, 768, %s22, [#allocation5], 384, 384, 24
    $region5: #{tpu_custom_call.1} parent=1 // pred_fallthru
      _
    // Predicated region
    $region6: #{tpu_custom_call.1} parent=1 // pred_check
      _
    $region7: #{tpu_custom_call.1} parent=1 // pred_check_branch
      %29 = sbr.rel (0) target = $region9
    $region8: #{tpu_custom_call.1} parent=1 // pred_region
      %s31 = ssub.s32 36864, 36864
      %32 = vsyncadd [#allocation8], %s31
      %s33 = sshll.u32 [#allocation7], 4
      %s34 = int_to_ptr.vmem [resolvable:$true] %s33
      %39 = dma.hbm_to_vmem [thread:$0]  %s2, 36864, %s34, [#allocation8], 768, 768, 48
    $region9: #{tpu_custom_call.1} parent=1 // pred_fallthru
      _
    // Predicated region
    $region10: #{tpu_custom_call.1} parent=1 // pred_check
      _
    $region11: #{tpu_custom_call.1} parent=1 // pred_check_branch
      %41 = sbr.rel (0) target = $region13
    $region12: #{tpu_custom_call.1} parent=1 // pred_region
      %s43 = ssub.s32 192, 192
      %44 = vsyncadd [#allocation8], %s43
      %s46 = sshll.u32 [#allocation9], 4
      %s47 = int_to_ptr.vmem [resolvable:$true] %s46
      %49 = dma.hbm_to_vmem [thread:$0]  %s3, 192, %s47, [#allocation8]
    $region13: #{tpu_custom_call.1} parent=1 // pred_fallthru
      _
    // Predicated region
    $region14: #{tpu_custom_call.1} parent=1 // pred_check
      _
    $region15: #{tpu_custom_call.1} parent=1 // pred_check_branch
      %51 = sbr.rel (0) target = $region17
    $region16: #{tpu_custom_call.1} parent=1 // pred_region
      %s53 = ssub.s32 36864, 36864
      %54 = vsyncadd [#allocation11], %s53
      %s55 = sshll.u32 [#allocation10], 4
      %s56 = int_to_ptr.vmem [resolvable:$true] %s55
      %61 = dma.hbm_to_vmem [thread:$0]  %s4, 36864, %s56, [#allocation11], 192, 192, 12
    $region17: #{tpu_custom_call.1} parent=1 // pred_fallthru
      _
    // Predicated region
    $region18: #{tpu_custom_call.1} parent=1 // pred_check
      _
    $region19: #{tpu_custom_call.1} parent=1 // pred_check_branch
      %63 = sbr.rel (0) target = $region21
    $region20: #{tpu_custom_call.1} parent=1 // pred_region
      %s65 = ssub.s32 48, 48
      %66 = vsyncadd [#allocation11], %s65
      %s68 = sshll.u32 [#allocation12], 4
      %s69 = int_to_ptr.vmem [resolvable:$true] %s68
      %71 = dma.hbm_to_vmem [thread:$0]  %s5, 48, %s69, [#allocation11]
    $region21: #{tpu_custom_call.1} parent=1 // pred_fallthru
      _
    // Predicated region
    $region22: #{tpu_custom_call.1} parent=1 // pred_check
      _
    $region23: #{tpu_custom_call.1} parent=1 // pred_check_branch
      %73 = sbr.rel (0) target = $region25
    $region24: #{tpu_custom_call.1} parent=1 // pred_region
      %74 = dma.done [#allocation5], 768
    $region25: #{tpu_custom_call.1} parent=1 // pred_fallthru
      _
    // Predicated region
    $region26: #{tpu_custom_call.1} parent=1 // pred_check
      _
    $region27: #{tpu_custom_call.1} parent=1 // pred_check_branch
      %76 = sbr.rel (0) target = $region29
    $region28: #{tpu_custom_call.1} parent=1 // pred_region
      %77 = dma.done [#allocation8], 36864
    $region29: #{tpu_custom_call.1} parent=1 // pred_fallthru
      _
    // Predicated region
    $region30: #{tpu_custom_call.1} parent=1 // pred_check
      _
    $region31: #{tpu_custom_call.1} parent=1 // pred_check_branch
      %79 = sbr.rel (0) target = $region33
    $region32: #{tpu_custom_call.1} parent=1 // pred_region
      %80 = dma.done [#allocation8], 192
    $region33: #{tpu_custom_call.1} parent=1 // pred_fallthru
      _
    // Predicated region
    $region34: #{tpu_custom_call.1} parent=1 // pred_check
      _
    $region35: #{tpu_custom_call.1} parent=1 // pred_check_branch
      %82 = sbr.rel (0) target = $region37
    $region36: #{tpu_custom_call.1} parent=1 // pred_region
      %83 = dma.done [#allocation11], 36864
    $region37: #{tpu_custom_call.1} parent=1 // pred_fallthru
      _
    // Predicated region
    $region38: #{tpu_custom_call.1} parent=1 // pred_check
      _
    $region39: #{tpu_custom_call.1} parent=1 // pred_check_branch
      %85 = sbr.rel (0) target = $region41
    $region40: #{tpu_custom_call.1} parent=1 // pred_region
      %86 = dma.done [#allocation11], 48
    $region41: #{tpu_custom_call.1} parent=1 // pred_fallthru
      _
    %s88 = smul.u32 0, 16
    %v89 = vld [vmem:[#allocation4] sm:$0xff]
    %v90 = vld [vmem:[#allocation4 + $0x8] sm:$0xff]
    %v91 = vld [vmem:[#allocation4 + $0x10] sm:$0xff]
    %v92 = vld [vmem:[#allocation4 + $0x18] sm:$0xff]
    %v93 = vld [vmem:[#allocation4 + $0x20] sm:$0xff]
    %v94 = vld [vmem:[#allocation4 + $0x28] sm:$0xff]
    %v95 = vpack.c.bf16 %v92, %v89
    %v96 = vpack.c.bf16 %v93, %v90
    %v97 = vpack.c.bf16 %v94, %v91
    %v98 = vld [vmem:[#allocation7] sm:$0xff]
    %v99 = vld [vmem:[#allocation7 + $0x8] sm:$0xff]
    %v100 = vld [vmem:[#allocation7 + $0x10] sm:$0xff]
    %v101 = vld [vmem:[#allocation7 + $0x18] sm:$0xff]
    %v102 = vld [vmem:[#allocation7 + $0x20] sm:$0xff]
    %v103 = vld [vmem:[#allocation7 + $0x28] sm:$0xff]
    %v104 = vld [vmem:[#allocation7 + $0x30] sm:$0xff]
    %v105 = vld [vmem:[#allocation7 + $0x38] sm:$0xff]
    %v106 = vld [vmem:[#allocation7 + $0x40] sm:$0xff]
    %v107 = vld [vmem:[#allocation7 + $0x48] sm:$0xff]
    %v108 = vld [vmem:[#allocation7 + $0x50] sm:$0xff]
    %v109 = vld [vmem:[#allocation7 + $0x58] sm:$0xff]
    %v110 = vld [vmem:[#allocation7 + $0x60] sm:$0xff]
    %v111 = vld [vmem:[#allocation7 + $0x68] sm:$0xff]
    %v112 = vld [vmem:[#allocation7 + $0x70] sm:$0xff]
    %v113 = vld [vmem:[#allocation7 + $0x78] sm:$0xff]
    %v114 = vld [vmem:[#allocation7 + $0x80] sm:$0xff]
    %v115 = vld [vmem:[#allocation7 + $0x88] sm:$0xff]
    %v116 = vld [vmem:[#allocation7 + $0x90] sm:$0xff]
    %v117 = vld [vmem:[#allocation7 + $0x98] sm:$0xff]
    %v118 = vld [vmem:[#allocation7 + $0xa0] sm:$0xff]
    %v119 = vld [vmem:[#allocation7 + $0xa8] sm:$0xff]
    %v120 = vld [vmem:[#allocation7 + $0xb0] sm:$0xff]
    %v121 = vld [vmem:[#allocation7 + $0xb8] sm:$0xff]
    %v122 = vld [vmem:[#allocation7 + $0xc0] sm:$0xff]
    %v123 = vld [vmem:[#allocation7 + $0xc8] sm:$0xff]
    %v124 = vld [vmem:[#allocation7 + $0xd0] sm:$0xff]
    %v125 = vld [vmem:[#allocation7 + $0xd8] sm:$0xff]
    %v126 = vld [vmem:[#allocation7 + $0xe0] sm:$0xff]
    %v127 = vld [vmem:[#allocation7 + $0xe8] sm:$0xff]
    %v128 = vld [vmem:[#allocation7 + $0xf0] sm:$0xff]
    %v129 = vld [vmem:[#allocation7 + $0xf8] sm:$0xff]
    %v130 = vld [vmem:[#allocation7 + $0x100] sm:$0xff]
    %v131 = vld [vmem:[#allocation7 + $0x108] sm:$0xff]
    %v132 = vld [vmem:[#allocation7 + $0x110] sm:$0xff]
    %v133 = vld [vmem:[#allocation7 + $0x118] sm:$0xff]
    %v134 = vld [vmem:[#allocation7 + $0x120] sm:$0xff]
    %v135 = vld [vmem:[#allocation7 + $0x128] sm:$0xff]
    %v136 = vld [vmem:[#allocation7 + $0x130] sm:$0xff]
    %v137 = vld [vmem:[#allocation7 + $0x138] sm:$0xff]
    %v138 = vld [vmem:[#allocation7 + $0x140] sm:$0xff]
    %v139 = vld [vmem:[#allocation7 + $0x148] sm:$0xff]
    %v140 = vld [vmem:[#allocation7 + $0x150] sm:$0xff]
    %v141 = vld [vmem:[#allocation7 + $0x158] sm:$0xff]
    %v142 = vld [vmem:[#allocation7 + $0x160] sm:$0xff]
    %v143 = vld [vmem:[#allocation7 + $0x168] sm:$0xff]
    %v144 = vld [vmem:[#allocation7 + $0x170] sm:$0xff]
    %v145 = vld [vmem:[#allocation7 + $0x178] sm:$0xff]
    %v146 = vld [vmem:[#allocation7 + $0x180] sm:$0xff]
    %v147 = vld [vmem:[#allocation7 + $0x188] sm:$0xff]
    %v148 = vld [vmem:[#allocation7 + $0x190] sm:$0xff]
    %v149 = vld [vmem:[#allocation7 + $0x198] sm:$0xff]
    %v150 = vld [vmem:[#allocation7 + $0x1a0] sm:$0xff]
    %v151 = vld [vmem:[#allocation7 + $0x1a8] sm:$0xff]
    %v152 = vld [vmem:[#allocation7 + $0x1b0] sm:$0xff]
    %v153 = vld [vmem:[#allocation7 + $0x1b8] sm:$0xff]
    %v154 = vld [vmem:[#allocation7 + $0x1c0] sm:$0xff]
    %v155 = vld [vmem:[#allocation7 + $0x1c8] sm:$0xff]
    %v156 = vld [vmem:[#allocation7 + $0x1d0] sm:$0xff]
    %v157 = vld [vmem:[#allocation7 + $0x1d8] sm:$0xff]
    %v158 = vld [vmem:[#allocation7 + $0x1e0] sm:$0xff]
    %v159 = vld [vmem:[#allocation7 + $0x1e8] sm:$0xff]
    %v160 = vld [vmem:[#allocation7 + $0x1f0] sm:$0xff]
    %v161 = vld [vmem:[#allocation7 + $0x1f8] sm:$0xff]
    %v162 = vld [vmem:[#allocation7 + $0x200] sm:$0xff]
    %v163 = vld [vmem:[#allocation7 + $0x208] sm:$0xff]
    %v164 = vld [vmem:[#allocation7 + $0x210] sm:$0xff]
    %v165 = vld [vmem:[#allocation7 + $0x218] sm:$0xff]
    %v166 = vld [vmem:[#allocation7 + $0x220] sm:$0xff]
    %v167 = vld [vmem:[#allocation7 + $0x228] sm:$0xff]
    %v168 = vld [vmem:[#allocation7 + $0x230] sm:$0xff]
    %v169 = vld [vmem:[#allocation7 + $0x238] sm:$0xff]
    %v170 = vld [vmem:[#allocation7 + $0x240] sm:$0xff]
    %v171 = vld [vmem:[#allocation7 + $0x248] sm:$0xff]
    %v172 = vld [vmem:[#allocation7 + $0x250] sm:$0xff]
    %v173 = vld [vmem:[#allocation7 + $0x258] sm:$0xff]
    %v174 = vld [vmem:[#allocation7 + $0x260] sm:$0xff]
    %v175 = vld [vmem:[#allocation7 + $0x268] sm:$0xff]
    %v176 = vld [vmem:[#allocation7 + $0x270] sm:$0xff]
    %v177 = vld [vmem:[#allocation7 + $0x278] sm:$0xff]
    %v178 = vld [vmem:[#allocation7 + $0x280] sm:$0xff]
    %v179 = vld [vmem:[#allocation7 + $0x288] sm:$0xff]
    %v180 = vld [vmem:[#allocation7 + $0x290] sm:$0xff]
    %v181 = vld [vmem:[#allocation7 + $0x298] sm:$0xff]
    %v182 = vld [vmem:[#allocation7 + $0x2a0] sm:$0xff]
    %v183 = vld [vmem:[#allocation7 + $0x2a8] sm:$0xff]
    %v184 = vld [vmem:[#allocation7 + $0x2b0] sm:$0xff]
    %v185 = vld [vmem:[#allocation7 + $0x2b8] sm:$0xff]
    %v186 = vld [vmem:[#allocation7 + $0x2c0] sm:$0xff]
    %v187 = vld [vmem:[#allocation7 + $0x2c8] sm:$0xff]
    %v188 = vld [vmem:[#allocation7 + $0x2d0] sm:$0xff]
    %v189 = vld [vmem:[#allocation7 + $0x2d8] sm:$0xff]
    %v190 = vld [vmem:[#allocation7 + $0x2e0] sm:$0xff]
    %v191 = vld [vmem:[#allocation7 + $0x2e8] sm:$0xff]
    %v192 = vld [vmem:[#allocation7 + $0x2f0] sm:$0xff]
    %v193 = vld [vmem:[#allocation7 + $0x2f8] sm:$0xff]
    %v194 = vld [vmem:[#allocation7 + $0x300] sm:$0xff]
    %v195 = vld [vmem:[#allocation7 + $0x308] sm:$0xff]
    %v196 = vld [vmem:[#allocation7 + $0x310] sm:$0xff]
    %v197 = vld [vmem:[#allocation7 + $0x318] sm:$0xff]
    %v198 = vld [vmem:[#allocation7 + $0x320] sm:$0xff]
    %v199 = vld [vmem:[#allocation7 + $0x328] sm:$0xff]
    %v200 = vld [vmem:[#allocation7 + $0x330] sm:$0xff]
    %v201 = vld [vmem:[#allocation7 + $0x338] sm:$0xff]
    %v202 = vld [vmem:[#allocation7 + $0x340] sm:$0xff]
    %v203 = vld [vmem:[#allocation7 + $0x348] sm:$0xff]
    %v204 = vld [vmem:[#allocation7 + $0x350] sm:$0xff]
    %v205 = vld [vmem:[#allocation7 + $0x358] sm:$0xff]
    %v206 = vld [vmem:[#allocation7 + $0x360] sm:$0xff]
    %v207 = vld [vmem:[#allocation7 + $0x368] sm:$0xff]
    %v208 = vld [vmem:[#allocation7 + $0x370] sm:$0xff]
    %v209 = vld [vmem:[#allocation7 + $0x378] sm:$0xff]
    %v210 = vld [vmem:[#allocation7 + $0x380] sm:$0xff]
    %v211 = vld [vmem:[#allocation7 + $0x388] sm:$0xff]
    %v212 = vld [vmem:[#allocation7 + $0x390] sm:$0xff]
    %v213 = vld [vmem:[#allocation7 + $0x398] sm:$0xff]
    %v214 = vld [vmem:[#allocation7 + $0x3a0] sm:$0xff]
    %v215 = vld [vmem:[#allocation7 + $0x3a8] sm:$0xff]
    %v216 = vld [vmem:[#allocation7 + $0x3b0] sm:$0xff]
    %v217 = vld [vmem:[#allocation7 + $0x3b8] sm:$0xff]
    %v218 = vld [vmem:[#allocation7 + $0x3c0] sm:$0xff]
    %v219 = vld [vmem:[#allocation7 + $0x3c8] sm:$0xff]
    %v220 = vld [vmem:[#allocation7 + $0x3d0] sm:$0xff]
    %v221 = vld [vmem:[#allocation7 + $0x3d8] sm:$0xff]
    %v222 = vld [vmem:[#allocation7 + $0x3e0] sm:$0xff]
    %v223 = vld [vmem:[#allocation7 + $0x3e8] sm:$0xff]
    %v224 = vld [vmem:[#allocation7 + $0x3f0] sm:$0xff]
    %v225 = vld [vmem:[#allocation7 + $0x3f8] sm:$0xff]
    %v226 = vld [vmem:[#allocation7 + $0x400] sm:$0xff]
    %v227 = vld [vmem:[#allocation7 + $0x408] sm:$0xff]
    %v228 = vld [vmem:[#allocation7 + $0x410] sm:$0xff]
    %v229 = vld [vmem:[#allocation7 + $0x418] sm:$0xff]
    %v230 = vld [vmem:[#allocation7 + $0x420] sm:$0xff]
    %v231 = vld [vmem:[#allocation7 + $0x428] sm:$0xff]
    %v232 = vld [vmem:[#allocation7 + $0x430] sm:$0xff]
    %v233 = vld [vmem:[#allocation7 + $0x438] sm:$0xff]
    %v234 = vld [vmem:[#allocation7 + $0x440] sm:$0xff]
    %v235 = vld [vmem:[#allocation7 + $0x448] sm:$0xff]
    %v236 = vld [vmem:[#allocation7 + $0x450] sm:$0xff]
    %v237 = vld [vmem:[#allocation7 + $0x458] sm:$0xff]
    %v238 = vld [vmem:[#allocation7 + $0x460] sm:$0xff]
    %v239 = vld [vmem:[#allocation7 + $0x468] sm:$0xff]
    %v240 = vld [vmem:[#allocation7 + $0x470] sm:$0xff]
    %v241 = vld [vmem:[#allocation7 + $0x478] sm:$0xff]
    %v242 = vld [vmem:[#allocation7 + $0x480] sm:$0xff]
    %v243 = vld [vmem:[#allocation7 + $0x488] sm:$0xff]
    %v244 = vld [vmem:[#allocation7 + $0x490] sm:$0xff]
    %v245 = vld [vmem:[#allocation7 + $0x498] sm:$0xff]
    %v246 = vld [vmem:[#allocation7 + $0x4a0] sm:$0xff]
    %v247 = vld [vmem:[#allocation7 + $0x4a8] sm:$0xff]
    %v248 = vld [vmem:[#allocation7 + $0x4b0] sm:$0xff]
    %v249 = vld [vmem:[#allocation7 + $0x4b8] sm:$0xff]
    %v250 = vld [vmem:[#allocation7 + $0x4c0] sm:$0xff]
    %v251 = vld [vmem:[#allocation7 + $0x4c8] sm:$0xff]
    %v252 = vld [vmem:[#allocation7 + $0x4d0] sm:$0xff]
    %v253 = vld [vmem:[#allocation7 + $0x4d8] sm:$0xff]
    %v254 = vld [vmem:[#allocation7 + $0x4e0] sm:$0xff]
    %v255 = vld [vmem:[#allocation7 + $0x4e8] sm:$0xff]
    %v256 = vld [vmem:[#allocation7 + $0x4f0] sm:$0xff]
    %v257 = vld [vmem:[#allocation7 + $0x4f8] sm:$0xff]
    %v258 = vld [vmem:[#allocation7 + $0x500] sm:$0xff]
    %v259 = vld [vmem:[#allocation7 + $0x508] sm:$0xff]
    %v260 = vld [vmem:[#allocation7 + $0x510] sm:$0xff]
    %v261 = vld [vmem:[#allocation7 + $0x518] sm:$0xff]
    %v262 = vld [vmem:[#allocation7 + $0x520] sm:$0xff]
    %v263 = vld [vmem:[#allocation7 + $0x528] sm:$0xff]
    %v264 = vld [vmem:[#allocation7 + $0x530] sm:$0xff]
    %v265 = vld [vmem:[#allocation7 + $0x538] sm:$0xff]
    %v266 = vld [vmem:[#allocation7 + $0x540] sm:$0xff]
    %v267 = vld [vmem:[#allocation7 + $0x548] sm:$0xff]
    %v268 = vld [vmem:[#allocation7 + $0x550] sm:$0xff]
    %v269 = vld [vmem:[#allocation7 + $0x558] sm:$0xff]
    %v270 = vld [vmem:[#allocation7 + $0x560] sm:$0xff]
    %v271 = vld [vmem:[#allocation7 + $0x568] sm:$0xff]
    %v272 = vld [vmem:[#allocation7 + $0x570] sm:$0xff]
    %v273 = vld [vmem:[#allocation7 + $0x578] sm:$0xff]
    %v274 = vld [vmem:[#allocation7 + $0x580] sm:$0xff]
    %v275 = vld [vmem:[#allocation7 + $0x588] sm:$0xff]
    %v276 = vld [vmem:[#allocation7 + $0x590] sm:$0xff]
    %v277 = vld [vmem:[#allocation7 + $0x598] sm:$0xff]
    %v278 = vld [vmem:[#allocation7 + $0x5a0] sm:$0xff]
    %v279 = vld [vmem:[#allocation7 + $0x5a8] sm:$0xff]
    %v280 = vld [vmem:[#allocation7 + $0x5b0] sm:$0xff]
    %v281 = vld [vmem:[#allocation7 + $0x5b8] sm:$0xff]
    %v282 = vld [vmem:[#allocation7 + $0x5c0] sm:$0xff]
    %v283 = vld [vmem:[#allocation7 + $0x5c8] sm:$0xff]
    %v284 = vld [vmem:[#allocation7 + $0x5d0] sm:$0xff]
    %v285 = vld [vmem:[#allocation7 + $0x5d8] sm:$0xff]
    %v286 = vld [vmem:[#allocation7 + $0x5e0] sm:$0xff]
    %v287 = vld [vmem:[#allocation7 + $0x5e8] sm:$0xff]
    %v288 = vld [vmem:[#allocation7 + $0x5f0] sm:$0xff]
    %v289 = vld [vmem:[#allocation7 + $0x5f8] sm:$0xff]
    %v290 = vld [vmem:[#allocation7 + $0x600] sm:$0xff]
    %v291 = vld [vmem:[#allocation7 + $0x608] sm:$0xff]
    %v292 = vld [vmem:[#allocation7 + $0x610] sm:$0xff]
    %v293 = vld [vmem:[#allocation7 + $0x618] sm:$0xff]
    %v294 = vld [vmem:[#allocation7 + $0x620] sm:$0xff]
    %v295 = vld [vmem:[#allocation7 + $0x628] sm:$0xff]
    %v296 = vld [vmem:[#allocation7 + $0x630] sm:$0xff]
    %v297 = vld [vmem:[#allocation7 + $0x638] sm:$0xff]
    %v298 = vld [vmem:[#allocation7 + $0x640] sm:$0xff]
    %v299 = vld [vmem:[#allocation7 + $0x648] sm:$0xff]
    %v300 = vld [vmem:[#allocation7 + $0x650] sm:$0xff]
    %v301 = vld [vmem:[#allocation7 + $0x658] sm:$0xff]
    %v302 = vld [vmem:[#allocation7 + $0x660] sm:$0xff]
    %v303 = vld [vmem:[#allocation7 + $0x668] sm:$0xff]
    %v304 = vld [vmem:[#allocation7 + $0x670] sm:$0xff]
    %v305 = vld [vmem:[#allocation7 + $0x678] sm:$0xff]
    %v306 = vld [vmem:[#allocation7 + $0x680] sm:$0xff]
    %v307 = vld [vmem:[#allocation7 + $0x688] sm:$0xff]
    %v308 = vld [vmem:[#allocation7 + $0x690] sm:$0xff]
    %v309 = vld [vmem:[#allocation7 + $0x698] sm:$0xff]
    %v310 = vld [vmem:[#allocation7 + $0x6a0] sm:$0xff]
    %v311 = vld [vmem:[#allocation7 + $0x6a8] sm:$0xff]
    %v312 = vld [vmem:[#allocation7 + $0x6b0] sm:$0xff]
    %v313 = vld [vmem:[#allocation7 + $0x6b8] sm:$0xff]
    %v314 = vld [vmem:[#allocation7 + $0x6c0] sm:$0xff]
    %v315 = vld [vmem:[#allocation7 + $0x6c8] sm:$0xff]
    %v316 = vld [vmem:[#allocation7 + $0x6d0] sm:$0xff]
    %v317 = vld [vmem:[#allocation7 + $0x6d8] sm:$0xff]
    %v318 = vld [vmem:[#allocation7 + $0x6e0] sm:$0xff]
    %v319 = vld [vmem:[#allocation7 + $0x6e8] sm:$0xff]
    %v320 = vld [vmem:[#allocation7 + $0x6f0] sm:$0xff]
    %v321 = vld [vmem:[#allocation7 + $0x6f8] sm:$0xff]
    %v322 = vld [vmem:[#allocation7 + $0x700] sm:$0xff]
    %v323 = vld [vmem:[#allocation7 + $0x708] sm:$0xff]
    %v324 = vld [vmem:[#allocation7 + $0x710] sm:$0xff]
    %v325 = vld [vmem:[#allocation7 + $0x718] sm:$0xff]
    %v326 = vld [vmem:[#allocation7 + $0x720] sm:$0xff]
    %v327 = vld [vmem:[#allocation7 + $0x728] sm:$0xff]
    %v328 = vld [vmem:[#allocation7 + $0x730] sm:$0xff]
    %v329 = vld [vmem:[#allocation7 + $0x738] sm:$0xff]
    %v330 = vld [vmem:[#allocation7 + $0x740] sm:$0xff]
    %v331 = vld [vmem:[#allocation7 + $0x748] sm:$0xff]
    %v332 = vld [vmem:[#allocation7 + $0x750] sm:$0xff]
    %v333 = vld [vmem:[#allocation7 + $0x758] sm:$0xff]
    %v334 = vld [vmem:[#allocation7 + $0x760] sm:$0xff]
    %v335 = vld [vmem:[#allocation7 + $0x768] sm:$0xff]
    %v336 = vld [vmem:[#allocation7 + $0x770] sm:$0xff]
    %v337 = vld [vmem:[#allocation7 + $0x778] sm:$0xff]
    %v338 = vld [vmem:[#allocation7 + $0x780] sm:$0xff]
    %v339 = vld [vmem:[#allocation7 + $0x788] sm:$0xff]
    %v340 = vld [vmem:[#allocation7 + $0x790] sm:$0xff]
    %v341 = vld [vmem:[#allocation7 + $0x798] sm:$0xff]
    %v342 = vld [vmem:[#allocation7 + $0x7a0] sm:$0xff]
    %v343 = vld [vmem:[#allocation7 + $0x7a8] sm:$0xff]
    %v344 = vld [vmem:[#allocation7 + $0x7b0] sm:$0xff]
    %v345 = vld [vmem:[#allocation7 + $0x7b8] sm:$0xff]
    %v346 = vld [vmem:[#allocation7 + $0x7c0] sm:$0xff]
    %v347 = vld [vmem:[#allocation7 + $0x7c8] sm:$0xff]
    %v348 = vld [vmem:[#allocation7 + $0x7d0] sm:$0xff]
    %v349 = vld [vmem:[#allocation7 + $0x7d8] sm:$0xff]
    %v350 = vld [vmem:[#allocation7 + $0x7e0] sm:$0xff]
    %v351 = vld [vmem:[#allocation7 + $0x7e8] sm:$0xff]
    %v352 = vld [vmem:[#allocation7 + $0x7f0] sm:$0xff]
    %v353 = vld [vmem:[#allocation7 + $0x7f8] sm:$0xff]
    %v354 = vld [vmem:[#allocation7 + $0x800] sm:$0xff]
    %v355 = vld [vmem:[#allocation7 + $0x808] sm:$0xff]
    %v356 = vld [vmem:[#allocation7 + $0x810] sm:$0xff]
    %v357 = vld [vmem:[#allocation7 + $0x818] sm:$0xff]
    %v358 = vld [vmem:[#allocation7 + $0x820] sm:$0xff]
    %v359 = vld [vmem:[#allocation7 + $0x828] sm:$0xff]
    %v360 = vld [vmem:[#allocation7 + $0x830] sm:$0xff]
    %v361 = vld [vmem:[#allocation7 + $0x838] sm:$0xff]
    %v362 = vld [vmem:[#allocation7 + $0x840] sm:$0xff]
    %v363 = vld [vmem:[#allocation7 + $0x848] sm:$0xff]
    %v364 = vld [vmem:[#allocation7 + $0x850] sm:$0xff]
    %v365 = vld [vmem:[#allocation7 + $0x858] sm:$0xff]
    %v366 = vld [vmem:[#allocation7 + $0x860] sm:$0xff]
    %v367 = vld [vmem:[#allocation7 + $0x868] sm:$0xff]
    %v368 = vld [vmem:[#allocation7 + $0x870] sm:$0xff]
    %v369 = vld [vmem:[#allocation7 + $0x878] sm:$0xff]
    %v370 = vld [vmem:[#allocation7 + $0x880] sm:$0xff]
    %v371 = vld [vmem:[#allocation7 + $0x888] sm:$0xff]
    %v372 = vld [vmem:[#allocation7 + $0x890] sm:$0xff]
    %v373 = vld [vmem:[#allocation7 + $0x898] sm:$0xff]
    %v374 = vld [vmem:[#allocation7 + $0x8a0] sm:$0xff]
    %v375 = vld [vmem:[#allocation7 + $0x8a8] sm:$0xff]
    %v376 = vld [vmem:[#allocation7 + $0x8b0] sm:$0xff]
    %v377 = vld [vmem:[#allocation7 + $0x8b8] sm:$0xff]
    %v378 = vld [vmem:[#allocation7 + $0x8c0] sm:$0xff]
    %v379 = vld [vmem:[#allocation7 + $0x8c8] sm:$0xff]
    %v380 = vld [vmem:[#allocation7 + $0x8d0] sm:$0xff]
    %v381 = vld [vmem:[#allocation7 + $0x8d8] sm:$0xff]
    %v382 = vld [vmem:[#allocation7 + $0x8e0] sm:$0xff]
    %v383 = vld [vmem:[#allocation7 + $0x8e8] sm:$0xff]
    %v384 = vld [vmem:[#allocation7 + $0x8f0] sm:$0xff]
    %v385 = vld [vmem:[#allocation7 + $0x8f8] sm:$0xff]
    %v386 = vld [vmem:[#allocation9] sm:$0xff]
    %v387 = vld [vmem:[#allocation9 + $0x8] sm:$0xf]
    %v390 = vlaneseq
    %v391 = vshrl.u32 %v390, 7
    %v392 = vsub.s32 0, %v391
    %v393 = vrot.slane %v386, %v392
    %v394 = vlaneseq
    %v395 = vshrl.u32 %v394, 7
    %v396 = vsub.s32 1, %v395
    %v397 = vrot.slane %v386, %v396
    %v398 = vlaneseq
    %v399 = vshrl.u32 %v398, 7
    %v400 = vsub.s32 2, %v399
    %v401 = vrot.slane %v386, %v400
    %v402 = vlaneseq
    %v403 = vshrl.u32 %v402, 7
    %v404 = vsub.s32 3, %v403
    %v405 = vrot.slane %v386, %v404
    %v406 = vlaneseq
    %v407 = vshrl.u32 %v406, 7
    %v408 = vsub.s32 4, %v407
    %v409 = vrot.slane %v386, %v408
    %v410 = vlaneseq
    %v411 = vshrl.u32 %v410, 7
    %v412 = vsub.s32 5, %v411
    %v413 = vrot.slane %v386, %v412
    %v414 = vlaneseq
    %v415 = vshrl.u32 %v414, 7
    %v416 = vsub.s32 6, %v415
    %v417 = vrot.slane %v386, %v416
    %v418 = vlaneseq
    %v419 = vshrl.u32 %v418, 7
    %v420 = vsub.s32 7, %v419
    %v421 = vrot.slane %v386, %v420
    %v422 = vlaneseq
    %v423 = vshrl.u32 %v422, 7
    %v424 = vsub.s32 0, %v423
    %v425 = vrot.slane %v387, %v424
    %v426 = vlaneseq
    %v427 = vshrl.u32 %v426, 7
    %v428 = vsub.s32 1, %v427
    %v429 = vrot.slane %v387, %v428
    %v430 = vlaneseq
    %v431 = vshrl.u32 %v430, 7
    %v432 = vsub.s32 2, %v431
    %v433 = vrot.slane %v387, %v432
    %v434 = vlaneseq
    %v435 = vshrl.u32 %v434, 7
    %v436 = vsub.s32 3, %v435
    %v437 = vrot.slane %v387, %v436
    %v738 = vunpack.c.l.b16 %v98
    %v739 = vunpack.c.h.b16 %v98
    %v740 = vunpack.c.l.b16 %v99
    %v741 = vunpack.c.h.b16 %v99
    %v742 = vunpack.c.l.b16 %v100
    %v743 = vunpack.c.h.b16 %v100
    %v744 = vunpack.c.l.b16 %v101
    %v745 = vunpack.c.h.b16 %v101
    %v746 = vunpack.c.l.b16 %v102
    %v747 = vunpack.c.h.b16 %v102
    %v748 = vunpack.c.l.b16 %v103
    %v749 = vunpack.c.h.b16 %v103
    %v750 = vunpack.c.l.b16 %v104
    %v751 = vunpack.c.h.b16 %v104
    %v752 = vunpack.c.l.b16 %v105
    %v753 = vunpack.c.h.b16 %v105
    %v754 = vunpack.c.l.b16 %v106
    %v755 = vunpack.c.h.b16 %v106
    %v756 = vunpack.c.l.b16 %v107
    %v757 = vunpack.c.h.b16 %v107
    %v758 = vunpack.c.l.b16 %v108
    %v759 = vunpack.c.h.b16 %v108
    %v760 = vunpack.c.l.b16 %v109
    %v761 = vunpack.c.h.b16 %v109
    %v762 = vunpack.c.l.b16 %v110
    %v763 = vunpack.c.h.b16 %v110
    %v764 = vunpack.c.l.b16 %v111
    %v765 = vunpack.c.h.b16 %v111
    %v766 = vunpack.c.l.b16 %v112
    %v767 = vunpack.c.h.b16 %v112
    %v768 = vunpack.c.l.b16 %v113
    %v769 = vunpack.c.h.b16 %v113
    %v770 = vunpack.c.l.b16 %v114
    %v771 = vunpack.c.h.b16 %v114
    %v772 = vunpack.c.l.b16 %v115
    %v773 = vunpack.c.h.b16 %v115
    %v774 = vunpack.c.l.b16 %v116
    %v775 = vunpack.c.h.b16 %v116
    %v776 = vunpack.c.l.b16 %v117
    %v777 = vunpack.c.h.b16 %v117
    %v778 = vunpack.c.l.b16 %v118
    %v779 = vunpack.c.h.b16 %v118
    %v780 = vunpack.c.l.b16 %v119
    %v781 = vunpack.c.h.b16 %v119
    %v782 = vunpack.c.l.b16 %v120
    %v783 = vunpack.c.h.b16 %v120
    %v784 = vunpack.c.l.b16 %v121
    %v785 = vunpack.c.h.b16 %v121
    %v786 = vunpack.c.l.b16 %v122
    %v787 = vunpack.c.h.b16 %v122
    %v788 = vunpack.c.l.b16 %v123
    %v789 = vunpack.c.h.b16 %v123
    %v790 = vunpack.c.l.b16 %v124
    %v791 = vunpack.c.h.b16 %v124
    %v792 = vunpack.c.l.b16 %v125
    %v793 = vunpack.c.h.b16 %v125
    %v794 = vunpack.c.l.b16 %v126
    %v795 = vunpack.c.h.b16 %v126
    %v796 = vunpack.c.l.b16 %v127
    %v797 = vunpack.c.h.b16 %v127
    %v798 = vunpack.c.l.b16 %v128
    %v799 = vunpack.c.h.b16 %v128
    %v800 = vunpack.c.l.b16 %v129
    %v801 = vunpack.c.h.b16 %v129
    %v802 = vunpack.c.l.b16 %v130
    %v803 = vunpack.c.h.b16 %v130
    %v804 = vunpack.c.l.b16 %v131
    %v805 = vunpack.c.h.b16 %v131
    %v806 = vunpack.c.l.b16 %v132
    %v807 = vunpack.c.h.b16 %v132
    %v808 = vunpack.c.l.b16 %v133
    %v809 = vunpack.c.h.b16 %v133
    %v810 = vunpack.c.l.b16 %v134
    %v811 = vunpack.c.h.b16 %v134
    %v812 = vunpack.c.l.b16 %v135
    %v813 = vunpack.c.h.b16 %v135
    %v814 = vunpack.c.l.b16 %v136
    %v815 = vunpack.c.h.b16 %v136
    %v816 = vunpack.c.l.b16 %v137
    %v817 = vunpack.c.h.b16 %v137
    %v818 = vunpack.c.l.b16 %v138
    %v819 = vunpack.c.h.b16 %v138
    %v820 = vunpack.c.l.b16 %v139
    %v821 = vunpack.c.h.b16 %v139
    %v822 = vunpack.c.l.b16 %v140
    %v823 = vunpack.c.h.b16 %v140
    %v824 = vunpack.c.l.b16 %v141
    %v825 = vunpack.c.h.b16 %v141
    %v826 = vunpack.c.l.b16 %v142
    %v827 = vunpack.c.h.b16 %v142
    %v828 = vunpack.c.l.b16 %v143
    %v829 = vunpack.c.h.b16 %v143
    %v830 = vunpack.c.l.b16 %v144
    %v831 = vunpack.c.h.b16 %v144
    %v832 = vunpack.c.l.b16 %v145
    %v833 = vunpack.c.h.b16 %v145
    %v834 = vunpack.c.l.b16 %v146
    %v835 = vunpack.c.h.b16 %v146
    %v836 = vunpack.c.l.b16 %v147
    %v837 = vunpack.c.h.b16 %v147
    %v838 = vunpack.c.l.b16 %v148
    %v839 = vunpack.c.h.b16 %v148
    %v840 = vunpack.c.l.b16 %v149
    %v841 = vunpack.c.h.b16 %v149
    %v842 = vunpack.c.l.b16 %v150
    %v843 = vunpack.c.h.b16 %v150
    %v844 = vunpack.c.l.b16 %v151
    %v845 = vunpack.c.h.b16 %v151
    %v846 = vunpack.c.l.b16 %v152
    %v847 = vunpack.c.h.b16 %v152
    %v848 = vunpack.c.l.b16 %v153
    %v849 = vunpack.c.h.b16 %v153
    %v850 = vunpack.c.l.b16 %v154
    %v851 = vunpack.c.h.b16 %v154
    %v852 = vunpack.c.l.b16 %v155
    %v853 = vunpack.c.h.b16 %v155
    %v854 = vunpack.c.l.b16 %v156
    %v855 = vunpack.c.h.b16 %v156
    %v856 = vunpack.c.l.b16 %v157
    %v857 = vunpack.c.h.b16 %v157
    %v858 = vunpack.c.l.b16 %v158
    %v859 = vunpack.c.h.b16 %v158
    %v860 = vunpack.c.l.b16 %v159
    %v861 = vunpack.c.h.b16 %v159
    %v862 = vunpack.c.l.b16 %v160
    %v863 = vunpack.c.h.b16 %v160
    %v864 = vunpack.c.l.b16 %v161
    %v865 = vunpack.c.h.b16 %v161
    %v866 = vunpack.c.l.b16 %v162
    %v867 = vunpack.c.h.b16 %v162
    %v868 = vunpack.c.l.b16 %v163
    %v869 = vunpack.c.h.b16 %v163
    %v870 = vunpack.c.l.b16 %v164
    %v871 = vunpack.c.h.b16 %v164
    %v872 = vunpack.c.l.b16 %v165
    %v873 = vunpack.c.h.b16 %v165
    %v874 = vunpack.c.l.b16 %v166
    %v875 = vunpack.c.h.b16 %v166
    %v876 = vunpack.c.l.b16 %v167
    %v877 = vunpack.c.h.b16 %v167
    %v878 = vunpack.c.l.b16 %v168
    %v879 = vunpack.c.h.b16 %v168
    %v880 = vunpack.c.l.b16 %v169
    %v881 = vunpack.c.h.b16 %v169
    %v882 = vunpack.c.l.b16 %v170
    %v883 = vunpack.c.h.b16 %v170
    %v884 = vunpack.c.l.b16 %v171
    %v885 = vunpack.c.h.b16 %v171
    %v886 = vunpack.c.l.b16 %v172
    %v887 = vunpack.c.h.b16 %v172
    %v888 = vunpack.c.l.b16 %v173
    %v889 = vunpack.c.h.b16 %v173
    %v890 = vunpack.c.l.b16 %v174
    %v891 = vunpack.c.h.b16 %v174
    %v892 = vunpack.c.l.b16 %v175
    %v893 = vunpack.c.h.b16 %v175
    %v894 = vunpack.c.l.b16 %v176
    %v895 = vunpack.c.h.b16 %v176
    %v896 = vunpack.c.l.b16 %v177
    %v897 = vunpack.c.h.b16 %v177
    %v898 = vunpack.c.l.b16 %v178
    %v899 = vunpack.c.h.b16 %v178
    %v900 = vunpack.c.l.b16 %v179
    %v901 = vunpack.c.h.b16 %v179
    %v902 = vunpack.c.l.b16 %v180
    %v903 = vunpack.c.h.b16 %v180
    %v904 = vunpack.c.l.b16 %v181
    %v905 = vunpack.c.h.b16 %v181
    %v906 = vunpack.c.l.b16 %v182
    %v907 = vunpack.c.h.b16 %v182
    %v908 = vunpack.c.l.b16 %v183
    %v909 = vunpack.c.h.b16 %v183
    %v910 = vunpack.c.l.b16 %v184
    %v911 = vunpack.c.h.b16 %v184
    %v912 = vunpack.c.l.b16 %v185
    %v913 = vunpack.c.h.b16 %v185
    %v914 = vunpack.c.l.b16 %v186
    %v915 = vunpack.c.h.b16 %v186
    %v916 = vunpack.c.l.b16 %v187
    %v917 = vunpack.c.h.b16 %v187
    %v918 = vunpack.c.l.b16 %v188
    %v919 = vunpack.c.h.b16 %v188
    %v920 = vunpack.c.l.b16 %v189
    %v921 = vunpack.c.h.b16 %v189
    %v922 = vunpack.c.l.b16 %v190
    %v923 = vunpack.c.h.b16 %v190
    %v924 = vunpack.c.l.b16 %v191
    %v925 = vunpack.c.h.b16 %v191
    %v926 = vunpack.c.l.b16 %v192
    %v927 = vunpack.c.h.b16 %v192
    %v928 = vunpack.c.l.b16 %v193
    %v929 = vunpack.c.h.b16 %v193
    %v930 = vunpack.c.l.b16 %v194
    %v931 = vunpack.c.h.b16 %v194
    %v932 = vunpack.c.l.b16 %v195
    %v933 = vunpack.c.h.b16 %v195
    %v934 = vunpack.c.l.b16 %v196
    %v935 = vunpack.c.h.b16 %v196
    %v936 = vunpack.c.l.b16 %v197
    %v937 = vunpack.c.h.b16 %v197
    %v938 = vunpack.c.l.b16 %v198
    %v939 = vunpack.c.h.b16 %v198
    %v940 = vunpack.c.l.b16 %v199
    %v941 = vunpack.c.h.b16 %v199
    %v942 = vunpack.c.l.b16 %v200
    %v943 = vunpack.c.h.b16 %v200
    %v944 = vunpack.c.l.b16 %v201
    %v945 = vunpack.c.h.b16 %v201
    %v946 = vunpack.c.l.b16 %v202
    %v947 = vunpack.c.h.b16 %v202
    %v948 = vunpack.c.l.b16 %v203
    %v949 = vunpack.c.h.b16 %v203
    %v950 = vunpack.c.l.b16 %v204
    %v951 = vunpack.c.h.b16 %v204
    %v952 = vunpack.c.l.b16 %v205
    %v953 = vunpack.c.h.b16 %v205
    %v954 = vunpack.c.l.b16 %v206
    %v955 = vunpack.c.h.b16 %v206
    %v956 = vunpack.c.l.b16 %v207
    %v957 = vunpack.c.h.b16 %v207
    %v958 = vunpack.c.l.b16 %v208
    %v959 = vunpack.c.h.b16 %v208
    %v960 = vunpack.c.l.b16 %v209
    %v961 = vunpack.c.h.b16 %v209
    %v962 = vunpack.c.l.b16 %v210
    %v963 = vunpack.c.h.b16 %v210
    %v964 = vunpack.c.l.b16 %v211
    %v965 = vunpack.c.h.b16 %v211
    %v966 = vunpack.c.l.b16 %v212
    %v967 = vunpack.c.h.b16 %v212
    %v968 = vunpack.c.l.b16 %v213
    %v969 = vunpack.c.h.b16 %v213
    %v970 = vunpack.c.l.b16 %v214
    %v971 = vunpack.c.h.b16 %v214
    %v972 = vunpack.c.l.b16 %v215
    %v973 = vunpack.c.h.b16 %v215
    %v974 = vunpack.c.l.b16 %v216
    %v975 = vunpack.c.h.b16 %v216
    %v976 = vunpack.c.l.b16 %v217
    %v977 = vunpack.c.h.b16 %v217
    %v978 = vunpack.c.l.b16 %v218
    %v979 = vunpack.c.h.b16 %v218
    %v980 = vunpack.c.l.b16 %v219
    %v981 = vunpack.c.h.b16 %v219
    %v982 = vunpack.c.l.b16 %v220
    %v983 = vunpack.c.h.b16 %v220
    %v984 = vunpack.c.l.b16 %v221
    %v985 = vunpack.c.h.b16 %v221
    %v986 = vunpack.c.l.b16 %v222
    %v987 = vunpack.c.h.b16 %v222
    %v988 = vunpack.c.l.b16 %v223
    %v989 = vunpack.c.h.b16 %v223
    %v990 = vunpack.c.l.b16 %v224
    %v991 = vunpack.c.h.b16 %v224
    %v992 = vunpack.c.l.b16 %v225
    %v993 = vunpack.c.h.b16 %v225
    %v994 = vunpack.c.l.b16 %v226
    %v995 = vunpack.c.h.b16 %v226
    %v996 = vunpack.c.l.b16 %v227
    %v997 = vunpack.c.h.b16 %v227
    %v998 = vunpack.c.l.b16 %v228
    %v999 = vunpack.c.h.b16 %v228
    %v1000 = vunpack.c.l.b16 %v229
    %v1001 = vunpack.c.h.b16 %v229
    %v1002 = vunpack.c.l.b16 %v230
    %v1003 = vunpack.c.h.b16 %v230
    %v1004 = vunpack.c.l.b16 %v231
    %v1005 = vunpack.c.h.b16 %v231
    %v1006 = vunpack.c.l.b16 %v232
    %v1007 = vunpack.c.h.b16 %v232
    %v1008 = vunpack.c.l.b16 %v233
    %v1009 = vunpack.c.h.b16 %v233
    %v1010 = vunpack.c.l.b16 %v234
    %v1011 = vunpack.c.h.b16 %v234
    %v1012 = vunpack.c.l.b16 %v235
    %v1013 = vunpack.c.h.b16 %v235
    %v1014 = vunpack.c.l.b16 %v236
    %v1015 = vunpack.c.h.b16 %v236
    %v1016 = vunpack.c.l.b16 %v237
    %v1017 = vunpack.c.h.b16 %v237
    %v1018 = vunpack.c.l.b16 %v238
    %v1019 = vunpack.c.h.b16 %v238
    %v1020 = vunpack.c.l.b16 %v239
    %v1021 = vunpack.c.h.b16 %v239
    %v1022 = vunpack.c.l.b16 %v240
    %v1023 = vunpack.c.h.b16 %v240
    %v1024 = vunpack.c.l.b16 %v241
    %v1025 = vunpack.c.h.b16 %v241
    %v1026 = vunpack.c.l.b16 %v242
    %v1027 = vunpack.c.h.b16 %v242
    %v1028 = vunpack.c.l.b16 %v243
    %v1029 = vunpack.c.h.b16 %v243
    %v1030 = vunpack.c.l.b16 %v244
    %v1031 = vunpack.c.h.b16 %v244
    %v1032 = vunpack.c.l.b16 %v245
    %v1033 = vunpack.c.h.b16 %v245
    %v1034 = vunpack.c.l.b16 %v246
    %v1035 = vunpack.c.h.b16 %v246
    %v1036 = vunpack.c.l.b16 %v247
    %v1037 = vunpack.c.h.b16 %v247
    %v1038 = vunpack.c.l.b16 %v248
    %v1039 = vunpack.c.h.b16 %v248
    %v1040 = vunpack.c.l.b16 %v249
    %v1041 = vunpack.c.h.b16 %v249
    %v1042 = vunpack.c.l.b16 %v250
    %v1043 = vunpack.c.h.b16 %v250
    %v1044 = vunpack.c.l.b16 %v251
    %v1045 = vunpack.c.h.b16 %v251
    %v1046 = vunpack.c.l.b16 %v252
    %v1047 = vunpack.c.h.b16 %v252
    %v1048 = vunpack.c.l.b16 %v253
    %v1049 = vunpack.c.h.b16 %v253
    %v1050 = vunpack.c.l.b16 %v254
    %v1051 = vunpack.c.h.b16 %v254
    %v1052 = vunpack.c.l.b16 %v255
    %v1053 = vunpack.c.h.b16 %v255
    %v1054 = vunpack.c.l.b16 %v256
    %v1055 = vunpack.c.h.b16 %v256
    %v1056 = vunpack.c.l.b16 %v257
    %v1057 = vunpack.c.h.b16 %v257
    %v1058 = vunpack.c.l.b16 %v258
    %v1059 = vunpack.c.h.b16 %v258
    %v1060 = vunpack.c.l.b16 %v259
    %v1061 = vunpack.c.h.b16 %v259
    %v1062 = vunpack.c.l.b16 %v260
    %v1063 = vunpack.c.h.b16 %v260
    %v1064 = vunpack.c.l.b16 %v261
    %v1065 = vunpack.c.h.b16 %v261
    %v1066 = vunpack.c.l.b16 %v262
    %v1067 = vunpack.c.h.b16 %v262
    %v1068 = vunpack.c.l.b16 %v263
    %v1069 = vunpack.c.h.b16 %v263
    %v1070 = vunpack.c.l.b16 %v264
    %v1071 = vunpack.c.h.b16 %v264
    %v1072 = vunpack.c.l.b16 %v265
    %v1073 = vunpack.c.h.b16 %v265
    %v1074 = vunpack.c.l.b16 %v266
    %v1075 = vunpack.c.h.b16 %v266
    %v1076 = vunpack.c.l.b16 %v267
    %v1077 = vunpack.c.h.b16 %v267
    %v1078 = vunpack.c.l.b16 %v268
    %v1079 = vunpack.c.h.b16 %v268
    %v1080 = vunpack.c.l.b16 %v269
    %v1081 = vunpack.c.h.b16 %v269
    %v1082 = vunpack.c.l.b16 %v270
    %v1083 = vunpack.c.h.b16 %v270
    %v1084 = vunpack.c.l.b16 %v271
    %v1085 = vunpack.c.h.b16 %v271
    %v1086 = vunpack.c.l.b16 %v272
    %v1087 = vunpack.c.h.b16 %v272
    %v1088 = vunpack.c.l.b16 %v273
    %v1089 = vunpack.c.h.b16 %v273
    %v1090 = vunpack.c.l.b16 %v274
    %v1091 = vunpack.c.h.b16 %v274
    %v1092 = vunpack.c.l.b16 %v275
    %v1093 = vunpack.c.h.b16 %v275
    %v1094 = vunpack.c.l.b16 %v276
    %v1095 = vunpack.c.h.b16 %v276
    %v1096 = vunpack.c.l.b16 %v277
    %v1097 = vunpack.c.h.b16 %v277
    %v1098 = vunpack.c.l.b16 %v278
    %v1099 = vunpack.c.h.b16 %v278
    %v1100 = vunpack.c.l.b16 %v279
    %v1101 = vunpack.c.h.b16 %v279
    %v1102 = vunpack.c.l.b16 %v280
    %v1103 = vunpack.c.h.b16 %v280
    %v1104 = vunpack.c.l.b16 %v281
    %v1105 = vunpack.c.h.b16 %v281
    %v1106 = vunpack.c.l.b16 %v282
    %v1107 = vunpack.c.h.b16 %v282
    %v1108 = vunpack.c.l.b16 %v283
    %v1109 = vunpack.c.h.b16 %v283
    %v1110 = vunpack.c.l.b16 %v284
    %v1111 = vunpack.c.h.b16 %v284
    %v1112 = vunpack.c.l.b16 %v285
    %v1113 = vunpack.c.h.b16 %v285
    %v1114 = vunpack.c.l.b16 %v286
    %v1115 = vunpack.c.h.b16 %v286
    %v1116 = vunpack.c.l.b16 %v287
    %v1117 = vunpack.c.h.b16 %v287
    %v1118 = vunpack.c.l.b16 %v288
    %v1119 = vunpack.c.h.b16 %v288
    %v1120 = vunpack.c.l.b16 %v289
    %v1121 = vunpack.c.h.b16 %v289
    %v1122 = vunpack.c.l.b16 %v290
    %v1123 = vunpack.c.h.b16 %v290
    %v1124 = vunpack.c.l.b16 %v291
    %v1125 = vunpack.c.h.b16 %v291
    %v1126 = vunpack.c.l.b16 %v292
    %v1127 = vunpack.c.h.b16 %v292
    %v1128 = vunpack.c.l.b16 %v293
    %v1129 = vunpack.c.h.b16 %v293
    %v1130 = vunpack.c.l.b16 %v294
    %v1131 = vunpack.c.h.b16 %v294
    %v1132 = vunpack.c.l.b16 %v295
    %v1133 = vunpack.c.h.b16 %v295
    %v1134 = vunpack.c.l.b16 %v296
    %v1135 = vunpack.c.h.b16 %v296
    %v1136 = vunpack.c.l.b16 %v297
    %v1137 = vunpack.c.h.b16 %v297
    %v1138 = vunpack.c.l.b16 %v298
    %v1139 = vunpack.c.h.b16 %v298
    %v1140 = vunpack.c.l.b16 %v299
    %v1141 = vunpack.c.h.b16 %v299
    %v1142 = vunpack.c.l.b16 %v300
    %v1143 = vunpack.c.h.b16 %v300
    %v1144 = vunpack.c.l.b16 %v301
    %v1145 = vunpack.c.h.b16 %v301
    %v1146 = vunpack.c.l.b16 %v302
    %v1147 = vunpack.c.h.b16 %v302
    %v1148 = vunpack.c.l.b16 %v303
    %v1149 = vunpack.c.h.b16 %v303
    %v1150 = vunpack.c.l.b16 %v304
    %v1151 = vunpack.c.h.b16 %v304
    %v1152 = vunpack.c.l.b16 %v305
    %v1153 = vunpack.c.h.b16 %v305
    %v1154 = vunpack.c.l.b16 %v306
    %v1155 = vunpack.c.h.b16 %v306
    %v1156 = vunpack.c.l.b16 %v307
    %v1157 = vunpack.c.h.b16 %v307
    %v1158 = vunpack.c.l.b16 %v308
    %v1159 = vunpack.c.h.b16 %v308
    %v1160 = vunpack.c.l.b16 %v309
    %v1161 = vunpack.c.h.b16 %v309
    %v1162 = vunpack.c.l.b16 %v310
    %v1163 = vunpack.c.h.b16 %v310
    %v1164 = vunpack.c.l.b16 %v311
    %v1165 = vunpack.c.h.b16 %v311
    %v1166 = vunpack.c.l.b16 %v312
    %v1167 = vunpack.c.h.b16 %v312
    %v1168 = vunpack.c.l.b16 %v313
    %v1169 = vunpack.c.h.b16 %v313
    %v1170 = vunpack.c.l.b16 %v314
    %v1171 = vunpack.c.h.b16 %v314
    %v1172 = vunpack.c.l.b16 %v315
    %v1173 = vunpack.c.h.b16 %v315
    %v1174 = vunpack.c.l.b16 %v316
    %v1175 = vunpack.c.h.b16 %v316
    %v1176 = vunpack.c.l.b16 %v317
    %v1177 = vunpack.c.h.b16 %v317
    %v1178 = vunpack.c.l.b16 %v318
    %v1179 = vunpack.c.h.b16 %v318
    %v1180 = vunpack.c.l.b16 %v319
    %v1181 = vunpack.c.h.b16 %v319
    %v1182 = vunpack.c.l.b16 %v320
    %v1183 = vunpack.c.h.b16 %v320
    %v1184 = vunpack.c.l.b16 %v321
    %v1185 = vunpack.c.h.b16 %v321
    %v1186 = vunpack.c.l.b16 %v322
    %v1187 = vunpack.c.h.b16 %v322
    %v1188 = vunpack.c.l.b16 %v323
    %v1189 = vunpack.c.h.b16 %v323
    %v1190 = vunpack.c.l.b16 %v324
    %v1191 = vunpack.c.h.b16 %v324
    %v1192 = vunpack.c.l.b16 %v325
    %v1193 = vunpack.c.h.b16 %v325
    %v1194 = vunpack.c.l.b16 %v326
    %v1195 = vunpack.c.h.b16 %v326
    %v1196 = vunpack.c.l.b16 %v327
    %v1197 = vunpack.c.h.b16 %v327
    %v1198 = vunpack.c.l.b16 %v328
    %v1199 = vunpack.c.h.b16 %v328
    %v1200 = vunpack.c.l.b16 %v329
    %v1201 = vunpack.c.h.b16 %v329
    %v1202 = vunpack.c.l.b16 %v330
    %v1203 = vunpack.c.h.b16 %v330
    %v1204 = vunpack.c.l.b16 %v331
    %v1205 = vunpack.c.h.b16 %v331
    %v1206 = vunpack.c.l.b16 %v332
    %v1207 = vunpack.c.h.b16 %v332
    %v1208 = vunpack.c.l.b16 %v333
    %v1209 = vunpack.c.h.b16 %v333
    %v1210 = vunpack.c.l.b16 %v334
    %v1211 = vunpack.c.h.b16 %v334
    %v1212 = vunpack.c.l.b16 %v335
    %v1213 = vunpack.c.h.b16 %v335
    %v1214 = vunpack.c.l.b16 %v336
    %v1215 = vunpack.c.h.b16 %v336
    %v1216 = vunpack.c.l.b16 %v337
    %v1217 = vunpack.c.h.b16 %v337
    %v1218 = vunpack.c.l.b16 %v338
    %v1219 = vunpack.c.h.b16 %v338
    %v1220 = vunpack.c.l.b16 %v339
    %v1221 = vunpack.c.h.b16 %v339
    %v1222 = vunpack.c.l.b16 %v340
    %v1223 = vunpack.c.h.b16 %v340
    %v1224 = vunpack.c.l.b16 %v341
    %v1225 = vunpack.c.h.b16 %v341
    %v1226 = vunpack.c.l.b16 %v342
    %v1227 = vunpack.c.h.b16 %v342
    %v1228 = vunpack.c.l.b16 %v343
    %v1229 = vunpack.c.h.b16 %v343
    %v1230 = vunpack.c.l.b16 %v344
    %v1231 = vunpack.c.h.b16 %v344
    %v1232 = vunpack.c.l.b16 %v345
    %v1233 = vunpack.c.h.b16 %v345
    %v1234 = vunpack.c.l.b16 %v346
    %v1235 = vunpack.c.h.b16 %v346
    %v1236 = vunpack.c.l.b16 %v347
    %v1237 = vunpack.c.h.b16 %v347
    %v1238 = vunpack.c.l.b16 %v348
    %v1239 = vunpack.c.h.b16 %v348
    %v1240 = vunpack.c.l.b16 %v349
    %v1241 = vunpack.c.h.b16 %v349
    %v1242 = vunpack.c.l.b16 %v350
    %v1243 = vunpack.c.h.b16 %v350
    %v1244 = vunpack.c.l.b16 %v351
    %v1245 = vunpack.c.h.b16 %v351
    %v1246 = vunpack.c.l.b16 %v352
    %v1247 = vunpack.c.h.b16 %v352
    %v1248 = vunpack.c.l.b16 %v353
    %v1249 = vunpack.c.h.b16 %v353
    %v1250 = vunpack.c.l.b16 %v354
    %v1251 = vunpack.c.h.b16 %v354
    %v1252 = vunpack.c.l.b16 %v355
    %v1253 = vunpack.c.h.b16 %v355
    %v1254 = vunpack.c.l.b16 %v356
    %v1255 = vunpack.c.h.b16 %v356
    %v1256 = vunpack.c.l.b16 %v357
    %v1257 = vunpack.c.h.b16 %v357
    %v1258 = vunpack.c.l.b16 %v358
    %v1259 = vunpack.c.h.b16 %v358
    %v1260 = vunpack.c.l.b16 %v359
    %v1261 = vunpack.c.h.b16 %v359
    %v1262 = vunpack.c.l.b16 %v360
    %v1263 = vunpack.c.h.b16 %v360
    %v1264 = vunpack.c.l.b16 %v361
    %v1265 = vunpack.c.h.b16 %v361
    %v1266 = vunpack.c.l.b16 %v362
    %v1267 = vunpack.c.h.b16 %v362
    %v1268 = vunpack.c.l.b16 %v363
    %v1269 = vunpack.c.h.b16 %v363
    %v1270 = vunpack.c.l.b16 %v364
    %v1271 = vunpack.c.h.b16 %v364
    %v1272 = vunpack.c.l.b16 %v365
    %v1273 = vunpack.c.h.b16 %v365
    %v1274 = vunpack.c.l.b16 %v366
    %v1275 = vunpack.c.h.b16 %v366
    %v1276 = vunpack.c.l.b16 %v367
    %v1277 = vunpack.c.h.b16 %v367
    %v1278 = vunpack.c.l.b16 %v368
    %v1279 = vunpack.c.h.b16 %v368
    %v1280 = vunpack.c.l.b16 %v369
    %v1281 = vunpack.c.h.b16 %v369
    %v1282 = vunpack.c.l.b16 %v370
    %v1283 = vunpack.c.h.b16 %v370
    %v1284 = vunpack.c.l.b16 %v371
    %v1285 = vunpack.c.h.b16 %v371
    %v1286 = vunpack.c.l.b16 %v372
    %v1287 = vunpack.c.h.b16 %v372
    %v1288 = vunpack.c.l.b16 %v373
    %v1289 = vunpack.c.h.b16 %v373
    %v1290 = vunpack.c.l.b16 %v374
    %v1291 = vunpack.c.h.b16 %v374
    %v1292 = vunpack.c.l.b16 %v375
    %v1293 = vunpack.c.h.b16 %v375
    %v1294 = vunpack.c.l.b16 %v376
    %v1295 = vunpack.c.h.b16 %v376
    %v1296 = vunpack.c.l.b16 %v377
    %v1297 = vunpack.c.h.b16 %v377
    %v1298 = vunpack.c.l.b16 %v378
    %v1299 = vunpack.c.h.b16 %v378
    %v1300 = vunpack.c.l.b16 %v379
    %v1301 = vunpack.c.h.b16 %v379
    %v1302 = vunpack.c.l.b16 %v380
    %v1303 = vunpack.c.h.b16 %v380
    %v1304 = vunpack.c.l.b16 %v381
    %v1305 = vunpack.c.h.b16 %v381
    %v1306 = vunpack.c.l.b16 %v382
    %v1307 = vunpack.c.h.b16 %v382
    %v1308 = vunpack.c.l.b16 %v383
    %v1309 = vunpack.c.h.b16 %v383
    %v1310 = vunpack.c.l.b16 %v384
    %v1311 = vunpack.c.h.b16 %v384
    %v1312 = vunpack.c.l.b16 %v385
    %v1313 = vunpack.c.h.b16 %v385
    %v1314 = vpack.c.b16 %v750, %v738
    %v1315 = vpack.c.b16 %v751, %v739
    %v1316 = vpack.c.b16 %v752, %v740
    %v1317 = vpack.c.b16 %v753, %v741
    %v1318 = vpack.c.b16 %v754, %v742
    %v1319 = vpack.c.b16 %v755, %v743
    %v1320 = vpack.c.b16 %v756, %v744
    %v1321 = vpack.c.b16 %v757, %v745
    %v1322 = vpack.c.b16 %v758, %v746
    %v1323 = vpack.c.b16 %v759, %v747
    %v1324 = vpack.c.b16 %v760, %v748
    %v1325 = vpack.c.b16 %v761, %v749
    %v1326 = vpack.c.b16 %v774, %v762
    %v1327 = vpack.c.b16 %v775, %v763
    %v1328 = vpack.c.b16 %v776, %v764
    %v1329 = vpack.c.b16 %v777, %v765
    %v1330 = vpack.c.b16 %v778, %v766
    %v1331 = vpack.c.b16 %v779, %v767
    %v1332 = vpack.c.b16 %v780, %v768
    %v1333 = vpack.c.b16 %v781, %v769
    %v1334 = vpack.c.b16 %v782, %v770
    %v1335 = vpack.c.b16 %v783, %v771
    %v1336 = vpack.c.b16 %v784, %v772
    %v1337 = vpack.c.b16 %v785, %v773
    %v1338 = vpack.c.b16 %v798, %v786
    %v1339 = vpack.c.b16 %v799, %v787
    %v1340 = vpack.c.b16 %v800, %v788
    %v1341 = vpack.c.b16 %v801, %v789
    %v1342 = vpack.c.b16 %v802, %v790
    %v1343 = vpack.c.b16 %v803, %v791
    %v1344 = vpack.c.b16 %v804, %v792
    %v1345 = vpack.c.b16 %v805, %v793
    %v1346 = vpack.c.b16 %v806, %v794
    %v1347 = vpack.c.b16 %v807, %v795
    %v1348 = vpack.c.b16 %v808, %v796
    %v1349 = vpack.c.b16 %v809, %v797
    %v1350 = vpack.c.b16 %v822, %v810
    %v1351 = vpack.c.b16 %v823, %v811
    %v1352 = vpack.c.b16 %v824, %v812
    %v1353 = vpack.c.b16 %v825, %v813
    %v1354 = vpack.c.b16 %v826, %v814
    %v1355 = vpack.c.b16 %v827, %v815
    %v1356 = vpack.c.b16 %v828, %v816
    %v1357 = vpack.c.b16 %v829, %v817
    %v1358 = vpack.c.b16 %v830, %v818
    %v1359 = vpack.c.b16 %v831, %v819
    %v1360 = vpack.c.b16 %v832, %v820
    %v1361 = vpack.c.b16 %v833, %v821
    %v1362 = vpack.c.b16 %v846, %v834
    %v1363 = vpack.c.b16 %v847, %v835
    %v1364 = vpack.c.b16 %v848, %v836
    %v1365 = vpack.c.b16 %v849, %v837
    %v1366 = vpack.c.b16 %v850, %v838
    %v1367 = vpack.c.b16 %v851, %v839
    %v1368 = vpack.c.b16 %v852, %v840
    %v1369 = vpack.c.b16 %v853, %v841
    %v1370 = vpack.c.b16 %v854, %v842
    %v1371 = vpack.c.b16 %v855, %v843
    %v1372 = vpack.c.b16 %v856, %v844
    %v1373 = vpack.c.b16 %v857, %v845
    %v1374 = vpack.c.b16 %v870, %v858
    %v1375 = vpack.c.b16 %v871, %v859
    %v1376 = vpack.c.b16 %v872, %v860
    %v1377 = vpack.c.b16 %v873, %v861
    %v1378 = vpack.c.b16 %v874, %v862
    %v1379 = vpack.c.b16 %v875, %v863
    %v1380 = vpack.c.b16 %v876, %v864
    %v1381 = vpack.c.b16 %v877, %v865
    %v1382 = vpack.c.b16 %v878, %v866
    %v1383 = vpack.c.b16 %v879, %v867
    %v1384 = vpack.c.b16 %v880, %v868
    %v1385 = vpack.c.b16 %v881, %v869
    %v1386 = vpack.c.b16 %v894, %v882
    %v1387 = vpack.c.b16 %v895, %v883
    %v1388 = vpack.c.b16 %v896, %v884
    %v1389 = vpack.c.b16 %v897, %v885
    %v1390 = vpack.c.b16 %v898, %v886
    %v1391 = vpack.c.b16 %v899, %v887
    %v1392 = vpack.c.b16 %v900, %v888
    %v1393 = vpack.c.b16 %v901, %v889
    %v1394 = vpack.c.b16 %v902, %v890
    %v1395 = vpack.c.b16 %v903, %v891
    %v1396 = vpack.c.b16 %v904, %v892
    %v1397 = vpack.c.b16 %v905, %v893
    %v1398 = vpack.c.b16 %v918, %v906
    %v1399 = vpack.c.b16 %v919, %v907
    %v1400 = vpack.c.b16 %v920, %v908
    %v1401 = vpack.c.b16 %v921, %v909
    %v1402 = vpack.c.b16 %v922, %v910
    %v1403 = vpack.c.b16 %v923, %v911
    %v1404 = vpack.c.b16 %v924, %v912
    %v1405 = vpack.c.b16 %v925, %v913
    %v1406 = vpack.c.b16 %v926, %v914
    %v1407 = vpack.c.b16 %v927, %v915
    %v1408 = vpack.c.b16 %v928, %v916
    %v1409 = vpack.c.b16 %v929, %v917
    %v1410 = vpack.c.b16 %v942, %v930
    %v1411 = vpack.c.b16 %v943, %v931
    %v1412 = vpack.c.b16 %v944, %v932
    %v1413 = vpack.c.b16 %v945, %v933
    %v1414 = vpack.c.b16 %v946, %v934
    %v1415 = vpack.c.b16 %v947, %v935
    %v1416 = vpack.c.b16 %v948, %v936
    %v1417 = vpack.c.b16 %v949, %v937
    %v1418 = vpack.c.b16 %v950, %v938
    %v1419 = vpack.c.b16 %v951, %v939
    %v1420 = vpack.c.b16 %v952, %v940
    %v1421 = vpack.c.b16 %v953, %v941
    %v1422 = vpack.c.b16 %v966, %v954
    %v1423 = vpack.c.b16 %v967, %v955
    %v1424 = vpack.c.b16 %v968, %v956
    %v1425 = vpack.c.b16 %v969, %v957
    %v1426 = vpack.c.b16 %v970, %v958
    %v1427 = vpack.c.b16 %v971, %v959
    %v1428 = vpack.c.b16 %v972, %v960
    %v1429 = vpack.c.b16 %v973, %v961
    %v1430 = vpack.c.b16 %v974, %v962
    %v1431 = vpack.c.b16 %v975, %v963
    %v1432 = vpack.c.b16 %v976, %v964
    %v1433 = vpack.c.b16 %v977, %v965
    %v1434 = vpack.c.b16 %v990, %v978
    %v1435 = vpack.c.b16 %v991, %v979
    %v1436 = vpack.c.b16 %v992, %v980
    %v1437 = vpack.c.b16 %v993, %v981
    %v1438 = vpack.c.b16 %v994, %v982
    %v1439 = vpack.c.b16 %v995, %v983
    %v1440 = vpack.c.b16 %v996, %v984
    %v1441 = vpack.c.b16 %v997, %v985
    %v1442 = vpack.c.b16 %v998, %v986
    %v1443 = vpack.c.b16 %v999, %v987
    %v1444 = vpack.c.b16 %v1000, %v988
    %v1445 = vpack.c.b16 %v1001, %v989
    %v1446 = vpack.c.b16 %v1014, %v1002
    %v1447 = vpack.c.b16 %v1015, %v1003
    %v1448 = vpack.c.b16 %v1016, %v1004
    %v1449 = vpack.c.b16 %v1017, %v1005
    %v1450 = vpack.c.b16 %v1018, %v1006
    %v1451 = vpack.c.b16 %v1019, %v1007
    %v1452 = vpack.c.b16 %v1020, %v1008
    %v1453 = vpack.c.b16 %v1021, %v1009
    %v1454 = vpack.c.b16 %v1022, %v1010
    %v1455 = vpack.c.b16 %v1023, %v1011
    %v1456 = vpack.c.b16 %v1024, %v1012
    %v1457 = vpack.c.b16 %v1025, %v1013
    %v1458 = vpack.c.b16 %v1038, %v1026
    %v1459 = vpack.c.b16 %v1039, %v1027
    %v1460 = vpack.c.b16 %v1040, %v1028
    %v1461 = vpack.c.b16 %v1041, %v1029
    %v1462 = vpack.c.b16 %v1042, %v1030
    %v1463 = vpack.c.b16 %v1043, %v1031
    %v1464 = vpack.c.b16 %v1044, %v1032
    %v1465 = vpack.c.b16 %v1045, %v1033
    %v1466 = vpack.c.b16 %v1046, %v1034
    %v1467 = vpack.c.b16 %v1047, %v1035
    %v1468 = vpack.c.b16 %v1048, %v1036
    %v1469 = vpack.c.b16 %v1049, %v1037
    %v1470 = vpack.c.b16 %v1062, %v1050
    %v1471 = vpack.c.b16 %v1063, %v1051
    %v1472 = vpack.c.b16 %v1064, %v1052
    %v1473 = vpack.c.b16 %v1065, %v1053
    %v1474 = vpack.c.b16 %v1066, %v1054
    %v1475 = vpack.c.b16 %v1067, %v1055
    %v1476 = vpack.c.b16 %v1068, %v1056
    %v1477 = vpack.c.b16 %v1069, %v1057
    %v1478 = vpack.c.b16 %v1070, %v1058
    %v1479 = vpack.c.b16 %v1071, %v1059
    %v1480 = vpack.c.b16 %v1072, %v1060
    %v1481 = vpack.c.b16 %v1073, %v1061
    %v1482 = vpack.c.b16 %v1086, %v1074
    %v1483 = vpack.c.b16 %v1087, %v1075
    %v1484 = vpack.c.b16 %v1088, %v1076
    %v1485 = vpack.c.b16 %v1089, %v1077
    %v1486 = vpack.c.b16 %v1090, %v1078
    %v1487 = vpack.c.b16 %v1091, %v1079
    %v1488 = vpack.c.b16 %v1092, %v1080
    %v1489 = vpack.c.b16 %v1093, %v1081
    %v1490 = vpack.c.b16 %v1094, %v1082
    %v1491 = vpack.c.b16 %v1095, %v1083
    %v1492 = vpack.c.b16 %v1096, %v1084
    %v1493 = vpack.c.b16 %v1097, %v1085
    %v1494 = vpack.c.b16 %v1110, %v1098
    %v1495 = vpack.c.b16 %v1111, %v1099
    %v1496 = vpack.c.b16 %v1112, %v1100
    %v1497 = vpack.c.b16 %v1113, %v1101
    %v1498 = vpack.c.b16 %v1114, %v1102
    %v1499 = vpack.c.b16 %v1115, %v1103
    %v1500 = vpack.c.b16 %v1116, %v1104
    %v1501 = vpack.c.b16 %v1117, %v1105
    %v1502 = vpack.c.b16 %v1118, %v1106
    %v1503 = vpack.c.b16 %v1119, %v1107
    %v1504 = vpack.c.b16 %v1120, %v1108
    %v1505 = vpack.c.b16 %v1121, %v1109
    %v1506 = vpack.c.b16 %v1134, %v1122
    %v1507 = vpack.c.b16 %v1135, %v1123
    %v1508 = vpack.c.b16 %v1136, %v1124
    %v1509 = vpack.c.b16 %v1137, %v1125
    %v1510 = vpack.c.b16 %v1138, %v1126
    %v1511 = vpack.c.b16 %v1139, %v1127
    %v1512 = vpack.c.b16 %v1140, %v1128
    %v1513 = vpack.c.b16 %v1141, %v1129
    %v1514 = vpack.c.b16 %v1142, %v1130
    %v1515 = vpack.c.b16 %v1143, %v1131
    %v1516 = vpack.c.b16 %v1144, %v1132
    %v1517 = vpack.c.b16 %v1145, %v1133
    %v1518 = vpack.c.b16 %v1158, %v1146
    %v1519 = vpack.c.b16 %v1159, %v1147
    %v1520 = vpack.c.b16 %v1160, %v1148
    %v1521 = vpack.c.b16 %v1161, %v1149
    %v1522 = vpack.c.b16 %v1162, %v1150
    %v1523 = vpack.c.b16 %v1163, %v1151
    %v1524 = vpack.c.b16 %v1164, %v1152
    %v1525 = vpack.c.b16 %v1165, %v1153
    %v1526 = vpack.c.b16 %v1166, %v1154
    %v1527 = vpack.c.b16 %v1167, %v1155
    %v1528 = vpack.c.b16 %v1168, %v1156
    %v1529 = vpack.c.b16 %v1169, %v1157
    %v1530 = vpack.c.b16 %v1182, %v1170
    %v1531 = vpack.c.b16 %v1183, %v1171
    %v1532 = vpack.c.b16 %v1184, %v1172
    %v1533 = vpack.c.b16 %v1185, %v1173
    %v1534 = vpack.c.b16 %v1186, %v1174
    %v1535 = vpack.c.b16 %v1187, %v1175
    %v1536 = vpack.c.b16 %v1188, %v1176
    %v1537 = vpack.c.b16 %v1189, %v1177
    %v1538 = vpack.c.b16 %v1190, %v1178
    %v1539 = vpack.c.b16 %v1191, %v1179
    %v1540 = vpack.c.b16 %v1192, %v1180
    %v1541 = vpack.c.b16 %v1193, %v1181
    %v1542 = vpack.c.b16 %v1206, %v1194
    %v1543 = vpack.c.b16 %v1207, %v1195
    %v1544 = vpack.c.b16 %v1208, %v1196
    %v1545 = vpack.c.b16 %v1209, %v1197
    %v1546 = vpack.c.b16 %v1210, %v1198
    %v1547 = vpack.c.b16 %v1211, %v1199
    %v1548 = vpack.c.b16 %v1212, %v1200
    %v1549 = vpack.c.b16 %v1213, %v1201
    %v1550 = vpack.c.b16 %v1214, %v1202
    %v1551 = vpack.c.b16 %v1215, %v1203
    %v1552 = vpack.c.b16 %v1216, %v1204
    %v1553 = vpack.c.b16 %v1217, %v1205
    %v1554 = vpack.c.b16 %v1230, %v1218
    %v1555 = vpack.c.b16 %v1231, %v1219
    %v1556 = vpack.c.b16 %v1232, %v1220
    %v1557 = vpack.c.b16 %v1233, %v1221
    %v1558 = vpack.c.b16 %v1234, %v1222
    %v1559 = vpack.c.b16 %v1235, %v1223
    %v1560 = vpack.c.b16 %v1236, %v1224
    %v1561 = vpack.c.b16 %v1237, %v1225
    %v1562 = vpack.c.b16 %v1238, %v1226
    %v1563 = vpack.c.b16 %v1239, %v1227
    %v1564 = vpack.c.b16 %v1240, %v1228
    %v1565 = vpack.c.b16 %v1241, %v1229
    %v1566 = vpack.c.b16 %v1254, %v1242
    %v1567 = vpack.c.b16 %v1255, %v1243
    %v1568 = vpack.c.b16 %v1256, %v1244
    %v1569 = vpack.c.b16 %v1257, %v1245
    %v1570 = vpack.c.b16 %v1258, %v1246
    %v1571 = vpack.c.b16 %v1259, %v1247
    %v1572 = vpack.c.b16 %v1260, %v1248
    %v1573 = vpack.c.b16 %v1261, %v1249
    %v1574 = vpack.c.b16 %v1262, %v1250
    %v1575 = vpack.c.b16 %v1263, %v1251
    %v1576 = vpack.c.b16 %v1264, %v1252
    %v1577 = vpack.c.b16 %v1265, %v1253
    %v1578 = vpack.c.b16 %v1278, %v1266
    %v1579 = vpack.c.b16 %v1279, %v1267
    %v1580 = vpack.c.b16 %v1280, %v1268
    %v1581 = vpack.c.b16 %v1281, %v1269
    %v1582 = vpack.c.b16 %v1282, %v1270
    %v1583 = vpack.c.b16 %v1283, %v1271
    %v1584 = vpack.c.b16 %v1284, %v1272
    %v1585 = vpack.c.b16 %v1285, %v1273
    %v1586 = vpack.c.b16 %v1286, %v1274
    %v1587 = vpack.c.b16 %v1287, %v1275
    %v1588 = vpack.c.b16 %v1288, %v1276
    %v1589 = vpack.c.b16 %v1289, %v1277
    %v1590 = vpack.c.b16 %v1302, %v1290
    %v1591 = vpack.c.b16 %v1303, %v1291
    %v1592 = vpack.c.b16 %v1304, %v1292
    %v1593 = vpack.c.b16 %v1305, %v1293
    %v1594 = vpack.c.b16 %v1306, %v1294
    %v1595 = vpack.c.b16 %v1307, %v1295
    %v1596 = vpack.c.b16 %v1308, %v1296
    %v1597 = vpack.c.b16 %v1309, %v1297
    %v1598 = vpack.c.b16 %v1310, %v1298
    %v1599 = vpack.c.b16 %v1311, %v1299
    %v1600 = vpack.c.b16 %v1312, %v1300
    %v1601 = vpack.c.b16 %v1313, %v1301
    %1890 = vmatprep.subr.bf16.mxu0 %v1399
    %1891 = vmatpush1.bf16.msra.mxu0 %v1398
    %1892 = vmatprep.subr.bf16.mxu0 %v1387
    %1893 = vmatpush1.bf16.msra.mxu0 %v1386
    %1894 = vmatprep.subr.bf16.mxu0 %v1375
    %1895 = vmatpush1.bf16.msra.mxu0 %v1374
    %1896 = vmatprep.subr.bf16.mxu0 %v1363
    %1897 = vmatpush1.bf16.msra.mxu0 %v1362
    %1898 = vmatprep.subr.bf16.mxu0 %v1351
    %1899 = vmatpush1.bf16.msra.mxu0 %v1350
    %1900 = vmatprep.subr.bf16.mxu0 %v1339
    %1901 = vmatpush1.bf16.msra.mxu0 %v1338
    %1902 = vmatprep.subr.bf16.mxu0 %v1327
    %1903 = vmatpush1.bf16.msra.mxu0 %v1326
    %1904 = vmatprep.subr.bf16.mxu0 %v1315
    %1905 = vmatpush1.bf16.msra.mxu0 %v1314
    %1906 = vmatprep.subr.bf16.mxu0 %v1495
    %1907 = vmatpush2.bf16.msra.mxu0 %v1494
    %1908 = vmatprep.subr.bf16.mxu0 %v1483
    %1909 = vmatpush2.bf16.msra.mxu0 %v1482
    %1910 = vmatprep.subr.bf16.mxu0 %v1471
    %1911 = vmatpush2.bf16.msra.mxu0 %v1470
    %1912 = vmatprep.subr.bf16.mxu0 %v1459
    %1913 = vmatpush2.bf16.msra.mxu0 %v1458
    %1914 = vmatprep.subr.bf16.mxu0 %v1447
    %1915 = vmatpush2.bf16.msra.mxu0 %v1446
    %1916 = vmatprep.subr.bf16.mxu0 %v1435
    %1917 = vmatpush2.bf16.msra.mxu0 %v1434
    %1918 = vmatprep.subr.bf16.mxu0 %v1423
    %1919 = vmatpush2.bf16.msra.mxu0 %v1422
    %1920 = vmatprep.subr.bf16.mxu0 %v1411
    %1921 = vmatpush2.bf16.msra.mxu0 %v1410
    %1922 = vmatprep.mubr.bf16.mxu0 %v96
    %1923 = vmatmul.mubr.bf16.gmra.mxu0 %v95
    %v1924 = vpop.f32.mrf.mxu0
    %v1925 = vadd.f32 %v393, %v1924
    %v1926 = vpop.f32.mrf.mxu0
    %v1927 = vadd.f32 %v397, %v1926
    %v1928 = vpop.f32.mrf.mxu0
    %v1929 = vadd.f32 %v393, %v1928
    %v1930 = vpop.f32.mrf.mxu0
    %v1931 = vadd.f32 %v397, %v1930
    %1932 = vdwg.mxu0
    %1933 = vmatprep.subr.bf16.mxu0 %v1591
    %1934 = vmatpush1.bf16.msra.mxu0 %v1590
    %1935 = vmatprep.subr.bf16.mxu0 %v1579
    %1936 = vmatpush1.bf16.msra.mxu0 %v1578
    %1937 = vmatprep.subr.bf16.mxu0 %v1567
    %1938 = vmatpush1.bf16.msra.mxu0 %v1566
    %1939 = vmatprep.subr.bf16.mxu0 %v1555
    %1940 = vmatpush1.bf16.msra.mxu0 %v1554
    %1941 = vmatprep.subr.bf16.mxu0 %v1543
    %1942 = vmatpush1.bf16.msra.mxu0 %v1542
    %1943 = vmatprep.subr.bf16.mxu0 %v1531
    %1944 = vmatpush1.bf16.msra.mxu0 %v1530
    %1945 = vmatprep.subr.bf16.mxu0 %v1519
    %1946 = vmatpush1.bf16.msra.mxu0 %v1518
    %1947 = vmatprep.subr.bf16.mxu0 %v1507
    %1948 = vmatpush1.bf16.msra.mxu0 %v1506
    %1949 = vmatprep.subr.bf16.mxu0 0
    %1950 = vmatpush2.bf16.msra.mxu0 0
    %1951 = vmatprep.subr.bf16.mxu0 0
    %1952 = vmatpush2.bf16.msra.mxu0 0
    %1953 = vmatprep.subr.bf16.mxu0 0
    %1954 = vmatpush2.bf16.msra.mxu0 0
    %1955 = vmatprep.subr.bf16.mxu0 0
    %1956 = vmatpush2.bf16.msra.mxu0 0
    %1957 = vmatprep.subr.bf16.mxu0 0
    %1958 = vmatpush2.bf16.msra.mxu0 0
    %1959 = vmatprep.subr.bf16.mxu0 0
    %1960 = vmatpush2.bf16.msra.mxu0 0
    %1961 = vmatprep.subr.bf16.mxu0 0
    %1962 = vmatpush2.bf16.msra.mxu0 0
    %1963 = vmatprep.subr.bf16.mxu0 0
    %1964 = vmatpush2.bf16.msra.mxu0 0
    %1965 = vmatprep.mubr.bf16.mxu0 0
    %1966 = vmatmul.mubr.bf16.gmra.mxu0 %v97
    %v1967 = vpop.f32.mrf.mxu0
    %v1968 = vadd.f32 %v1925, %v1967
    %v1969 = vpop.f32.mrf.mxu0
    %v1970 = vadd.f32 %v1927, %v1969
    %v1971 = vpop.f32.mrf.mxu0
    %v1972 = vadd.f32 %v1929, %v1971
    %v1973 = vpop.f32.mrf.mxu0
    %v1974 = vadd.f32 %v1931, %v1973
    %1975 = vdwg.mxu0
    %1976 = vmatprep.subr.bf16.mxu0 %v1401
    %1977 = vmatpush1.bf16.msra.mxu0 %v1400
    %1978 = vmatprep.subr.bf16.mxu0 %v1389
    %1979 = vmatpush1.bf16.msra.mxu0 %v1388
    %1980 = vmatprep.subr.bf16.mxu0 %v1377
    %1981 = vmatpush1.bf16.msra.mxu0 %v1376
    %1982 = vmatprep.subr.bf16.mxu0 %v1365
    %1983 = vmatpush1.bf16.msra.mxu0 %v1364
    %1984 = vmatprep.subr.bf16.mxu0 %v1353
    %1985 = vmatpush1.bf16.msra.mxu0 %v1352
    %1986 = vmatprep.subr.bf16.mxu0 %v1341
    %1987 = vmatpush1.bf16.msra.mxu0 %v1340
    %1988 = vmatprep.subr.bf16.mxu0 %v1329
    %1989 = vmatpush1.bf16.msra.mxu0 %v1328
    %1990 = vmatprep.subr.bf16.mxu0 %v1317
    %1991 = vmatpush1.bf16.msra.mxu0 %v1316
    %1992 = vmatprep.subr.bf16.mxu0 %v1497
    %1993 = vmatpush2.bf16.msra.mxu0 %v1496
    %1994 = vmatprep.subr.bf16.mxu0 %v1485
    %1995 = vmatpush2.bf16.msra.mxu0 %v1484
    %1996 = vmatprep.subr.bf16.mxu0 %v1473
    %1997 = vmatpush2.bf16.msra.mxu0 %v1472
    %1998 = vmatprep.subr.bf16.mxu0 %v1461
    %1999 = vmatpush2.bf16.msra.mxu0 %v1460
    %2000 = vmatprep.subr.bf16.mxu0 %v1449
    %2001 = vmatpush2.bf16.msra.mxu0 %v1448
    %2002 = vmatprep.subr.bf16.mxu0 %v1437
    %2003 = vmatpush2.bf16.msra.mxu0 %v1436
    %2004 = vmatprep.subr.bf16.mxu0 %v1425
    %2005 = vmatpush2.bf16.msra.mxu0 %v1424
    %2006 = vmatprep.subr.bf16.mxu0 %v1413
    %2007 = vmatpush2.bf16.msra.mxu0 %v1412
    %2008 = vmatprep.mubr.bf16.mxu0 %v96
    %2009 = vmatmul.mubr.bf16.gmra.mxu0 %v95
    %v2010 = vpop.f32.mrf.mxu0
    %v2011 = vadd.f32 %v401, %v2010
    %v2012 = vpop.f32.mrf.mxu0
    %v2013 = vadd.f32 %v405, %v2012
    %v2014 = vpop.f32.mrf.mxu0
    %v2015 = vadd.f32 %v401, %v2014
    %v2016 = vpop.f32.mrf.mxu0
    %v2017 = vadd.f32 %v405, %v2016
    %2018 = vdwg.mxu0
    %2019 = vmatprep.subr.bf16.mxu0 %v1593
    %2020 = vmatpush1.bf16.msra.mxu0 %v1592
    %2021 = vmatprep.subr.bf16.mxu0 %v1581
    %2022 = vmatpush1.bf16.msra.mxu0 %v1580
    %2023 = vmatprep.subr.bf16.mxu0 %v1569
    %2024 = vmatpush1.bf16.msra.mxu0 %v1568
    %2025 = vmatprep.subr.bf16.mxu0 %v1557
    %2026 = vmatpush1.bf16.msra.mxu0 %v1556
    %2027 = vmatprep.subr.bf16.mxu0 %v1545
    %2028 = vmatpush1.bf16.msra.mxu0 %v1544
    %2029 = vmatprep.subr.bf16.mxu0 %v1533
    %2030 = vmatpush1.bf16.msra.mxu0 %v1532
    %2031 = vmatprep.subr.bf16.mxu0 %v1521
    %2032 = vmatpush1.bf16.msra.mxu0 %v1520
    %2033 = vmatprep.subr.bf16.mxu0 %v1509
    %2034 = vmatpush1.bf16.msra.mxu0 %v1508
    %2035 = vmatprep.subr.bf16.mxu0 0
    %2036 = vmatpush2.bf16.msra.mxu0 0
    %2037 = vmatprep.subr.bf16.mxu0 0
    %2038 = vmatpush2.bf16.msra.mxu0 0
    %2039 = vmatprep.subr.bf16.mxu0 0
    %2040 = vmatpush2.bf16.msra.mxu0 0
    %2041 = vmatprep.subr.bf16.mxu0 0
    %2042 = vmatpush2.bf16.msra.mxu0 0
    %2043 = vmatprep.subr.bf16.mxu0 0
    %2044 = vmatpush2.bf16.msra.mxu0 0
    %2045 = vmatprep.subr.bf16.mxu0 0
    %2046 = vmatpush2.bf16.msra.mxu0 0
    %2047 = vmatprep.subr.bf16.mxu0 0
    %2048 = vmatpush2.bf16.msra.mxu0 0
    %2049 = vmatprep.subr.bf16.mxu0 0
    %2050 = vmatpush2.bf16.msra.mxu0 0
    %2051 = vmatprep.mubr.bf16.mxu0 0
    %2052 = vmatmul.mubr.bf16.gmra.mxu0 %v97
    %v2053 = vpop.f32.mrf.mxu0
    %v2054 = vadd.f32 %v2011, %v2053
    %v2055 = vpop.f32.mrf.mxu0
    %v2056 = vadd.f32 %v2013, %v2055
    %v2057 = vpop.f32.mrf.mxu0
    %v2058 = vadd.f32 %v2015, %v2057
    %v2059 = vpop.f32.mrf.mxu0
    %v2060 = vadd.f32 %v2017, %v2059
    %2061 = vdwg.mxu0
    %2062 = vmatprep.subr.bf16.mxu0 %v1403
    %2063 = vmatpush1.bf16.msra.mxu0 %v1402
    %2064 = vmatprep.subr.bf16.mxu0 %v1391
    %2065 = vmatpush1.bf16.msra.mxu0 %v1390
    %2066 = vmatprep.subr.bf16.mxu0 %v1379
    %2067 = vmatpush1.bf16.msra.mxu0 %v1378
    %2068 = vmatprep.subr.bf16.mxu0 %v1367
    %2069 = vmatpush1.bf16.msra.mxu0 %v1366
    %2070 = vmatprep.subr.bf16.mxu0 %v1355
    %2071 = vmatpush1.bf16.msra.mxu0 %v1354
    %2072 = vmatprep.subr.bf16.mxu0 %v1343
    %2073 = vmatpush1.bf16.msra.mxu0 %v1342
    %2074 = vmatprep.subr.bf16.mxu0 %v1331
    %2075 = vmatpush1.bf16.msra.mxu0 %v1330
    %2076 = vmatprep.subr.bf16.mxu0 %v1319
    %2077 = vmatpush1.bf16.msra.mxu0 %v1318
    %2078 = vmatprep.subr.bf16.mxu0 %v1499
    %2079 = vmatpush2.bf16.msra.mxu0 %v1498
    %2080 = vmatprep.subr.bf16.mxu0 %v1487
    %2081 = vmatpush2.bf16.msra.mxu0 %v1486
    %2082 = vmatprep.subr.bf16.mxu0 %v1475
    %2083 = vmatpush2.bf16.msra.mxu0 %v1474
    %2084 = vmatprep.subr.bf16.mxu0 %v1463
    %2085 = vmatpush2.bf16.msra.mxu0 %v1462
    %2086 = vmatprep.subr.bf16.mxu0 %v1451
    %2087 = vmatpush2.bf16.msra.mxu0 %v1450
    %2088 = vmatprep.subr.bf16.mxu0 %v1439
    %2089 = vmatpush2.bf16.msra.mxu0 %v1438
    %2090 = vmatprep.subr.bf16.mxu0 %v1427
    %2091 = vmatpush2.bf16.msra.mxu0 %v1426
    %2092 = vmatprep.subr.bf16.mxu0 %v1415
    %2093 = vmatpush2.bf16.msra.mxu0 %v1414
    %2094 = vmatprep.mubr.bf16.mxu0 %v96
    %2095 = vmatmul.mubr.bf16.gmra.mxu0 %v95
    %v2096 = vpop.f32.mrf.mxu0
    %v2097 = vadd.f32 %v409, %v2096
    %v2098 = vpop.f32.mrf.mxu0
    %v2099 = vadd.f32 %v413, %v2098
    %v2100 = vpop.f32.mrf.mxu0
    %v2101 = vadd.f32 %v409, %v2100
    %v2102 = vpop.f32.mrf.mxu0
    %v2103 = vadd.f32 %v413, %v2102
    %2104 = vdwg.mxu0
    %2105 = vmatprep.subr.bf16.mxu0 %v1595
    %2106 = vmatpush1.bf16.msra.mxu0 %v1594
    %2107 = vmatprep.subr.bf16.mxu0 %v1583
    %2108 = vmatpush1.bf16.msra.mxu0 %v1582
    %2109 = vmatprep.subr.bf16.mxu0 %v1571
    %2110 = vmatpush1.bf16.msra.mxu0 %v1570
    %2111 = vmatprep.subr.bf16.mxu0 %v1559
    %2112 = vmatpush1.bf16.msra.mxu0 %v1558
    %2113 = vmatprep.subr.bf16.mxu0 %v1547
    %2114 = vmatpush1.bf16.msra.mxu0 %v1546
    %2115 = vmatprep.subr.bf16.mxu0 %v1535
    %2116 = vmatpush1.bf16.msra.mxu0 %v1534
    %2117 = vmatprep.subr.bf16.mxu0 %v1523
    %2118 = vmatpush1.bf16.msra.mxu0 %v1522
    %2119 = vmatprep.subr.bf16.mxu0 %v1511
    %2120 = vmatpush1.bf16.msra.mxu0 %v1510
    %2121 = vmatprep.subr.bf16.mxu0 0
    %2122 = vmatpush2.bf16.msra.mxu0 0
    %2123 = vmatprep.subr.bf16.mxu0 0
    %2124 = vmatpush2.bf16.msra.mxu0 0
    %2125 = vmatprep.subr.bf16.mxu0 0
    %2126 = vmatpush2.bf16.msra.mxu0 0
    %2127 = vmatprep.subr.bf16.mxu0 0
    %2128 = vmatpush2.bf16.msra.mxu0 0
    %2129 = vmatprep.subr.bf16.mxu0 0
    %2130 = vmatpush2.bf16.msra.mxu0 0
    %2131 = vmatprep.subr.bf16.mxu0 0
    %2132 = vmatpush2.bf16.msra.mxu0 0
    %2133 = vmatprep.subr.bf16.mxu0 0
    %2134 = vmatpush2.bf16.msra.mxu0 0
    %2135 = vmatprep.subr.bf16.mxu0 0
    %2136 = vmatpush2.bf16.msra.mxu0 0
    %2137 = vmatprep.mubr.bf16.mxu0 0
    %2138 = vmatmul.mubr.bf16.gmra.mxu0 %v97
    %v2139 = vpop.f32.mrf.mxu0
    %v2140 = vadd.f32 %v2097, %v2139
    %v2141 = vpop.f32.mrf.mxu0
    %v2142 = vadd.f32 %v2099, %v2141
    %v2143 = vpop.f32.mrf.mxu0
    %v2144 = vadd.f32 %v2101, %v2143
    %v2145 = vpop.f32.mrf.mxu0
    %v2146 = vadd.f32 %v2103, %v2145
    %2147 = vdwg.mxu0
    %2148 = vmatprep.subr.bf16.mxu0 %v1405
    %2149 = vmatpush1.bf16.msra.mxu0 %v1404
    %2150 = vmatprep.subr.bf16.mxu0 %v1393
    %2151 = vmatpush1.bf16.msra.mxu0 %v1392
    %2152 = vmatprep.subr.bf16.mxu0 %v1381
    %2153 = vmatpush1.bf16.msra.mxu0 %v1380
    %2154 = vmatprep.subr.bf16.mxu0 %v1369
    %2155 = vmatpush1.bf16.msra.mxu0 %v1368
    %2156 = vmatprep.subr.bf16.mxu0 %v1357
    %2157 = vmatpush1.bf16.msra.mxu0 %v1356
    %2158 = vmatprep.subr.bf16.mxu0 %v1345
    %2159 = vmatpush1.bf16.msra.mxu0 %v1344
    %2160 = vmatprep.subr.bf16.mxu0 %v1333
    %2161 = vmatpush1.bf16.msra.mxu0 %v1332
    %2162 = vmatprep.subr.bf16.mxu0 %v1321
    %2163 = vmatpush1.bf16.msra.mxu0 %v1320
    %2164 = vmatprep.subr.bf16.mxu0 %v1501
    %2165 = vmatpush2.bf16.msra.mxu0 %v1500
    %2166 = vmatprep.subr.bf16.mxu0 %v1489
    %2167 = vmatpush2.bf16.msra.mxu0 %v1488
    %2168 = vmatprep.subr.bf16.mxu0 %v1477
    %2169 = vmatpush2.bf16.msra.mxu0 %v1476
    %2170 = vmatprep.subr.bf16.mxu0 %v1465
    %2171 = vmatpush2.bf16.msra.mxu0 %v1464
    %2172 = vmatprep.subr.bf16.mxu0 %v1453
    %2173 = vmatpush2.bf16.msra.mxu0 %v1452
    %2174 = vmatprep.subr.bf16.mxu0 %v1441
    %2175 = vmatpush2.bf16.msra.mxu0 %v1440
    %2176 = vmatprep.subr.bf16.mxu0 %v1429
    %2177 = vmatpush2.bf16.msra.mxu0 %v1428
    %2178 = vmatprep.subr.bf16.mxu0 %v1417
    %2179 = vmatpush2.bf16.msra.mxu0 %v1416
    %2180 = vmatprep.mubr.bf16.mxu0 %v96
    %2181 = vmatmul.mubr.bf16.gmra.mxu0 %v95
    %v2182 = vpop.f32.mrf.mxu0
    %v2183 = vadd.f32 %v417, %v2182
    %v2184 = vpop.f32.mrf.mxu0
    %v2185 = vadd.f32 %v421, %v2184
    %v2186 = vpop.f32.mrf.mxu0
    %v2187 = vadd.f32 %v417, %v2186
    %v2188 = vpop.f32.mrf.mxu0
    %v2189 = vadd.f32 %v421, %v2188
    %2190 = vdwg.mxu0
    %2191 = vmatprep.subr.bf16.mxu0 %v1597
    %2192 = vmatpush1.bf16.msra.mxu0 %v1596
    %2193 = vmatprep.subr.bf16.mxu0 %v1585
    %2194 = vmatpush1.bf16.msra.mxu0 %v1584
    %2195 = vmatprep.subr.bf16.mxu0 %v1573
    %2196 = vmatpush1.bf16.msra.mxu0 %v1572
    %2197 = vmatprep.subr.bf16.mxu0 %v1561
    %2198 = vmatpush1.bf16.msra.mxu0 %v1560
    %2199 = vmatprep.subr.bf16.mxu0 %v1549
    %2200 = vmatpush1.bf16.msra.mxu0 %v1548
    %2201 = vmatprep.subr.bf16.mxu0 %v1537
    %2202 = vmatpush1.bf16.msra.mxu0 %v1536
    %2203 = vmatprep.subr.bf16.mxu0 %v1525
    %2204 = vmatpush1.bf16.msra.mxu0 %v1524
    %2205 = vmatprep.subr.bf16.mxu0 %v1513
    %2206 = vmatpush1.bf16.msra.mxu0 %v1512
    %2207 = vmatprep.subr.bf16.mxu0 0
    %2208 = vmatpush2.bf16.msra.mxu0 0
    %2209 = vmatprep.subr.bf16.mxu0 0
    %2210 = vmatpush2.bf16.msra.mxu0 0
    %2211 = vmatprep.subr.bf16.mxu0 0
    %2212 = vmatpush2.bf16.msra.mxu0 0
    %2213 = vmatprep.subr.bf16.mxu0 0
    %2214 = vmatpush2.bf16.msra.mxu0 0
    %2215 = vmatprep.subr.bf16.mxu0 0
    %2216 = vmatpush2.bf16.msra.mxu0 0
    %2217 = vmatprep.subr.bf16.mxu0 0
    %2218 = vmatpush2.bf16.msra.mxu0 0
    %2219 = vmatprep.subr.bf16.mxu0 0
    %2220 = vmatpush2.bf16.msra.mxu0 0
    %2221 = vmatprep.subr.bf16.mxu0 0
    %2222 = vmatpush2.bf16.msra.mxu0 0
    %2223 = vmatprep.mubr.bf16.mxu0 0
    %2224 = vmatmul.mubr.bf16.gmra.mxu0 %v97
    %v2225 = vpop.f32.mrf.mxu0
    %v2226 = vadd.f32 %v2183, %v2225
    %v2227 = vpop.f32.mrf.mxu0
    %v2228 = vadd.f32 %v2185, %v2227
    %v2229 = vpop.f32.mrf.mxu0
    %v2230 = vadd.f32 %v2187, %v2229
    %v2231 = vpop.f32.mrf.mxu0
    %v2232 = vadd.f32 %v2189, %v2231
    %2233 = vdwg.mxu0
    %2234 = vmatprep.subr.bf16.mxu0 %v1407
    %2235 = vmatpush1.bf16.msra.mxu0 %v1406
    %2236 = vmatprep.subr.bf16.mxu0 %v1395
    %2237 = vmatpush1.bf16.msra.mxu0 %v1394
    %2238 = vmatprep.subr.bf16.mxu0 %v1383
    %2239 = vmatpush1.bf16.msra.mxu0 %v1382
    %2240 = vmatprep.subr.bf16.mxu0 %v1371
    %2241 = vmatpush1.bf16.msra.mxu0 %v1370
    %2242 = vmatprep.subr.bf16.mxu0 %v1359
    %2243 = vmatpush1.bf16.msra.mxu0 %v1358
    %2244 = vmatprep.subr.bf16.mxu0 %v1347
    %2245 = vmatpush1.bf16.msra.mxu0 %v1346
    %2246 = vmatprep.subr.bf16.mxu0 %v1335
    %2247 = vmatpush1.bf16.msra.mxu0 %v1334
    %2248 = vmatprep.subr.bf16.mxu0 %v1323
    %2249 = vmatpush1.bf16.msra.mxu0 %v1322
    %2250 = vmatprep.subr.bf16.mxu0 %v1503
    %2251 = vmatpush2.bf16.msra.mxu0 %v1502
    %2252 = vmatprep.subr.bf16.mxu0 %v1491
    %2253 = vmatpush2.bf16.msra.mxu0 %v1490
    %2254 = vmatprep.subr.bf16.mxu0 %v1479
    %2255 = vmatpush2.bf16.msra.mxu0 %v1478
    %2256 = vmatprep.subr.bf16.mxu0 %v1467
    %2257 = vmatpush2.bf16.msra.mxu0 %v1466
    %2258 = vmatprep.subr.bf16.mxu0 %v1455
    %2259 = vmatpush2.bf16.msra.mxu0 %v1454
    %2260 = vmatprep.subr.bf16.mxu0 %v1443
    %2261 = vmatpush2.bf16.msra.mxu0 %v1442
    %2262 = vmatprep.subr.bf16.mxu0 %v1431
    %2263 = vmatpush2.bf16.msra.mxu0 %v1430
    %2264 = vmatprep.subr.bf16.mxu0 %v1419
    %2265 = vmatpush2.bf16.msra.mxu0 %v1418
    %2266 = vmatprep.mubr.bf16.mxu0 %v96
    %2267 = vmatmul.mubr.bf16.gmra.mxu0 %v95
    %v2268 = vpop.f32.mrf.mxu0
    %v2269 = vadd.f32 %v425, %v2268
    %v2270 = vpop.f32.mrf.mxu0
    %v2271 = vadd.f32 %v429, %v2270
    %v2272 = vpop.f32.mrf.mxu0
    %v2273 = vadd.f32 %v425, %v2272
    %v2274 = vpop.f32.mrf.mxu0
    %v2275 = vadd.f32 %v429, %v2274
    %2276 = vdwg.mxu0
    %2277 = vmatprep.subr.bf16.mxu0 %v1599
    %2278 = vmatpush1.bf16.msra.mxu0 %v1598
    %2279 = vmatprep.subr.bf16.mxu0 %v1587
    %2280 = vmatpush1.bf16.msra.mxu0 %v1586
    %2281 = vmatprep.subr.bf16.mxu0 %v1575
    %2282 = vmatpush1.bf16.msra.mxu0 %v1574
    %2283 = vmatprep.subr.bf16.mxu0 %v1563
    %2284 = vmatpush1.bf16.msra.mxu0 %v1562
    %2285 = vmatprep.subr.bf16.mxu0 %v1551
    %2286 = vmatpush1.bf16.msra.mxu0 %v1550
    %2287 = vmatprep.subr.bf16.mxu0 %v1539
    %2288 = vmatpush1.bf16.msra.mxu0 %v1538
    %2289 = vmatprep.subr.bf16.mxu0 %v1527
    %2290 = vmatpush1.bf16.msra.mxu0 %v1526
    %2291 = vmatprep.subr.bf16.mxu0 %v1515
    %2292 = vmatpush1.bf16.msra.mxu0 %v1514
    %2293 = vmatprep.subr.bf16.mxu0 0
    %2294 = vmatpush2.bf16.msra.mxu0 0
    %2295 = vmatprep.subr.bf16.mxu0 0
    %2296 = vmatpush2.bf16.msra.mxu0 0
    %2297 = vmatprep.subr.bf16.mxu0 0
    %2298 = vmatpush2.bf16.msra.mxu0 0
    %2299 = vmatprep.subr.bf16.mxu0 0
    %2300 = vmatpush2.bf16.msra.mxu0 0
    %2301 = vmatprep.subr.bf16.mxu0 0
    %2302 = vmatpush2.bf16.msra.mxu0 0
    %2303 = vmatprep.subr.bf16.mxu0 0
    %2304 = vmatpush2.bf16.msra.mxu0 0
    %2305 = vmatprep.subr.bf16.mxu0 0
    %2306 = vmatpush2.bf16.msra.mxu0 0
    %2307 = vmatprep.subr.bf16.mxu0 0
    %2308 = vmatpush2.bf16.msra.mxu0 0
    %2309 = vmatprep.mubr.bf16.mxu0 0
    %2310 = vmatmul.mubr.bf16.gmra.mxu0 %v97
    %v2311 = vpop.f32.mrf.mxu0
    %v2312 = vadd.f32 %v2269, %v2311
    %v2313 = vpop.f32.mrf.mxu0
    %v2314 = vadd.f32 %v2271, %v2313
    %v2315 = vpop.f32.mrf.mxu0
    %v2316 = vadd.f32 %v2273, %v2315
    %v2317 = vpop.f32.mrf.mxu0
    %v2318 = vadd.f32 %v2275, %v2317
    %2319 = vdwg.mxu0
    %2320 = vmatprep.subr.bf16.mxu0 %v1409
    %2321 = vmatpush1.bf16.msra.mxu0 %v1408
    %2322 = vmatprep.subr.bf16.mxu0 %v1397
    %2323 = vmatpush1.bf16.msra.mxu0 %v1396
    %2324 = vmatprep.subr.bf16.mxu0 %v1385
    %2325 = vmatpush1.bf16.msra.mxu0 %v1384
    %2326 = vmatprep.subr.bf16.mxu0 %v1373
    %2327 = vmatpush1.bf16.msra.mxu0 %v1372
    %2328 = vmatprep.subr.bf16.mxu0 %v1361
    %2329 = vmatpush1.bf16.msra.mxu0 %v1360
    %2330 = vmatprep.subr.bf16.mxu0 %v1349
    %2331 = vmatpush1.bf16.msra.mxu0 %v1348
    %2332 = vmatprep.subr.bf16.mxu0 %v1337
    %2333 = vmatpush1.bf16.msra.mxu0 %v1336
    %2334 = vmatprep.subr.bf16.mxu0 %v1325
    %2335 = vmatpush1.bf16.msra.mxu0 %v1324
    %2336 = vmatprep.subr.bf16.mxu0 %v1505
    %2337 = vmatpush2.bf16.msra.mxu0 %v1504
    %2338 = vmatprep.subr.bf16.mxu0 %v1493
    %2339 = vmatpush2.bf16.msra.mxu0 %v1492
    %2340 = vmatprep.subr.bf16.mxu0 %v1481
    %2341 = vmatpush2.bf16.msra.mxu0 %v1480
    %2342 = vmatprep.subr.bf16.mxu0 %v1469
    %2343 = vmatpush2.bf16.msra.mxu0 %v1468
    %2344 = vmatprep.subr.bf16.mxu0 %v1457
    %2345 = vmatpush2.bf16.msra.mxu0 %v1456
    %2346 = vmatprep.subr.bf16.mxu0 %v1445
    %2347 = vmatpush2.bf16.msra.mxu0 %v1444
    %2348 = vmatprep.subr.bf16.mxu0 %v1433
    %2349 = vmatpush2.bf16.msra.mxu0 %v1432
    %2350 = vmatprep.subr.bf16.mxu0 %v1421
    %2351 = vmatpush2.bf16.msra.mxu0 %v1420
    %2352 = vmatprep.mubr.bf16.mxu0 %v96
    %2353 = vmatmul.mubr.bf16.gmra.mxu0 %v95
    %v2354 = vpop.f32.mrf.mxu0
    %v2355 = vadd.f32 %v433, %v2354
    %v2356 = vpop.f32.mrf.mxu0
    %v2357 = vadd.f32 %v437, %v2356
    %v2358 = vpop.f32.mrf.mxu0
    %v2359 = vadd.f32 %v433, %v2358
    %v2360 = vpop.f32.mrf.mxu0
    %v2361 = vadd.f32 %v437, %v2360
    %2362 = vdwg.mxu0
    %2363 = vmatprep.subr.bf16.mxu0 %v1601
    %2364 = vmatpush1.bf16.msra.mxu0 %v1600
    %2365 = vmatprep.subr.bf16.mxu0 %v1589
    %2366 = vmatpush1.bf16.msra.mxu0 %v1588
    %2367 = vmatprep.subr.bf16.mxu0 %v1577
    %2368 = vmatpush1.bf16.msra.mxu0 %v1576
    %2369 = vmatprep.subr.bf16.mxu0 %v1565
    %2370 = vmatpush1.bf16.msra.mxu0 %v1564
    %2371 = vmatprep.subr.bf16.mxu0 %v1553
    %2372 = vmatpush1.bf16.msra.mxu0 %v1552
    %2373 = vmatprep.subr.bf16.mxu0 %v1541
    %2374 = vmatpush1.bf16.msra.mxu0 %v1540
    %2375 = vmatprep.subr.bf16.mxu0 %v1529
    %2376 = vmatpush1.bf16.msra.mxu0 %v1528
    %2377 = vmatprep.subr.bf16.mxu0 %v1517
    %2378 = vmatpush1.bf16.msra.mxu0 %v1516
    %2379 = vmatprep.subr.bf16.mxu0 0
    %2380 = vmatpush2.bf16.msra.mxu0 0
    %2381 = vmatprep.subr.bf16.mxu0 0
    %2382 = vmatpush2.bf16.msra.mxu0 0
    %2383 = vmatprep.subr.bf16.mxu0 0
    %2384 = vmatpush2.bf16.msra.mxu0 0
    %2385 = vmatprep.subr.bf16.mxu0 0
    %2386 = vmatpush2.bf16.msra.mxu0 0
    %2387 = vmatprep.subr.bf16.mxu0 0
    %2388 = vmatpush2.bf16.msra.mxu0 0
    %2389 = vmatprep.subr.bf16.mxu0 0
    %2390 = vmatpush2.bf16.msra.mxu0 0
    %2391 = vmatprep.subr.bf16.mxu0 0
    %2392 = vmatpush2.bf16.msra.mxu0 0
    %2393 = vmatprep.subr.bf16.mxu0 0
    %2394 = vmatpush2.bf16.msra.mxu0 0
    %2395 = vmatprep.mubr.bf16.mxu0 0
    %2396 = vmatmul.mubr.bf16.gmra.mxu0 %v97
    %v2397 = vpop.f32.mrf.mxu0
    %v2398 = vadd.f32 %v2355, %v2397
    %v2399 = vpop.f32.mrf.mxu0
    %v2400 = vadd.f32 %v2357, %v2399
    %v2401 = vpop.f32.mrf.mxu0
    %v2402 = vadd.f32 %v2359, %v2401
    %v2403 = vpop.f32.mrf.mxu0
    %v2404 = vadd.f32 %v2361, %v2403
    %2405 = vdwg.mxu0
    %v2406 = vmax.f32 %v1968, 0.0
    %v2407 = vmax.f32 %v1970, 0.0
    %v2408 = vmax.f32 %v2054, 0.0
    %v2409 = vmax.f32 %v2056, 0.0
    %v2410 = vmax.f32 %v2140, 0.0
    %v2411 = vmax.f32 %v2142, 0.0
    %v2412 = vmax.f32 %v2226, 0.0
    %v2413 = vmax.f32 %v2228, 0.0
    %v2414 = vmax.f32 %v2312, 0.0
    %v2415 = vmax.f32 %v2314, 0.0
    %v2416 = vmax.f32 %v2398, 0.0
    %v2417 = vmax.f32 %v2400, 0.0
    %v2418 = vmax.f32 %v1972, 0.0
    %v2419 = vmax.f32 %v1974, 0.0
    %v2420 = vmax.f32 %v2058, 0.0
    %v2421 = vmax.f32 %v2060, 0.0
    %v2422 = vmax.f32 %v2144, 0.0
    %v2423 = vmax.f32 %v2146, 0.0
    %v2424 = vmax.f32 %v2230, 0.0
    %v2425 = vmax.f32 %v2232, 0.0
    %v2426 = vmax.f32 %v2316, 0.0
    %v2427 = vmax.f32 %v2318, 0.0
    %v2428 = vmax.f32 %v2402, 0.0
    %v2429 = vmax.f32 %v2404, 0.0
    %v2430 = vpack.c.bf16 %v2418, %v2406
    %v2431 = vpack.c.bf16 %v2419, %v2407
    %v2432 = vpack.c.bf16 %v2420, %v2408
    %v2433 = vpack.c.bf16 %v2421, %v2409
    %v2434 = vpack.c.bf16 %v2422, %v2410
    %v2435 = vpack.c.bf16 %v2423, %v2411
    %v2436 = vpack.c.bf16 %v2424, %v2412
    %v2437 = vpack.c.bf16 %v2425, %v2413
    %v2438 = vpack.c.bf16 %v2426, %v2414
    %v2439 = vpack.c.bf16 %v2427, %v2415
    %v2440 = vpack.c.bf16 %v2428, %v2416
    %v2441 = vpack.c.bf16 %v2429, %v2417
    %v2442 = vld [vmem:[#allocation10] sm:$0xff]
    %v2443 = vld [vmem:[#allocation10 + $0x8] sm:$0xf]
    %v2444 = vld [vmem:[#allocation10 + $0xc] sm:$0xff]
    %v2445 = vld [vmem:[#allocation10 + $0x14] sm:$0xf]
    %v2446 = vld [vmem:[#allocation10 + $0x18] sm:$0xff]
    %v2447 = vld [vmem:[#allocation10 + $0x20] sm:$0xf]
    %v2448 = vld [vmem:[#allocation10 + $0x24] sm:$0xff]
    %v2449 = vld [vmem:[#allocation10 + $0x2c] sm:$0xf]
    %v2450 = vld [vmem:[#allocation10 + $0x30] sm:$0xff]
    %v2451 = vld [vmem:[#allocation10 + $0x38] sm:$0xf]
    %v2452 = vld [vmem:[#allocation10 + $0x3c] sm:$0xff]
    %v2453 = vld [vmem:[#allocation10 + $0x44] sm:$0xf]
    %v2454 = vld [vmem:[#allocation10 + $0x48] sm:$0xff]
    %v2455 = vld [vmem:[#allocation10 + $0x50] sm:$0xf]
    %v2456 = vld [vmem:[#allocation10 + $0x54] sm:$0xff]
    %v2457 = vld [vmem:[#allocation10 + $0x5c] sm:$0xf]
    %v2458 = vld [vmem:[#allocation10 + $0x60] sm:$0xff]
    %v2459 = vld [vmem:[#allocation10 + $0x68] sm:$0xf]
    %v2460 = vld [vmem:[#allocation10 + $0x6c] sm:$0xff]
    %v2461 = vld [vmem:[#allocation10 + $0x74] sm:$0xf]
    %v2462 = vld [vmem:[#allocation10 + $0x78] sm:$0xff]
    %v2463 = vld [vmem:[#allocation10 + $0x80] sm:$0xf]
    %v2464 = vld [vmem:[#allocation10 + $0x84] sm:$0xff]
    %v2465 = vld [vmem:[#allocation10 + $0x8c] sm:$0xf]
    %v2466 = vld [vmem:[#allocation10 + $0x90] sm:$0xff]
    %v2467 = vld [vmem:[#allocation10 + $0x98] sm:$0xf]
    %v2468 = vld [vmem:[#allocation10 + $0x9c] sm:$0xff]
    %v2469 = vld [vmem:[#allocation10 + $0xa4] sm:$0xf]
    %v2470 = vld [vmem:[#allocation10 + $0xa8] sm:$0xff]
    %v2471 = vld [vmem:[#allocation10 + $0xb0] sm:$0xf]
    %v2472 = vld [vmem:[#allocation10 + $0xb4] sm:$0xff]
    %v2473 = vld [vmem:[#allocation10 + $0xbc] sm:$0xf]
    %v2474 = vld [vmem:[#allocation10 + $0xc0] sm:$0xff]
    %v2475 = vld [vmem:[#allocation10 + $0xc8] sm:$0xf]
    %v2476 = vld [vmem:[#allocation10 + $0xcc] sm:$0xff]
    %v2477 = vld [vmem:[#allocation10 + $0xd4] sm:$0xf]
    %v2478 = vld [vmem:[#allocation10 + $0xd8] sm:$0xff]
    %v2479 = vld [vmem:[#allocation10 + $0xe0] sm:$0xf]
    %v2480 = vld [vmem:[#allocation10 + $0xe4] sm:$0xff]
    %v2481 = vld [vmem:[#allocation10 + $0xec] sm:$0xf]
    %v2482 = vld [vmem:[#allocation10 + $0xf0] sm:$0xff]
    %v2483 = vld [vmem:[#allocation10 + $0xf8] sm:$0xf]
    %v2484 = vld [vmem:[#allocation10 + $0xfc] sm:$0xff]
    %v2485 = vld [vmem:[#allocation10 + $0x104] sm:$0xf]
    %v2486 = vld [vmem:[#allocation10 + $0x108] sm:$0xff]
    %v2487 = vld [vmem:[#allocation10 + $0x110] sm:$0xf]
    %v2488 = vld [vmem:[#allocation10 + $0x114] sm:$0xff]
    %v2489 = vld [vmem:[#allocation10 + $0x11c] sm:$0xf]
    %v2490 = vld [vmem:[#allocation10 + $0x120] sm:$0xff]
    %v2491 = vld [vmem:[#allocation10 + $0x128] sm:$0xf]
    %v2492 = vld [vmem:[#allocation10 + $0x12c] sm:$0xff]
    %v2493 = vld [vmem:[#allocation10 + $0x134] sm:$0xf]
    %v2494 = vld [vmem:[#allocation10 + $0x138] sm:$0xff]
    %v2495 = vld [vmem:[#allocation10 + $0x140] sm:$0xf]
    %v2496 = vld [vmem:[#allocation10 + $0x144] sm:$0xff]
    %v2497 = vld [vmem:[#allocation10 + $0x14c] sm:$0xf]
    %v2498 = vld [vmem:[#allocation10 + $0x150] sm:$0xff]
    %v2499 = vld [vmem:[#allocation10 + $0x158] sm:$0xf]
    %v2500 = vld [vmem:[#allocation10 + $0x15c] sm:$0xff]
    %v2501 = vld [vmem:[#allocation10 + $0x164] sm:$0xf]
    %v2502 = vld [vmem:[#allocation10 + $0x168] sm:$0xff]
    %v2503 = vld [vmem:[#allocation10 + $0x170] sm:$0xf]
    %v2504 = vld [vmem:[#allocation10 + $0x174] sm:$0xff]
    %v2505 = vld [vmem:[#allocation10 + $0x17c] sm:$0xf]
    %v2506 = vld [vmem:[#allocation10 + $0x180] sm:$0xff]
    %v2507 = vld [vmem:[#allocation10 + $0x188] sm:$0xf]
    %v2508 = vld [vmem:[#allocation10 + $0x18c] sm:$0xff]
    %v2509 = vld [vmem:[#allocation10 + $0x194] sm:$0xf]
    %v2510 = vld [vmem:[#allocation10 + $0x198] sm:$0xff]
    %v2511 = vld [vmem:[#allocation10 + $0x1a0] sm:$0xf]
    %v2512 = vld [vmem:[#allocation10 + $0x1a4] sm:$0xff]
    %v2513 = vld [vmem:[#allocation10 + $0x1ac] sm:$0xf]
    %v2514 = vld [vmem:[#allocation10 + $0x1b0] sm:$0xff]
    %v2515 = vld [vmem:[#allocation10 + $0x1b8] sm:$0xf]
    %v2516 = vld [vmem:[#allocation10 + $0x1bc] sm:$0xff]
    %v2517 = vld [vmem:[#allocation10 + $0x1c4] sm:$0xf]
    %v2518 = vld [vmem:[#allocation10 + $0x1c8] sm:$0xff]
    %v2519 = vld [vmem:[#allocation10 + $0x1d0] sm:$0xf]
    %v2520 = vld [vmem:[#allocation10 + $0x1d4] sm:$0xff]
    %v2521 = vld [vmem:[#allocation10 + $0x1dc] sm:$0xf]
    %v2522 = vld [vmem:[#allocation10 + $0x1e0] sm:$0xff]
    %v2523 = vld [vmem:[#allocation10 + $0x1e8] sm:$0xf]
    %v2524 = vld [vmem:[#allocation10 + $0x1ec] sm:$0xff]
    %v2525 = vld [vmem:[#allocation10 + $0x1f4] sm:$0xf]
    %v2526 = vld [vmem:[#allocation10 + $0x1f8] sm:$0xff]
    %v2527 = vld [vmem:[#allocation10 + $0x200] sm:$0xf]
    %v2528 = vld [vmem:[#allocation10 + $0x204] sm:$0xff]
    %v2529 = vld [vmem:[#allocation10 + $0x20c] sm:$0xf]
    %v2530 = vld [vmem:[#allocation10 + $0x210] sm:$0xff]
    %v2531 = vld [vmem:[#allocation10 + $0x218] sm:$0xf]
    %v2532 = vld [vmem:[#allocation10 + $0x21c] sm:$0xff]
    %v2533 = vld [vmem:[#allocation10 + $0x224] sm:$0xf]
    %v2534 = vld [vmem:[#allocation10 + $0x228] sm:$0xff]
    %v2535 = vld [vmem:[#allocation10 + $0x230] sm:$0xf]
    %v2536 = vld [vmem:[#allocation10 + $0x234] sm:$0xff]
    %v2537 = vld [vmem:[#allocation10 + $0x23c] sm:$0xf]
    %v2538 = vld [vmem:[#allocation10 + $0x240] sm:$0xff]
    %v2539 = vld [vmem:[#allocation10 + $0x248] sm:$0xf]
    %v2540 = vld [vmem:[#allocation10 + $0x24c] sm:$0xff]
    %v2541 = vld [vmem:[#allocation10 + $0x254] sm:$0xf]
    %v2542 = vld [vmem:[#allocation10 + $0x258] sm:$0xff]
    %v2543 = vld [vmem:[#allocation10 + $0x260] sm:$0xf]
    %v2544 = vld [vmem:[#allocation10 + $0x264] sm:$0xff]
    %v2545 = vld [vmem:[#allocation10 + $0x26c] sm:$0xf]
    %v2546 = vld [vmem:[#allocation10 + $0x270] sm:$0xff]
    %v2547 = vld [vmem:[#allocation10 + $0x278] sm:$0xf]
    %v2548 = vld [vmem:[#allocation10 + $0x27c] sm:$0xff]
    %v2549 = vld [vmem:[#allocation10 + $0x284] sm:$0xf]
    %v2550 = vld [vmem:[#allocation10 + $0x288] sm:$0xff]
    %v2551 = vld [vmem:[#allocation10 + $0x290] sm:$0xf]
    %v2552 = vld [vmem:[#allocation10 + $0x294] sm:$0xff]
    %v2553 = vld [vmem:[#allocation10 + $0x29c] sm:$0xf]
    %v2554 = vld [vmem:[#allocation10 + $0x2a0] sm:$0xff]
    %v2555 = vld [vmem:[#allocation10 + $0x2a8] sm:$0xf]
    %v2556 = vld [vmem:[#allocation10 + $0x2ac] sm:$0xff]
    %v2557 = vld [vmem:[#allocation10 + $0x2b4] sm:$0xf]
    %v2558 = vld [vmem:[#allocation10 + $0x2b8] sm:$0xff]
    %v2559 = vld [vmem:[#allocation10 + $0x2c0] sm:$0xf]
    %v2560 = vld [vmem:[#allocation10 + $0x2c4] sm:$0xff]
    %v2561 = vld [vmem:[#allocation10 + $0x2cc] sm:$0xf]
    %v2562 = vld [vmem:[#allocation10 + $0x2d0] sm:$0xff]
    %v2563 = vld [vmem:[#allocation10 + $0x2d8] sm:$0xf]
    %v2564 = vld [vmem:[#allocation10 + $0x2dc] sm:$0xff]
    %v2565 = vld [vmem:[#allocation10 + $0x2e4] sm:$0xf]
    %v2566 = vld [vmem:[#allocation10 + $0x2e8] sm:$0xff]
    %v2567 = vld [vmem:[#allocation10 + $0x2f0] sm:$0xf]
    %v2568 = vld [vmem:[#allocation10 + $0x2f4] sm:$0xff]
    %v2569 = vld [vmem:[#allocation10 + $0x2fc] sm:$0xf]
    %v2570 = vld [vmem:[#allocation10 + $0x300] sm:$0xff]
    %v2571 = vld [vmem:[#allocation10 + $0x308] sm:$0xf]
    %v2572 = vld [vmem:[#allocation10 + $0x30c] sm:$0xff]
    %v2573 = vld [vmem:[#allocation10 + $0x314] sm:$0xf]
    %v2574 = vld [vmem:[#allocation10 + $0x318] sm:$0xff]
    %v2575 = vld [vmem:[#allocation10 + $0x320] sm:$0xf]
    %v2576 = vld [vmem:[#allocation10 + $0x324] sm:$0xff]
    %v2577 = vld [vmem:[#allocation10 + $0x32c] sm:$0xf]
    %v2578 = vld [vmem:[#allocation10 + $0x330] sm:$0xff]
    %v2579 = vld [vmem:[#allocation10 + $0x338] sm:$0xf]
    %v2580 = vld [vmem:[#allocation10 + $0x33c] sm:$0xff]
    %v2581 = vld [vmem:[#allocation10 + $0x344] sm:$0xf]
    %v2582 = vld [vmem:[#allocation10 + $0x348] sm:$0xff]
    %v2583 = vld [vmem:[#allocation10 + $0x350] sm:$0xf]
    %v2584 = vld [vmem:[#allocation10 + $0x354] sm:$0xff]
    %v2585 = vld [vmem:[#allocation10 + $0x35c] sm:$0xf]
    %v2586 = vld [vmem:[#allocation10 + $0x360] sm:$0xff]
    %v2587 = vld [vmem:[#allocation10 + $0x368] sm:$0xf]
    %v2588 = vld [vmem:[#allocation10 + $0x36c] sm:$0xff]
    %v2589 = vld [vmem:[#allocation10 + $0x374] sm:$0xf]
    %v2590 = vld [vmem:[#allocation10 + $0x378] sm:$0xff]
    %v2591 = vld [vmem:[#allocation10 + $0x380] sm:$0xf]
    %v2592 = vld [vmem:[#allocation10 + $0x384] sm:$0xff]
    %v2593 = vld [vmem:[#allocation10 + $0x38c] sm:$0xf]
    %v2594 = vld [vmem:[#allocation10 + $0x390] sm:$0xff]
    %v2595 = vld [vmem:[#allocation10 + $0x398] sm:$0xf]
    %v2596 = vld [vmem:[#allocation10 + $0x39c] sm:$0xff]
    %v2597 = vld [vmem:[#allocation10 + $0x3a4] sm:$0xf]
    %v2598 = vld [vmem:[#allocation10 + $0x3a8] sm:$0xff]
    %v2599 = vld [vmem:[#allocation10 + $0x3b0] sm:$0xf]
    %v2600 = vld [vmem:[#allocation10 + $0x3b4] sm:$0xff]
    %v2601 = vld [vmem:[#allocation10 + $0x3bc] sm:$0xf]
    %v2602 = vld [vmem:[#allocation10 + $0x3c0] sm:$0xff]
    %v2603 = vld [vmem:[#allocation10 + $0x3c8] sm:$0xf]
    %v2604 = vld [vmem:[#allocation10 + $0x3cc] sm:$0xff]
    %v2605 = vld [vmem:[#allocation10 + $0x3d4] sm:$0xf]
    %v2606 = vld [vmem:[#allocation10 + $0x3d8] sm:$0xff]
    %v2607 = vld [vmem:[#allocation10 + $0x3e0] sm:$0xf]
    %v2608 = vld [vmem:[#allocation10 + $0x3e4] sm:$0xff]
    %v2609 = vld [vmem:[#allocation10 + $0x3ec] sm:$0xf]
    %v2610 = vld [vmem:[#allocation10 + $0x3f0] sm:$0xff]
    %v2611 = vld [vmem:[#allocation10 + $0x3f8] sm:$0xf]
    %v2612 = vld [vmem:[#allocation10 + $0x3fc] sm:$0xff]
    %v2613 = vld [vmem:[#allocation10 + $0x404] sm:$0xf]
    %v2614 = vld [vmem:[#allocation10 + $0x408] sm:$0xff]
    %v2615 = vld [vmem:[#allocation10 + $0x410] sm:$0xf]
    %v2616 = vld [vmem:[#allocation10 + $0x414] sm:$0xff]
    %v2617 = vld [vmem:[#allocation10 + $0x41c] sm:$0xf]
    %v2618 = vld [vmem:[#allocation10 + $0x420] sm:$0xff]
    %v2619 = vld [vmem:[#allocation10 + $0x428] sm:$0xf]
    %v2620 = vld [vmem:[#allocation10 + $0x42c] sm:$0xff]
    %v2621 = vld [vmem:[#allocation10 + $0x434] sm:$0xf]
    %v2622 = vld [vmem:[#allocation10 + $0x438] sm:$0xff]
    %v2623 = vld [vmem:[#allocation10 + $0x440] sm:$0xf]
    %v2624 = vld [vmem:[#allocation10 + $0x444] sm:$0xff]
    %v2625 = vld [vmem:[#allocation10 + $0x44c] sm:$0xf]
    %v2626 = vld [vmem:[#allocation10 + $0x450] sm:$0xff]
    %v2627 = vld [vmem:[#allocation10 + $0x458] sm:$0xf]
    %v2628 = vld [vmem:[#allocation10 + $0x45c] sm:$0xff]
    %v2629 = vld [vmem:[#allocation10 + $0x464] sm:$0xf]
    %v2630 = vld [vmem:[#allocation10 + $0x468] sm:$0xff]
    %v2631 = vld [vmem:[#allocation10 + $0x470] sm:$0xf]
    %v2632 = vld [vmem:[#allocation10 + $0x474] sm:$0xff]
    %v2633 = vld [vmem:[#allocation10 + $0x47c] sm:$0xf]
    %v2634 = vld [vmem:[#allocation10 + $0x480] sm:$0xff]
    %v2635 = vld [vmem:[#allocation10 + $0x488] sm:$0xf]
    %v2636 = vld [vmem:[#allocation10 + $0x48c] sm:$0xff]
    %v2637 = vld [vmem:[#allocation10 + $0x494] sm:$0xf]
    %v2638 = vld [vmem:[#allocation10 + $0x498] sm:$0xff]
    %v2639 = vld [vmem:[#allocation10 + $0x4a0] sm:$0xf]
    %v2640 = vld [vmem:[#allocation10 + $0x4a4] sm:$0xff]
    %v2641 = vld [vmem:[#allocation10 + $0x4ac] sm:$0xf]
    %v2642 = vld [vmem:[#allocation10 + $0x4b0] sm:$0xff]
    %v2643 = vld [vmem:[#allocation10 + $0x4b8] sm:$0xf]
    %v2644 = vld [vmem:[#allocation10 + $0x4bc] sm:$0xff]
    %v2645 = vld [vmem:[#allocation10 + $0x4c4] sm:$0xf]
    %v2646 = vld [vmem:[#allocation10 + $0x4c8] sm:$0xff]
    %v2647 = vld [vmem:[#allocation10 + $0x4d0] sm:$0xf]
    %v2648 = vld [vmem:[#allocation10 + $0x4d4] sm:$0xff]
    %v2649 = vld [vmem:[#allocation10 + $0x4dc] sm:$0xf]
    %v2650 = vld [vmem:[#allocation10 + $0x4e0] sm:$0xff]
    %v2651 = vld [vmem:[#allocation10 + $0x4e8] sm:$0xf]
    %v2652 = vld [vmem:[#allocation10 + $0x4ec] sm:$0xff]
    %v2653 = vld [vmem:[#allocation10 + $0x4f4] sm:$0xf]
    %v2654 = vld [vmem:[#allocation10 + $0x4f8] sm:$0xff]
    %v2655 = vld [vmem:[#allocation10 + $0x500] sm:$0xf]
    %v2656 = vld [vmem:[#allocation10 + $0x504] sm:$0xff]
    %v2657 = vld [vmem:[#allocation10 + $0x50c] sm:$0xf]
    %v2658 = vld [vmem:[#allocation10 + $0x510] sm:$0xff]
    %v2659 = vld [vmem:[#allocation10 + $0x518] sm:$0xf]
    %v2660 = vld [vmem:[#allocation10 + $0x51c] sm:$0xff]
    %v2661 = vld [vmem:[#allocation10 + $0x524] sm:$0xf]
    %v2662 = vld [vmem:[#allocation10 + $0x528] sm:$0xff]
    %v2663 = vld [vmem:[#allocation10 + $0x530] sm:$0xf]
    %v2664 = vld [vmem:[#allocation10 + $0x534] sm:$0xff]
    %v2665 = vld [vmem:[#allocation10 + $0x53c] sm:$0xf]
    %v2666 = vld [vmem:[#allocation10 + $0x540] sm:$0xff]
    %v2667 = vld [vmem:[#allocation10 + $0x548] sm:$0xf]
    %v2668 = vld [vmem:[#allocation10 + $0x54c] sm:$0xff]
    %v2669 = vld [vmem:[#allocation10 + $0x554] sm:$0xf]
    %v2670 = vld [vmem:[#allocation10 + $0x558] sm:$0xff]
    %v2671 = vld [vmem:[#allocation10 + $0x560] sm:$0xf]
    %v2672 = vld [vmem:[#allocation10 + $0x564] sm:$0xff]
    %v2673 = vld [vmem:[#allocation10 + $0x56c] sm:$0xf]
    %v2674 = vld [vmem:[#allocation10 + $0x570] sm:$0xff]
    %v2675 = vld [vmem:[#allocation10 + $0x578] sm:$0xf]
    %v2676 = vld [vmem:[#allocation10 + $0x57c] sm:$0xff]
    %v2677 = vld [vmem:[#allocation10 + $0x584] sm:$0xf]
    %v2678 = vld [vmem:[#allocation10 + $0x588] sm:$0xff]
    %v2679 = vld [vmem:[#allocation10 + $0x590] sm:$0xf]
    %v2680 = vld [vmem:[#allocation10 + $0x594] sm:$0xff]
    %v2681 = vld [vmem:[#allocation10 + $0x59c] sm:$0xf]
    %v2682 = vld [vmem:[#allocation10 + $0x5a0] sm:$0xff]
    %v2683 = vld [vmem:[#allocation10 + $0x5a8] sm:$0xf]
    %v2684 = vld [vmem:[#allocation10 + $0x5ac] sm:$0xff]
    %v2685 = vld [vmem:[#allocation10 + $0x5b4] sm:$0xf]
    %v2686 = vld [vmem:[#allocation10 + $0x5b8] sm:$0xff]
    %v2687 = vld [vmem:[#allocation10 + $0x5c0] sm:$0xf]
    %v2688 = vld [vmem:[#allocation10 + $0x5c4] sm:$0xff]
    %v2689 = vld [vmem:[#allocation10 + $0x5cc] sm:$0xf]
    %v2690 = vld [vmem:[#allocation10 + $0x5d0] sm:$0xff]
    %v2691 = vld [vmem:[#allocation10 + $0x5d8] sm:$0xf]
    %v2692 = vld [vmem:[#allocation10 + $0x5dc] sm:$0xff]
    %v2693 = vld [vmem:[#allocation10 + $0x5e4] sm:$0xf]
    %v2694 = vld [vmem:[#allocation10 + $0x5e8] sm:$0xff]
    %v2695 = vld [vmem:[#allocation10 + $0x5f0] sm:$0xf]
    %v2696 = vld [vmem:[#allocation10 + $0x5f4] sm:$0xff]
    %v2697 = vld [vmem:[#allocation10 + $0x5fc] sm:$0xf]
    %v2698 = vld [vmem:[#allocation10 + $0x600] sm:$0xff]
    %v2699 = vld [vmem:[#allocation10 + $0x608] sm:$0xf]
    %v2700 = vld [vmem:[#allocation10 + $0x60c] sm:$0xff]
    %v2701 = vld [vmem:[#allocation10 + $0x614] sm:$0xf]
    %v2702 = vld [vmem:[#allocation10 + $0x618] sm:$0xff]
    %v2703 = vld [vmem:[#allocation10 + $0x620] sm:$0xf]
    %v2704 = vld [vmem:[#allocation10 + $0x624] sm:$0xff]
    %v2705 = vld [vmem:[#allocation10 + $0x62c] sm:$0xf]
    %v2706 = vld [vmem:[#allocation10 + $0x630] sm:$0xff]
    %v2707 = vld [vmem:[#allocation10 + $0x638] sm:$0xf]
    %v2708 = vld [vmem:[#allocation10 + $0x63c] sm:$0xff]
    %v2709 = vld [vmem:[#allocation10 + $0x644] sm:$0xf]
    %v2710 = vld [vmem:[#allocation10 + $0x648] sm:$0xff]
    %v2711 = vld [vmem:[#allocation10 + $0x650] sm:$0xf]
    %v2712 = vld [vmem:[#allocation10 + $0x654] sm:$0xff]
    %v2713 = vld [vmem:[#allocation10 + $0x65c] sm:$0xf]
    %v2714 = vld [vmem:[#allocation10 + $0x660] sm:$0xff]
    %v2715 = vld [vmem:[#allocation10 + $0x668] sm:$0xf]
    %v2716 = vld [vmem:[#allocation10 + $0x66c] sm:$0xff]
    %v2717 = vld [vmem:[#allocation10 + $0x674] sm:$0xf]
    %v2718 = vld [vmem:[#allocation10 + $0x678] sm:$0xff]
    %v2719 = vld [vmem:[#allocation10 + $0x680] sm:$0xf]
    %v2720 = vld [vmem:[#allocation10 + $0x684] sm:$0xff]
    %v2721 = vld [vmem:[#allocation10 + $0x68c] sm:$0xf]
    %v2722 = vld [vmem:[#allocation10 + $0x690] sm:$0xff]
    %v2723 = vld [vmem:[#allocation10 + $0x698] sm:$0xf]
    %v2724 = vld [vmem:[#allocation10 + $0x69c] sm:$0xff]
    %v2725 = vld [vmem:[#allocation10 + $0x6a4] sm:$0xf]
    %v2726 = vld [vmem:[#allocation10 + $0x6a8] sm:$0xff]
    %v2727 = vld [vmem:[#allocation10 + $0x6b0] sm:$0xf]
    %v2728 = vld [vmem:[#allocation10 + $0x6b4] sm:$0xff]
    %v2729 = vld [vmem:[#allocation10 + $0x6bc] sm:$0xf]
    %v2730 = vld [vmem:[#allocation10 + $0x6c0] sm:$0xff]
    %v2731 = vld [vmem:[#allocation10 + $0x6c8] sm:$0xf]
    %v2732 = vld [vmem:[#allocation10 + $0x6cc] sm:$0xff]
    %v2733 = vld [vmem:[#allocation10 + $0x6d4] sm:$0xf]
    %v2734 = vld [vmem:[#allocation10 + $0x6d8] sm:$0xff]
    %v2735 = vld [vmem:[#allocation10 + $0x6e0] sm:$0xf]
    %v2736 = vld [vmem:[#allocation10 + $0x6e4] sm:$0xff]
    %v2737 = vld [vmem:[#allocation10 + $0x6ec] sm:$0xf]
    %v2738 = vld [vmem:[#allocation10 + $0x6f0] sm:$0xff]
    %v2739 = vld [vmem:[#allocation10 + $0x6f8] sm:$0xf]
    %v2740 = vld [vmem:[#allocation10 + $0x6fc] sm:$0xff]
    %v2741 = vld [vmem:[#allocation10 + $0x704] sm:$0xf]
    %v2742 = vld [vmem:[#allocation10 + $0x708] sm:$0xff]
    %v2743 = vld [vmem:[#allocation10 + $0x710] sm:$0xf]
    %v2744 = vld [vmem:[#allocation10 + $0x714] sm:$0xff]
    %v2745 = vld [vmem:[#allocation10 + $0x71c] sm:$0xf]
    %v2746 = vld [vmem:[#allocation10 + $0x720] sm:$0xff]
    %v2747 = vld [vmem:[#allocation10 + $0x728] sm:$0xf]
    %v2748 = vld [vmem:[#allocation10 + $0x72c] sm:$0xff]
    %v2749 = vld [vmem:[#allocation10 + $0x734] sm:$0xf]
    %v2750 = vld [vmem:[#allocation10 + $0x738] sm:$0xff]
    %v2751 = vld [vmem:[#allocation10 + $0x740] sm:$0xf]
    %v2752 = vld [vmem:[#allocation10 + $0x744] sm:$0xff]
    %v2753 = vld [vmem:[#allocation10 + $0x74c] sm:$0xf]
    %v2754 = vld [vmem:[#allocation10 + $0x750] sm:$0xff]
    %v2755 = vld [vmem:[#allocation10 + $0x758] sm:$0xf]
    %v2756 = vld [vmem:[#allocation10 + $0x75c] sm:$0xff]
    %v2757 = vld [vmem:[#allocation10 + $0x764] sm:$0xf]
    %v2758 = vld [vmem:[#allocation10 + $0x768] sm:$0xff]
    %v2759 = vld [vmem:[#allocation10 + $0x770] sm:$0xf]
    %v2760 = vld [vmem:[#allocation10 + $0x774] sm:$0xff]
    %v2761 = vld [vmem:[#allocation10 + $0x77c] sm:$0xf]
    %v2762 = vld [vmem:[#allocation10 + $0x780] sm:$0xff]
    %v2763 = vld [vmem:[#allocation10 + $0x788] sm:$0xf]
    %v2764 = vld [vmem:[#allocation10 + $0x78c] sm:$0xff]
    %v2765 = vld [vmem:[#allocation10 + $0x794] sm:$0xf]
    %v2766 = vld [vmem:[#allocation10 + $0x798] sm:$0xff]
    %v2767 = vld [vmem:[#allocation10 + $0x7a0] sm:$0xf]
    %v2768 = vld [vmem:[#allocation10 + $0x7a4] sm:$0xff]
    %v2769 = vld [vmem:[#allocation10 + $0x7ac] sm:$0xf]
    %v2770 = vld [vmem:[#allocation10 + $0x7b0] sm:$0xff]
    %v2771 = vld [vmem:[#allocation10 + $0x7b8] sm:$0xf]
    %v2772 = vld [vmem:[#allocation10 + $0x7bc] sm:$0xff]
    %v2773 = vld [vmem:[#allocation10 + $0x7c4] sm:$0xf]
    %v2774 = vld [vmem:[#allocation10 + $0x7c8] sm:$0xff]
    %v2775 = vld [vmem:[#allocation10 + $0x7d0] sm:$0xf]
    %v2776 = vld [vmem:[#allocation10 + $0x7d4] sm:$0xff]
    %v2777 = vld [vmem:[#allocation10 + $0x7dc] sm:$0xf]
    %v2778 = vld [vmem:[#allocation10 + $0x7e0] sm:$0xff]
    %v2779 = vld [vmem:[#allocation10 + $0x7e8] sm:$0xf]
    %v2780 = vld [vmem:[#allocation10 + $0x7ec] sm:$0xff]
    %v2781 = vld [vmem:[#allocation10 + $0x7f4] sm:$0xf]
    %v2782 = vld [vmem:[#allocation10 + $0x7f8] sm:$0xff]
    %v2783 = vld [vmem:[#allocation10 + $0x800] sm:$0xf]
    %v2784 = vld [vmem:[#allocation10 + $0x804] sm:$0xff]
    %v2785 = vld [vmem:[#allocation10 + $0x80c] sm:$0xf]
    %v2786 = vld [vmem:[#allocation10 + $0x810] sm:$0xff]
    %v2787 = vld [vmem:[#allocation10 + $0x818] sm:$0xf]
    %v2788 = vld [vmem:[#allocation10 + $0x81c] sm:$0xff]
    %v2789 = vld [vmem:[#allocation10 + $0x824] sm:$0xf]
    %v2790 = vld [vmem:[#allocation10 + $0x828] sm:$0xff]
    %v2791 = vld [vmem:[#allocation10 + $0x830] sm:$0xf]
    %v2792 = vld [vmem:[#allocation10 + $0x834] sm:$0xff]
    %v2793 = vld [vmem:[#allocation10 + $0x83c] sm:$0xf]
    %v2794 = vld [vmem:[#allocation10 + $0x840] sm:$0xff]
    %v2795 = vld [vmem:[#allocation10 + $0x848] sm:$0xf]
    %v2796 = vld [vmem:[#allocation10 + $0x84c] sm:$0xff]
    %v2797 = vld [vmem:[#allocation10 + $0x854] sm:$0xf]
    %v2798 = vld [vmem:[#allocation10 + $0x858] sm:$0xff]
    %v2799 = vld [vmem:[#allocation10 + $0x860] sm:$0xf]
    %v2800 = vld [vmem:[#allocation10 + $0x864] sm:$0xff]
    %v2801 = vld [vmem:[#allocation10 + $0x86c] sm:$0xf]
    %v2802 = vld [vmem:[#allocation10 + $0x870] sm:$0xff]
    %v2803 = vld [vmem:[#allocation10 + $0x878] sm:$0xf]
    %v2804 = vld [vmem:[#allocation10 + $0x87c] sm:$0xff]
    %v2805 = vld [vmem:[#allocation10 + $0x884] sm:$0xf]
    %v2806 = vld [vmem:[#allocation10 + $0x888] sm:$0xff]
    %v2807 = vld [vmem:[#allocation10 + $0x890] sm:$0xf]
    %v2808 = vld [vmem:[#allocation10 + $0x894] sm:$0xff]
    %v2809 = vld [vmem:[#allocation10 + $0x89c] sm:$0xf]
    %v2810 = vld [vmem:[#allocation10 + $0x8a0] sm:$0xff]
    %v2811 = vld [vmem:[#allocation10 + $0x8a8] sm:$0xf]
    %v2812 = vld [vmem:[#allocation10 + $0x8ac] sm:$0xff]
    %v2813 = vld [vmem:[#allocation10 + $0x8b4] sm:$0xf]
    %v2814 = vld [vmem:[#allocation10 + $0x8b8] sm:$0xff]
    %v2815 = vld [vmem:[#allocation10 + $0x8c0] sm:$0xf]
    %v2816 = vld [vmem:[#allocation10 + $0x8c4] sm:$0xff]
    %v2817 = vld [vmem:[#allocation10 + $0x8cc] sm:$0xf]
    %v2818 = vld [vmem:[#allocation10 + $0x8d0] sm:$0xff]
    %v2819 = vld [vmem:[#allocation10 + $0x8d8] sm:$0xf]
    %v2820 = vld [vmem:[#allocation10 + $0x8dc] sm:$0xff]
    %v2821 = vld [vmem:[#allocation10 + $0x8e4] sm:$0xf]
    %v2822 = vld [vmem:[#allocation10 + $0x8e8] sm:$0xff]
    %v2823 = vld [vmem:[#allocation10 + $0x8f0] sm:$0xf]
    %v2824 = vld [vmem:[#allocation10 + $0x8f4] sm:$0xff]
    %v2825 = vld [vmem:[#allocation10 + $0x8fc] sm:$0xf]
    %v2826 = vld [vmem:[#allocation12] sm:$0x7]
    %v2828 = vlaneseq
    %v2829 = vshrl.u32 %v2828, 7
    %v2830 = vsub.s32 0, %v2829
    %v2831 = vrot.slane %v2826, %v2830
    %v2832 = vlaneseq
    %v2833 = vshrl.u32 %v2832, 7
    %v2834 = vsub.s32 1, %v2833
    %v2835 = vrot.slane %v2826, %v2834
    %v2836 = vlaneseq
    %v2837 = vshrl.u32 %v2836, 7
    %v2838 = vsub.s32 2, %v2837
    %v2839 = vrot.slane %v2826, %v2838
    %v3227 = vunpack.c.l.b16 %v2442
    %v3228 = vunpack.c.h.b16 %v2442
    %v3229 = vunpack.c.l.b16 %v2443
    %v3230 = vunpack.c.l.b16 %v2444
    %v3231 = vunpack.c.h.b16 %v2444
    %v3232 = vunpack.c.l.b16 %v2445
    %v3233 = vunpack.c.l.b16 %v2446
    %v3234 = vunpack.c.h.b16 %v2446
    %v3235 = vunpack.c.l.b16 %v2447
    %v3236 = vunpack.c.l.b16 %v2448
    %v3237 = vunpack.c.h.b16 %v2448
    %v3238 = vunpack.c.l.b16 %v2449
    %v3239 = vunpack.c.l.b16 %v2450
    %v3240 = vunpack.c.h.b16 %v2450
    %v3241 = vunpack.c.l.b16 %v2451
    %v3242 = vunpack.c.l.b16 %v2452
    %v3243 = vunpack.c.h.b16 %v2452
    %v3244 = vunpack.c.l.b16 %v2453
    %v3245 = vunpack.c.l.b16 %v2454
    %v3246 = vunpack.c.h.b16 %v2454
    %v3247 = vunpack.c.l.b16 %v2455
    %v3248 = vunpack.c.l.b16 %v2456
    %v3249 = vunpack.c.h.b16 %v2456
    %v3250 = vunpack.c.l.b16 %v2457
    %v3251 = vunpack.c.l.b16 %v2458
    %v3252 = vunpack.c.h.b16 %v2458
    %v3253 = vunpack.c.l.b16 %v2459
    %v3254 = vunpack.c.l.b16 %v2460
    %v3255 = vunpack.c.h.b16 %v2460
    %v3256 = vunpack.c.l.b16 %v2461
    %v3257 = vunpack.c.l.b16 %v2462
    %v3258 = vunpack.c.h.b16 %v2462
    %v3259 = vunpack.c.l.b16 %v2463
    %v3260 = vunpack.c.l.b16 %v2464
    %v3261 = vunpack.c.h.b16 %v2464
    %v3262 = vunpack.c.l.b16 %v2465
    %v3263 = vunpack.c.l.b16 %v2466
    %v3264 = vunpack.c.h.b16 %v2466
    %v3265 = vunpack.c.l.b16 %v2467
    %v3266 = vunpack.c.l.b16 %v2468
    %v3267 = vunpack.c.h.b16 %v2468
    %v3268 = vunpack.c.l.b16 %v2469
    %v3269 = vunpack.c.l.b16 %v2470
    %v3270 = vunpack.c.h.b16 %v2470
    %v3271 = vunpack.c.l.b16 %v2471
    %v3272 = vunpack.c.l.b16 %v2472
    %v3273 = vunpack.c.h.b16 %v2472
    %v3274 = vunpack.c.l.b16 %v2473
    %v3275 = vunpack.c.l.b16 %v2474
    %v3276 = vunpack.c.h.b16 %v2474
    %v3277 = vunpack.c.l.b16 %v2475
    %v3278 = vunpack.c.l.b16 %v2476
    %v3279 = vunpack.c.h.b16 %v2476
    %v3280 = vunpack.c.l.b16 %v2477
    %v3281 = vunpack.c.l.b16 %v2478
    %v3282 = vunpack.c.h.b16 %v2478
    %v3283 = vunpack.c.l.b16 %v2479
    %v3284 = vunpack.c.l.b16 %v2480
    %v3285 = vunpack.c.h.b16 %v2480
    %v3286 = vunpack.c.l.b16 %v2481
    %v3287 = vunpack.c.l.b16 %v2482
    %v3288 = vunpack.c.h.b16 %v2482
    %v3289 = vunpack.c.l.b16 %v2483
    %v3290 = vunpack.c.l.b16 %v2484
    %v3291 = vunpack.c.h.b16 %v2484
    %v3292 = vunpack.c.l.b16 %v2485
    %v3293 = vunpack.c.l.b16 %v2486
    %v3294 = vunpack.c.h.b16 %v2486
    %v3295 = vunpack.c.l.b16 %v2487
    %v3296 = vunpack.c.l.b16 %v2488
    %v3297 = vunpack.c.h.b16 %v2488
    %v3298 = vunpack.c.l.b16 %v2489
    %v3299 = vunpack.c.l.b16 %v2490
    %v3300 = vunpack.c.h.b16 %v2490
    %v3301 = vunpack.c.l.b16 %v2491
    %v3302 = vunpack.c.l.b16 %v2492
    %v3303 = vunpack.c.h.b16 %v2492
    %v3304 = vunpack.c.l.b16 %v2493
    %v3305 = vunpack.c.l.b16 %v2494
    %v3306 = vunpack.c.h.b16 %v2494
    %v3307 = vunpack.c.l.b16 %v2495
    %v3308 = vunpack.c.l.b16 %v2496
    %v3309 = vunpack.c.h.b16 %v2496
    %v3310 = vunpack.c.l.b16 %v2497
    %v3311 = vunpack.c.l.b16 %v2498
    %v3312 = vunpack.c.h.b16 %v2498
    %v3313 = vunpack.c.l.b16 %v2499
    %v3314 = vunpack.c.l.b16 %v2500
    %v3315 = vunpack.c.h.b16 %v2500
    %v3316 = vunpack.c.l.b16 %v2501
    %v3317 = vunpack.c.l.b16 %v2502
    %v3318 = vunpack.c.h.b16 %v2502
    %v3319 = vunpack.c.l.b16 %v2503
    %v3320 = vunpack.c.l.b16 %v2504
    %v3321 = vunpack.c.h.b16 %v2504
    %v3322 = vunpack.c.l.b16 %v2505
    %v3323 = vunpack.c.l.b16 %v2506
    %v3324 = vunpack.c.h.b16 %v2506
    %v3325 = vunpack.c.l.b16 %v2507
    %v3326 = vunpack.c.l.b16 %v2508
    %v3327 = vunpack.c.h.b16 %v2508
    %v3328 = vunpack.c.l.b16 %v2509
    %v3329 = vunpack.c.l.b16 %v2510
    %v3330 = vunpack.c.h.b16 %v2510
    %v3331 = vunpack.c.l.b16 %v2511
    %v3332 = vunpack.c.l.b16 %v2512
    %v3333 = vunpack.c.h.b16 %v2512
    %v3334 = vunpack.c.l.b16 %v2513
    %v3335 = vunpack.c.l.b16 %v2514
    %v3336 = vunpack.c.h.b16 %v2514
    %v3337 = vunpack.c.l.b16 %v2515
    %v3338 = vunpack.c.l.b16 %v2516
    %v3339 = vunpack.c.h.b16 %v2516
    %v3340 = vunpack.c.l.b16 %v2517
    %v3341 = vunpack.c.l.b16 %v2518
    %v3342 = vunpack.c.h.b16 %v2518
    %v3343 = vunpack.c.l.b16 %v2519
    %v3344 = vunpack.c.l.b16 %v2520
    %v3345 = vunpack.c.h.b16 %v2520
    %v3346 = vunpack.c.l.b16 %v2521
    %v3347 = vunpack.c.l.b16 %v2522
    %v3348 = vunpack.c.h.b16 %v2522
    %v3349 = vunpack.c.l.b16 %v2523
    %v3350 = vunpack.c.l.b16 %v2524
    %v3351 = vunpack.c.h.b16 %v2524
    %v3352 = vunpack.c.l.b16 %v2525
    %v3353 = vunpack.c.l.b16 %v2526
    %v3354 = vunpack.c.h.b16 %v2526
    %v3355 = vunpack.c.l.b16 %v2527
    %v3356 = vunpack.c.l.b16 %v2528
    %v3357 = vunpack.c.h.b16 %v2528
    %v3358 = vunpack.c.l.b16 %v2529
    %v3359 = vunpack.c.l.b16 %v2530
    %v3360 = vunpack.c.h.b16 %v2530
    %v3361 = vunpack.c.l.b16 %v2531
    %v3362 = vunpack.c.l.b16 %v2532
    %v3363 = vunpack.c.h.b16 %v2532
    %v3364 = vunpack.c.l.b16 %v2533
    %v3365 = vunpack.c.l.b16 %v2534
    %v3366 = vunpack.c.h.b16 %v2534
    %v3367 = vunpack.c.l.b16 %v2535
    %v3368 = vunpack.c.l.b16 %v2536
    %v3369 = vunpack.c.h.b16 %v2536
    %v3370 = vunpack.c.l.b16 %v2537
    %v3371 = vunpack.c.l.b16 %v2538
    %v3372 = vunpack.c.h.b16 %v2538
    %v3373 = vunpack.c.l.b16 %v2539
    %v3374 = vunpack.c.l.b16 %v2540
    %v3375 = vunpack.c.h.b16 %v2540
    %v3376 = vunpack.c.l.b16 %v2541
    %v3377 = vunpack.c.l.b16 %v2542
    %v3378 = vunpack.c.h.b16 %v2542
    %v3379 = vunpack.c.l.b16 %v2543
    %v3380 = vunpack.c.l.b16 %v2544
    %v3381 = vunpack.c.h.b16 %v2544
    %v3382 = vunpack.c.l.b16 %v2545
    %v3383 = vunpack.c.l.b16 %v2546
    %v3384 = vunpack.c.h.b16 %v2546
    %v3385 = vunpack.c.l.b16 %v2547
    %v3386 = vunpack.c.l.b16 %v2548
    %v3387 = vunpack.c.h.b16 %v2548
    %v3388 = vunpack.c.l.b16 %v2549
    %v3389 = vunpack.c.l.b16 %v2550
    %v3390 = vunpack.c.h.b16 %v2550
    %v3391 = vunpack.c.l.b16 %v2551
    %v3392 = vunpack.c.l.b16 %v2552
    %v3393 = vunpack.c.h.b16 %v2552
    %v3394 = vunpack.c.l.b16 %v2553
    %v3395 = vunpack.c.l.b16 %v2554
    %v3396 = vunpack.c.h.b16 %v2554
    %v3397 = vunpack.c.l.b16 %v2555
    %v3398 = vunpack.c.l.b16 %v2556
    %v3399 = vunpack.c.h.b16 %v2556
    %v3400 = vunpack.c.l.b16 %v2557
    %v3401 = vunpack.c.l.b16 %v2558
    %v3402 = vunpack.c.h.b16 %v2558
    %v3403 = vunpack.c.l.b16 %v2559
    %v3404 = vunpack.c.l.b16 %v2560
    %v3405 = vunpack.c.h.b16 %v2560
    %v3406 = vunpack.c.l.b16 %v2561
    %v3407 = vunpack.c.l.b16 %v2562
    %v3408 = vunpack.c.h.b16 %v2562
    %v3409 = vunpack.c.l.b16 %v2563
    %v3410 = vunpack.c.l.b16 %v2564
    %v3411 = vunpack.c.h.b16 %v2564
    %v3412 = vunpack.c.l.b16 %v2565
    %v3413 = vunpack.c.l.b16 %v2566
    %v3414 = vunpack.c.h.b16 %v2566
    %v3415 = vunpack.c.l.b16 %v2567
    %v3416 = vunpack.c.l.b16 %v2568
    %v3417 = vunpack.c.h.b16 %v2568
    %v3418 = vunpack.c.l.b16 %v2569
    %v3419 = vunpack.c.l.b16 %v2570
    %v3420 = vunpack.c.h.b16 %v2570
    %v3421 = vunpack.c.l.b16 %v2571
    %v3422 = vunpack.c.l.b16 %v2572
    %v3423 = vunpack.c.h.b16 %v2572
    %v3424 = vunpack.c.l.b16 %v2573
    %v3425 = vunpack.c.l.b16 %v2574
    %v3426 = vunpack.c.h.b16 %v2574
    %v3427 = vunpack.c.l.b16 %v2575
    %v3428 = vunpack.c.l.b16 %v2576
    %v3429 = vunpack.c.h.b16 %v2576
    %v3430 = vunpack.c.l.b16 %v2577
    %v3431 = vunpack.c.l.b16 %v2578
    %v3432 = vunpack.c.h.b16 %v2578
    %v3433 = vunpack.c.l.b16 %v2579
    %v3434 = vunpack.c.l.b16 %v2580
    %v3435 = vunpack.c.h.b16 %v2580
    %v3436 = vunpack.c.l.b16 %v2581
    %v3437 = vunpack.c.l.b16 %v2582
    %v3438 = vunpack.c.h.b16 %v2582
    %v3439 = vunpack.c.l.b16 %v2583
    %v3440 = vunpack.c.l.b16 %v2584
    %v3441 = vunpack.c.h.b16 %v2584
    %v3442 = vunpack.c.l.b16 %v2585
    %v3443 = vunpack.c.l.b16 %v2586
    %v3444 = vunpack.c.h.b16 %v2586
    %v3445 = vunpack.c.l.b16 %v2587
    %v3446 = vunpack.c.l.b16 %v2588
    %v3447 = vunpack.c.h.b16 %v2588
    %v3448 = vunpack.c.l.b16 %v2589
    %v3449 = vunpack.c.l.b16 %v2590
    %v3450 = vunpack.c.h.b16 %v2590
    %v3451 = vunpack.c.l.b16 %v2591
    %v3452 = vunpack.c.l.b16 %v2592
    %v3453 = vunpack.c.h.b16 %v2592
    %v3454 = vunpack.c.l.b16 %v2593
    %v3455 = vunpack.c.l.b16 %v2594
    %v3456 = vunpack.c.h.b16 %v2594
    %v3457 = vunpack.c.l.b16 %v2595
    %v3458 = vunpack.c.l.b16 %v2596
    %v3459 = vunpack.c.h.b16 %v2596
    %v3460 = vunpack.c.l.b16 %v2597
    %v3461 = vunpack.c.l.b16 %v2598
    %v3462 = vunpack.c.h.b16 %v2598
    %v3463 = vunpack.c.l.b16 %v2599
    %v3464 = vunpack.c.l.b16 %v2600
    %v3465 = vunpack.c.h.b16 %v2600
    %v3466 = vunpack.c.l.b16 %v2601
    %v3467 = vunpack.c.l.b16 %v2602
    %v3468 = vunpack.c.h.b16 %v2602
    %v3469 = vunpack.c.l.b16 %v2603
    %v3470 = vunpack.c.l.b16 %v2604
    %v3471 = vunpack.c.h.b16 %v2604
    %v3472 = vunpack.c.l.b16 %v2605
    %v3473 = vunpack.c.l.b16 %v2606
    %v3474 = vunpack.c.h.b16 %v2606
    %v3475 = vunpack.c.l.b16 %v2607
    %v3476 = vunpack.c.l.b16 %v2608
    %v3477 = vunpack.c.h.b16 %v2608
    %v3478 = vunpack.c.l.b16 %v2609
    %v3479 = vunpack.c.l.b16 %v2610
    %v3480 = vunpack.c.h.b16 %v2610
    %v3481 = vunpack.c.l.b16 %v2611
    %v3482 = vunpack.c.l.b16 %v2612
    %v3483 = vunpack.c.h.b16 %v2612
    %v3484 = vunpack.c.l.b16 %v2613
    %v3485 = vunpack.c.l.b16 %v2614
    %v3486 = vunpack.c.h.b16 %v2614
    %v3487 = vunpack.c.l.b16 %v2615
    %v3488 = vunpack.c.l.b16 %v2616
    %v3489 = vunpack.c.h.b16 %v2616
    %v3490 = vunpack.c.l.b16 %v2617
    %v3491 = vunpack.c.l.b16 %v2618
    %v3492 = vunpack.c.h.b16 %v2618
    %v3493 = vunpack.c.l.b16 %v2619
    %v3494 = vunpack.c.l.b16 %v2620
    %v3495 = vunpack.c.h.b16 %v2620
    %v3496 = vunpack.c.l.b16 %v2621
    %v3497 = vunpack.c.l.b16 %v2622
    %v3498 = vunpack.c.h.b16 %v2622
    %v3499 = vunpack.c.l.b16 %v2623
    %v3500 = vunpack.c.l.b16 %v2624
    %v3501 = vunpack.c.h.b16 %v2624
    %v3502 = vunpack.c.l.b16 %v2625
    %v3503 = vunpack.c.l.b16 %v2626
    %v3504 = vunpack.c.h.b16 %v2626
    %v3505 = vunpack.c.l.b16 %v2627
    %v3506 = vunpack.c.l.b16 %v2628
    %v3507 = vunpack.c.h.b16 %v2628
    %v3508 = vunpack.c.l.b16 %v2629
    %v3509 = vunpack.c.l.b16 %v2630
    %v3510 = vunpack.c.h.b16 %v2630
    %v3511 = vunpack.c.l.b16 %v2631
    %v3512 = vunpack.c.l.b16 %v2632
    %v3513 = vunpack.c.h.b16 %v2632
    %v3514 = vunpack.c.l.b16 %v2633
    %v3515 = vunpack.c.l.b16 %v2634
    %v3516 = vunpack.c.h.b16 %v2634
    %v3517 = vunpack.c.l.b16 %v2635
    %v3518 = vunpack.c.l.b16 %v2636
    %v3519 = vunpack.c.h.b16 %v2636
    %v3520 = vunpack.c.l.b16 %v2637
    %v3521 = vunpack.c.l.b16 %v2638
    %v3522 = vunpack.c.h.b16 %v2638
    %v3523 = vunpack.c.l.b16 %v2639
    %v3524 = vunpack.c.l.b16 %v2640
    %v3525 = vunpack.c.h.b16 %v2640
    %v3526 = vunpack.c.l.b16 %v2641
    %v3527 = vunpack.c.l.b16 %v2642
    %v3528 = vunpack.c.h.b16 %v2642
    %v3529 = vunpack.c.l.b16 %v2643
    %v3530 = vunpack.c.l.b16 %v2644
    %v3531 = vunpack.c.h.b16 %v2644
    %v3532 = vunpack.c.l.b16 %v2645
    %v3533 = vunpack.c.l.b16 %v2646
    %v3534 = vunpack.c.h.b16 %v2646
    %v3535 = vunpack.c.l.b16 %v2647
    %v3536 = vunpack.c.l.b16 %v2648
    %v3537 = vunpack.c.h.b16 %v2648
    %v3538 = vunpack.c.l.b16 %v2649
    %v3539 = vunpack.c.l.b16 %v2650
    %v3540 = vunpack.c.h.b16 %v2650
    %v3541 = vunpack.c.l.b16 %v2651
    %v3542 = vunpack.c.l.b16 %v2652
    %v3543 = vunpack.c.h.b16 %v2652
    %v3544 = vunpack.c.l.b16 %v2653
    %v3545 = vunpack.c.l.b16 %v2654
    %v3546 = vunpack.c.h.b16 %v2654
    %v3547 = vunpack.c.l.b16 %v2655
    %v3548 = vunpack.c.l.b16 %v2656
    %v3549 = vunpack.c.h.b16 %v2656
    %v3550 = vunpack.c.l.b16 %v2657
    %v3551 = vunpack.c.l.b16 %v2658
    %v3552 = vunpack.c.h.b16 %v2658
    %v3553 = vunpack.c.l.b16 %v2659
    %v3554 = vunpack.c.l.b16 %v2660
    %v3555 = vunpack.c.h.b16 %v2660
    %v3556 = vunpack.c.l.b16 %v2661
    %v3557 = vunpack.c.l.b16 %v2662
    %v3558 = vunpack.c.h.b16 %v2662
    %v3559 = vunpack.c.l.b16 %v2663
    %v3560 = vunpack.c.l.b16 %v2664
    %v3561 = vunpack.c.h.b16 %v2664
    %v3562 = vunpack.c.l.b16 %v2665
    %v3563 = vunpack.c.l.b16 %v2666
    %v3564 = vunpack.c.h.b16 %v2666
    %v3565 = vunpack.c.l.b16 %v2667
    %v3566 = vunpack.c.l.b16 %v2668
    %v3567 = vunpack.c.h.b16 %v2668
    %v3568 = vunpack.c.l.b16 %v2669
    %v3569 = vunpack.c.l.b16 %v2670
    %v3570 = vunpack.c.h.b16 %v2670
    %v3571 = vunpack.c.l.b16 %v2671
    %v3572 = vunpack.c.l.b16 %v2672
    %v3573 = vunpack.c.h.b16 %v2672
    %v3574 = vunpack.c.l.b16 %v2673
    %v3575 = vunpack.c.l.b16 %v2674
    %v3576 = vunpack.c.h.b16 %v2674
    %v3577 = vunpack.c.l.b16 %v2675
    %v3578 = vunpack.c.l.b16 %v2676
    %v3579 = vunpack.c.h.b16 %v2676
    %v3580 = vunpack.c.l.b16 %v2677
    %v3581 = vunpack.c.l.b16 %v2678
    %v3582 = vunpack.c.h.b16 %v2678
    %v3583 = vunpack.c.l.b16 %v2679
    %v3584 = vunpack.c.l.b16 %v2680
    %v3585 = vunpack.c.h.b16 %v2680
    %v3586 = vunpack.c.l.b16 %v2681
    %v3587 = vunpack.c.l.b16 %v2682
    %v3588 = vunpack.c.h.b16 %v2682
    %v3589 = vunpack.c.l.b16 %v2683
    %v3590 = vunpack.c.l.b16 %v2684
    %v3591 = vunpack.c.h.b16 %v2684
    %v3592 = vunpack.c.l.b16 %v2685
    %v3593 = vunpack.c.l.b16 %v2686
    %v3594 = vunpack.c.h.b16 %v2686
    %v3595 = vunpack.c.l.b16 %v2687
    %v3596 = vunpack.c.l.b16 %v2688
    %v3597 = vunpack.c.h.b16 %v2688
    %v3598 = vunpack.c.l.b16 %v2689
    %v3599 = vunpack.c.l.b16 %v2690
    %v3600 = vunpack.c.h.b16 %v2690
    %v3601 = vunpack.c.l.b16 %v2691
    %v3602 = vunpack.c.l.b16 %v2692
    %v3603 = vunpack.c.h.b16 %v2692
    %v3604 = vunpack.c.l.b16 %v2693
    %v3605 = vunpack.c.l.b16 %v2694
    %v3606 = vunpack.c.h.b16 %v2694
    %v3607 = vunpack.c.l.b16 %v2695
    %v3608 = vunpack.c.l.b16 %v2696
    %v3609 = vunpack.c.h.b16 %v2696
    %v3610 = vunpack.c.l.b16 %v2697
    %v3611 = vunpack.c.l.b16 %v2698
    %v3612 = vunpack.c.h.b16 %v2698
    %v3613 = vunpack.c.l.b16 %v2699
    %v3614 = vunpack.c.l.b16 %v2700
    %v3615 = vunpack.c.h.b16 %v2700
    %v3616 = vunpack.c.l.b16 %v2701
    %v3617 = vunpack.c.l.b16 %v2702
    %v3618 = vunpack.c.h.b16 %v2702
    %v3619 = vunpack.c.l.b16 %v2703
    %v3620 = vunpack.c.l.b16 %v2704
    %v3621 = vunpack.c.h.b16 %v2704
    %v3622 = vunpack.c.l.b16 %v2705
    %v3623 = vunpack.c.l.b16 %v2706
    %v3624 = vunpack.c.h.b16 %v2706
    %v3625 = vunpack.c.l.b16 %v2707
    %v3626 = vunpack.c.l.b16 %v2708
    %v3627 = vunpack.c.h.b16 %v2708
    %v3628 = vunpack.c.l.b16 %v2709
    %v3629 = vunpack.c.l.b16 %v2710
    %v3630 = vunpack.c.h.b16 %v2710
    %v3631 = vunpack.c.l.b16 %v2711
    %v3632 = vunpack.c.l.b16 %v2712
    %v3633 = vunpack.c.h.b16 %v2712
    %v3634 = vunpack.c.l.b16 %v2713
    %v3635 = vunpack.c.l.b16 %v2714
    %v3636 = vunpack.c.h.b16 %v2714
    %v3637 = vunpack.c.l.b16 %v2715
    %v3638 = vunpack.c.l.b16 %v2716
    %v3639 = vunpack.c.h.b16 %v2716
    %v3640 = vunpack.c.l.b16 %v2717
    %v3641 = vunpack.c.l.b16 %v2718
    %v3642 = vunpack.c.h.b16 %v2718
    %v3643 = vunpack.c.l.b16 %v2719
    %v3644 = vunpack.c.l.b16 %v2720
    %v3645 = vunpack.c.h.b16 %v2720
    %v3646 = vunpack.c.l.b16 %v2721
    %v3647 = vunpack.c.l.b16 %v2722
    %v3648 = vunpack.c.h.b16 %v2722
    %v3649 = vunpack.c.l.b16 %v2723
    %v3650 = vunpack.c.l.b16 %v2724
    %v3651 = vunpack.c.h.b16 %v2724
    %v3652 = vunpack.c.l.b16 %v2725
    %v3653 = vunpack.c.l.b16 %v2726
    %v3654 = vunpack.c.h.b16 %v2726
    %v3655 = vunpack.c.l.b16 %v2727
    %v3656 = vunpack.c.l.b16 %v2728
    %v3657 = vunpack.c.h.b16 %v2728
    %v3658 = vunpack.c.l.b16 %v2729
    %v3659 = vunpack.c.l.b16 %v2730
    %v3660 = vunpack.c.h.b16 %v2730
    %v3661 = vunpack.c.l.b16 %v2731
    %v3662 = vunpack.c.l.b16 %v2732
    %v3663 = vunpack.c.h.b16 %v2732
    %v3664 = vunpack.c.l.b16 %v2733
    %v3665 = vunpack.c.l.b16 %v2734
    %v3666 = vunpack.c.h.b16 %v2734
    %v3667 = vunpack.c.l.b16 %v2735
    %v3668 = vunpack.c.l.b16 %v2736
    %v3669 = vunpack.c.h.b16 %v2736
    %v3670 = vunpack.c.l.b16 %v2737
    %v3671 = vunpack.c.l.b16 %v2738
    %v3672 = vunpack.c.h.b16 %v2738
    %v3673 = vunpack.c.l.b16 %v2739
    %v3674 = vunpack.c.l.b16 %v2740
    %v3675 = vunpack.c.h.b16 %v2740
    %v3676 = vunpack.c.l.b16 %v2741
    %v3677 = vunpack.c.l.b16 %v2742
    %v3678 = vunpack.c.h.b16 %v2742
    %v3679 = vunpack.c.l.b16 %v2743
    %v3680 = vunpack.c.l.b16 %v2744
    %v3681 = vunpack.c.h.b16 %v2744
    %v3682 = vunpack.c.l.b16 %v2745
    %v3683 = vunpack.c.l.b16 %v2746
    %v3684 = vunpack.c.h.b16 %v2746
    %v3685 = vunpack.c.l.b16 %v2747
    %v3686 = vunpack.c.l.b16 %v2748
    %v3687 = vunpack.c.h.b16 %v2748
    %v3688 = vunpack.c.l.b16 %v2749
    %v3689 = vunpack.c.l.b16 %v2750
    %v3690 = vunpack.c.h.b16 %v2750
    %v3691 = vunpack.c.l.b16 %v2751
    %v3692 = vunpack.c.l.b16 %v2752
    %v3693 = vunpack.c.h.b16 %v2752
    %v3694 = vunpack.c.l.b16 %v2753
    %v3695 = vunpack.c.l.b16 %v2754
    %v3696 = vunpack.c.h.b16 %v2754
    %v3697 = vunpack.c.l.b16 %v2755
    %v3698 = vunpack.c.l.b16 %v2756
    %v3699 = vunpack.c.h.b16 %v2756
    %v3700 = vunpack.c.l.b16 %v2757
    %v3701 = vunpack.c.l.b16 %v2758
    %v3702 = vunpack.c.h.b16 %v2758
    %v3703 = vunpack.c.l.b16 %v2759
    %v3704 = vunpack.c.l.b16 %v2760
    %v3705 = vunpack.c.h.b16 %v2760
    %v3706 = vunpack.c.l.b16 %v2761
    %v3707 = vunpack.c.l.b16 %v2762
    %v3708 = vunpack.c.h.b16 %v2762
    %v3709 = vunpack.c.l.b16 %v2763
    %v3710 = vunpack.c.l.b16 %v2764
    %v3711 = vunpack.c.h.b16 %v2764
    %v3712 = vunpack.c.l.b16 %v2765
    %v3713 = vunpack.c.l.b16 %v2766
    %v3714 = vunpack.c.h.b16 %v2766
    %v3715 = vunpack.c.l.b16 %v2767
    %v3716 = vunpack.c.l.b16 %v2768
    %v3717 = vunpack.c.h.b16 %v2768
    %v3718 = vunpack.c.l.b16 %v2769
    %v3719 = vunpack.c.l.b16 %v2770
    %v3720 = vunpack.c.h.b16 %v2770
    %v3721 = vunpack.c.l.b16 %v2771
    %v3722 = vunpack.c.l.b16 %v2772
    %v3723 = vunpack.c.h.b16 %v2772
    %v3724 = vunpack.c.l.b16 %v2773
    %v3725 = vunpack.c.l.b16 %v2774
    %v3726 = vunpack.c.h.b16 %v2774
    %v3727 = vunpack.c.l.b16 %v2775
    %v3728 = vunpack.c.l.b16 %v2776
    %v3729 = vunpack.c.h.b16 %v2776
    %v3730 = vunpack.c.l.b16 %v2777
    %v3731 = vunpack.c.l.b16 %v2778
    %v3732 = vunpack.c.h.b16 %v2778
    %v3733 = vunpack.c.l.b16 %v2779
    %v3734 = vunpack.c.l.b16 %v2780
    %v3735 = vunpack.c.h.b16 %v2780
    %v3736 = vunpack.c.l.b16 %v2781
    %v3737 = vunpack.c.l.b16 %v2782
    %v3738 = vunpack.c.h.b16 %v2782
    %v3739 = vunpack.c.l.b16 %v2783
    %v3740 = vunpack.c.l.b16 %v2784
    %v3741 = vunpack.c.h.b16 %v2784
    %v3742 = vunpack.c.l.b16 %v2785
    %v3743 = vunpack.c.l.b16 %v2786
    %v3744 = vunpack.c.h.b16 %v2786
    %v3745 = vunpack.c.l.b16 %v2787
    %v3746 = vunpack.c.l.b16 %v2788
    %v3747 = vunpack.c.h.b16 %v2788
    %v3748 = vunpack.c.l.b16 %v2789
    %v3749 = vunpack.c.l.b16 %v2790
    %v3750 = vunpack.c.h.b16 %v2790
    %v3751 = vunpack.c.l.b16 %v2791
    %v3752 = vunpack.c.l.b16 %v2792
    %v3753 = vunpack.c.h.b16 %v2792
    %v3754 = vunpack.c.l.b16 %v2793
    %v3755 = vunpack.c.l.b16 %v2794
    %v3756 = vunpack.c.h.b16 %v2794
    %v3757 = vunpack.c.l.b16 %v2795
    %v3758 = vunpack.c.l.b16 %v2796
    %v3759 = vunpack.c.h.b16 %v2796
    %v3760 = vunpack.c.l.b16 %v2797
    %v3761 = vunpack.c.l.b16 %v2798
    %v3762 = vunpack.c.h.b16 %v2798
    %v3763 = vunpack.c.l.b16 %v2799
    %v3764 = vunpack.c.l.b16 %v2800
    %v3765 = vunpack.c.h.b16 %v2800
    %v3766 = vunpack.c.l.b16 %v2801
    %v3767 = vunpack.c.l.b16 %v2802
    %v3768 = vunpack.c.h.b16 %v2802
    %v3769 = vunpack.c.l.b16 %v2803
    %v3770 = vunpack.c.l.b16 %v2804
    %v3771 = vunpack.c.h.b16 %v2804
    %v3772 = vunpack.c.l.b16 %v2805
    %v3773 = vunpack.c.l.b16 %v2806
    %v3774 = vunpack.c.h.b16 %v2806
    %v3775 = vunpack.c.l.b16 %v2807
    %v3776 = vunpack.c.l.b16 %v2808
    %v3777 = vunpack.c.h.b16 %v2808
    %v3778 = vunpack.c.l.b16 %v2809
    %v3779 = vunpack.c.l.b16 %v2810
    %v3780 = vunpack.c.h.b16 %v2810
    %v3781 = vunpack.c.l.b16 %v2811
    %v3782 = vunpack.c.l.b16 %v2812
    %v3783 = vunpack.c.h.b16 %v2812
    %v3784 = vunpack.c.l.b16 %v2813
    %v3785 = vunpack.c.l.b16 %v2814
    %v3786 = vunpack.c.h.b16 %v2814
    %v3787 = vunpack.c.l.b16 %v2815
    %v3788 = vunpack.c.l.b16 %v2816
    %v3789 = vunpack.c.h.b16 %v2816
    %v3790 = vunpack.c.l.b16 %v2817
    %v3791 = vunpack.c.l.b16 %v2818
    %v3792 = vunpack.c.h.b16 %v2818
    %v3793 = vunpack.c.l.b16 %v2819
    %v3794 = vunpack.c.l.b16 %v2820
    %v3795 = vunpack.c.h.b16 %v2820
    %v3796 = vunpack.c.l.b16 %v2821
    %v3797 = vunpack.c.l.b16 %v2822
    %v3798 = vunpack.c.h.b16 %v2822
    %v3799 = vunpack.c.l.b16 %v2823
    %v3800 = vunpack.c.l.b16 %v2824
    %v3801 = vunpack.c.h.b16 %v2824
    %v3802 = vunpack.c.l.b16 %v2825
    %v3803 = vpack.c.b16 %v3230, %v3227
    %v3804 = vpack.c.b16 %v3231, %v3228
    %v3805 = vpack.c.b16 %v3232, %v3229
    %v3806 = vpack.c.b16 %v3236, %v3233
    %v3807 = vpack.c.b16 %v3237, %v3234
    %v3808 = vpack.c.b16 %v3238, %v3235
    %v3809 = vpack.c.b16 %v3242, %v3239
    %v3810 = vpack.c.b16 %v3243, %v3240
    %v3811 = vpack.c.b16 %v3244, %v3241
    %v3812 = vpack.c.b16 %v3248, %v3245
    %v3813 = vpack.c.b16 %v3249, %v3246
    %v3814 = vpack.c.b16 %v3250, %v3247
    %v3815 = vpack.c.b16 %v3254, %v3251
    %v3816 = vpack.c.b16 %v3255, %v3252
    %v3817 = vpack.c.b16 %v3256, %v3253
    %v3818 = vpack.c.b16 %v3260, %v3257
    %v3819 = vpack.c.b16 %v3261, %v3258
    %v3820 = vpack.c.b16 %v3262, %v3259
    %v3821 = vpack.c.b16 %v3266, %v3263
    %v3822 = vpack.c.b16 %v3267, %v3264
    %v3823 = vpack.c.b16 %v3268, %v3265
    %v3824 = vpack.c.b16 %v3272, %v3269
    %v3825 = vpack.c.b16 %v3273, %v3270
    %v3826 = vpack.c.b16 %v3274, %v3271
    %v3827 = vpack.c.b16 %v3278, %v3275
    %v3828 = vpack.c.b16 %v3279, %v3276
    %v3829 = vpack.c.b16 %v3280, %v3277
    %v3830 = vpack.c.b16 %v3284, %v3281
    %v3831 = vpack.c.b16 %v3285, %v3282
    %v3832 = vpack.c.b16 %v3286, %v3283
    %v3833 = vpack.c.b16 %v3290, %v3287
    %v3834 = vpack.c.b16 %v3291, %v3288
    %v3835 = vpack.c.b16 %v3292, %v3289
    %v3836 = vpack.c.b16 %v3296, %v3293
    %v3837 = vpack.c.b16 %v3297, %v3294
    %v3838 = vpack.c.b16 %v3298, %v3295
    %v3839 = vpack.c.b16 %v3302, %v3299
    %v3840 = vpack.c.b16 %v3303, %v3300
    %v3841 = vpack.c.b16 %v3304, %v3301
    %v3842 = vpack.c.b16 %v3308, %v3305
    %v3843 = vpack.c.b16 %v3309, %v3306
    %v3844 = vpack.c.b16 %v3310, %v3307
    %v3845 = vpack.c.b16 %v3314, %v3311
    %v3846 = vpack.c.b16 %v3315, %v3312
    %v3847 = vpack.c.b16 %v3316, %v3313
    %v3848 = vpack.c.b16 %v3320, %v3317
    %v3849 = vpack.c.b16 %v3321, %v3318
    %v3850 = vpack.c.b16 %v3322, %v3319
    %v3851 = vpack.c.b16 %v3326, %v3323
    %v3852 = vpack.c.b16 %v3327, %v3324
    %v3853 = vpack.c.b16 %v3328, %v3325
    %v3854 = vpack.c.b16 %v3332, %v3329
    %v3855 = vpack.c.b16 %v3333, %v3330
    %v3856 = vpack.c.b16 %v3334, %v3331
    %v3857 = vpack.c.b16 %v3338, %v3335
    %v3858 = vpack.c.b16 %v3339, %v3336
    %v3859 = vpack.c.b16 %v3340, %v3337
    %v3860 = vpack.c.b16 %v3344, %v3341
    %v3861 = vpack.c.b16 %v3345, %v3342
    %v3862 = vpack.c.b16 %v3346, %v3343
    %v3863 = vpack.c.b16 %v3350, %v3347
    %v3864 = vpack.c.b16 %v3351, %v3348
    %v3865 = vpack.c.b16 %v3352, %v3349
    %v3866 = vpack.c.b16 %v3356, %v3353
    %v3867 = vpack.c.b16 %v3357, %v3354
    %v3868 = vpack.c.b16 %v3358, %v3355
    %v3869 = vpack.c.b16 %v3362, %v3359
    %v3870 = vpack.c.b16 %v3363, %v3360
    %v3871 = vpack.c.b16 %v3364, %v3361
    %v3872 = vpack.c.b16 %v3368, %v3365
    %v3873 = vpack.c.b16 %v3369, %v3366
    %v3874 = vpack.c.b16 %v3370, %v3367
    %v3875 = vpack.c.b16 %v3374, %v3371
    %v3876 = vpack.c.b16 %v3375, %v3372
    %v3877 = vpack.c.b16 %v3376, %v3373
    %v3878 = vpack.c.b16 %v3380, %v3377
    %v3879 = vpack.c.b16 %v3381, %v3378
    %v3880 = vpack.c.b16 %v3382, %v3379
    %v3881 = vpack.c.b16 %v3386, %v3383
    %v3882 = vpack.c.b16 %v3387, %v3384
    %v3883 = vpack.c.b16 %v3388, %v3385
    %v3884 = vpack.c.b16 %v3392, %v3389
    %v3885 = vpack.c.b16 %v3393, %v3390
    %v3886 = vpack.c.b16 %v3394, %v3391
    %v3887 = vpack.c.b16 %v3398, %v3395
    %v3888 = vpack.c.b16 %v3399, %v3396
    %v3889 = vpack.c.b16 %v3400, %v3397
    %v3890 = vpack.c.b16 %v3404, %v3401
    %v3891 = vpack.c.b16 %v3405, %v3402
    %v3892 = vpack.c.b16 %v3406, %v3403
    %v3893 = vpack.c.b16 %v3410, %v3407
    %v3894 = vpack.c.b16 %v3411, %v3408
    %v3895 = vpack.c.b16 %v3412, %v3409
    %v3896 = vpack.c.b16 %v3416, %v3413
    %v3897 = vpack.c.b16 %v3417, %v3414
    %v3898 = vpack.c.b16 %v3418, %v3415
    %v3899 = vpack.c.b16 %v3422, %v3419
    %v3900 = vpack.c.b16 %v3423, %v3420
    %v3901 = vpack.c.b16 %v3424, %v3421
    %v3902 = vpack.c.b16 %v3428, %v3425
    %v3903 = vpack.c.b16 %v3429, %v3426
    %v3904 = vpack.c.b16 %v3430, %v3427
    %v3905 = vpack.c.b16 %v3434, %v3431
    %v3906 = vpack.c.b16 %v3435, %v3432
    %v3907 = vpack.c.b16 %v3436, %v3433
    %v3908 = vpack.c.b16 %v3440, %v3437
    %v3909 = vpack.c.b16 %v3441, %v3438
    %v3910 = vpack.c.b16 %v3442, %v3439
    %v3911 = vpack.c.b16 %v3446, %v3443
    %v3912 = vpack.c.b16 %v3447, %v3444
    %v3913 = vpack.c.b16 %v3448, %v3445
    %v3914 = vpack.c.b16 %v3452, %v3449
    %v3915 = vpack.c.b16 %v3453, %v3450
    %v3916 = vpack.c.b16 %v3454, %v3451
    %v3917 = vpack.c.b16 %v3458, %v3455
    %v3918 = vpack.c.b16 %v3459, %v3456
    %v3919 = vpack.c.b16 %v3460, %v3457
    %v3920 = vpack.c.b16 %v3464, %v3461
    %v3921 = vpack.c.b16 %v3465, %v3462
    %v3922 = vpack.c.b16 %v3466, %v3463
    %v3923 = vpack.c.b16 %v3470, %v3467
    %v3924 = vpack.c.b16 %v3471, %v3468
    %v3925 = vpack.c.b16 %v3472, %v3469
    %v3926 = vpack.c.b16 %v3476, %v3473
    %v3927 = vpack.c.b16 %v3477, %v3474
    %v3928 = vpack.c.b16 %v3478, %v3475
    %v3929 = vpack.c.b16 %v3482, %v3479
    %v3930 = vpack.c.b16 %v3483, %v3480
    %v3931 = vpack.c.b16 %v3484, %v3481
    %v3932 = vpack.c.b16 %v3488, %v3485
    %v3933 = vpack.c.b16 %v3489, %v3486
    %v3934 = vpack.c.b16 %v3490, %v3487
    %v3935 = vpack.c.b16 %v3494, %v3491
    %v3936 = vpack.c.b16 %v3495, %v3492
    %v3937 = vpack.c.b16 %v3496, %v3493
    %v3938 = vpack.c.b16 %v3500, %v3497
    %v3939 = vpack.c.b16 %v3501, %v3498
    %v3940 = vpack.c.b16 %v3502, %v3499
    %v3941 = vpack.c.b16 %v3506, %v3503
    %v3942 = vpack.c.b16 %v3507, %v3504
    %v3943 = vpack.c.b16 %v3508, %v3505
    %v3944 = vpack.c.b16 %v3512, %v3509
    %v3945 = vpack.c.b16 %v3513, %v3510
    %v3946 = vpack.c.b16 %v3514, %v3511
    %v3947 = vpack.c.b16 %v3518, %v3515
    %v3948 = vpack.c.b16 %v3519, %v3516
    %v3949 = vpack.c.b16 %v3520, %v3517
    %v3950 = vpack.c.b16 %v3524, %v3521
    %v3951 = vpack.c.b16 %v3525, %v3522
    %v3952 = vpack.c.b16 %v3526, %v3523
    %v3953 = vpack.c.b16 %v3530, %v3527
    %v3954 = vpack.c.b16 %v3531, %v3528
    %v3955 = vpack.c.b16 %v3532, %v3529
    %v3956 = vpack.c.b16 %v3536, %v3533
    %v3957 = vpack.c.b16 %v3537, %v3534
    %v3958 = vpack.c.b16 %v3538, %v3535
    %v3959 = vpack.c.b16 %v3542, %v3539
    %v3960 = vpack.c.b16 %v3543, %v3540
    %v3961 = vpack.c.b16 %v3544, %v3541
    %v3962 = vpack.c.b16 %v3548, %v3545
    %v3963 = vpack.c.b16 %v3549, %v3546
    %v3964 = vpack.c.b16 %v3550, %v3547
    %v3965 = vpack.c.b16 %v3554, %v3551
    %v3966 = vpack.c.b16 %v3555, %v3552
    %v3967 = vpack.c.b16 %v3556, %v3553
    %v3968 = vpack.c.b16 %v3560, %v3557
    %v3969 = vpack.c.b16 %v3561, %v3558
    %v3970 = vpack.c.b16 %v3562, %v3559
    %v3971 = vpack.c.b16 %v3566, %v3563
    %v3972 = vpack.c.b16 %v3567, %v3564
    %v3973 = vpack.c.b16 %v3568, %v3565
    %v3974 = vpack.c.b16 %v3572, %v3569
    %v3975 = vpack.c.b16 %v3573, %v3570
    %v3976 = vpack.c.b16 %v3574, %v3571
    %v3977 = vpack.c.b16 %v3578, %v3575
    %v3978 = vpack.c.b16 %v3579, %v3576
    %v3979 = vpack.c.b16 %v3580, %v3577
    %v3980 = vpack.c.b16 %v3584, %v3581
    %v3981 = vpack.c.b16 %v3585, %v3582
    %v3982 = vpack.c.b16 %v3586, %v3583
    %v3983 = vpack.c.b16 %v3590, %v3587
    %v3984 = vpack.c.b16 %v3591, %v3588
    %v3985 = vpack.c.b16 %v3592, %v3589
    %v3986 = vpack.c.b16 %v3596, %v3593
    %v3987 = vpack.c.b16 %v3597, %v3594
    %v3988 = vpack.c.b16 %v3598, %v3595
    %v3989 = vpack.c.b16 %v3602, %v3599
    %v3990 = vpack.c.b16 %v3603, %v3600
    %v3991 = vpack.c.b16 %v3604, %v3601
    %v3992 = vpack.c.b16 %v3608, %v3605
    %v3993 = vpack.c.b16 %v3609, %v3606
    %v3994 = vpack.c.b16 %v3610, %v3607
    %v3995 = vpack.c.b16 %v3614, %v3611
    %v3996 = vpack.c.b16 %v3615, %v3612
    %v3997 = vpack.c.b16 %v3616, %v3613
    %v3998 = vpack.c.b16 %v3620, %v3617
    %v3999 = vpack.c.b16 %v3621, %v3618
    %v4000 = vpack.c.b16 %v3622, %v3619
    %v4001 = vpack.c.b16 %v3626, %v3623
    %v4002 = vpack.c.b16 %v3627, %v3624
    %v4003 = vpack.c.b16 %v3628, %v3625
    %v4004 = vpack.c.b16 %v3632, %v3629
    %v4005 = vpack.c.b16 %v3633, %v3630
    %v4006 = vpack.c.b16 %v3634, %v3631
    %v4007 = vpack.c.b16 %v3638, %v3635
    %v4008 = vpack.c.b16 %v3639, %v3636
    %v4009 = vpack.c.b16 %v3640, %v3637
    %v4010 = vpack.c.b16 %v3644, %v3641
    %v4011 = vpack.c.b16 %v3645, %v3642
    %v4012 = vpack.c.b16 %v3646, %v3643
    %v4013 = vpack.c.b16 %v3650, %v3647
    %v4014 = vpack.c.b16 %v3651, %v3648
    %v4015 = vpack.c.b16 %v3652, %v3649
    %v4016 = vpack.c.b16 %v3656, %v3653
    %v4017 = vpack.c.b16 %v3657, %v3654
    %v4018 = vpack.c.b16 %v3658, %v3655
    %v4019 = vpack.c.b16 %v3662, %v3659
    %v4020 = vpack.c.b16 %v3663, %v3660
    %v4021 = vpack.c.b16 %v3664, %v3661
    %v4022 = vpack.c.b16 %v3668, %v3665
    %v4023 = vpack.c.b16 %v3669, %v3666
    %v4024 = vpack.c.b16 %v3670, %v3667
    %v4025 = vpack.c.b16 %v3674, %v3671
    %v4026 = vpack.c.b16 %v3675, %v3672
    %v4027 = vpack.c.b16 %v3676, %v3673
    %v4028 = vpack.c.b16 %v3680, %v3677
    %v4029 = vpack.c.b16 %v3681, %v3678
    %v4030 = vpack.c.b16 %v3682, %v3679
    %v4031 = vpack.c.b16 %v3686, %v3683
    %v4032 = vpack.c.b16 %v3687, %v3684
    %v4033 = vpack.c.b16 %v3688, %v3685
    %v4034 = vpack.c.b16 %v3692, %v3689
    %v4035 = vpack.c.b16 %v3693, %v3690
    %v4036 = vpack.c.b16 %v3694, %v3691
    %v4037 = vpack.c.b16 %v3698, %v3695
    %v4038 = vpack.c.b16 %v3699, %v3696
    %v4039 = vpack.c.b16 %v3700, %v3697
    %v4040 = vpack.c.b16 %v3704, %v3701
    %v4041 = vpack.c.b16 %v3705, %v3702
    %v4042 = vpack.c.b16 %v3706, %v3703
    %v4043 = vpack.c.b16 %v3710, %v3707
    %v4044 = vpack.c.b16 %v3711, %v3708
    %v4045 = vpack.c.b16 %v3712, %v3709
    %v4046 = vpack.c.b16 %v3716, %v3713
    %v4047 = vpack.c.b16 %v3717, %v3714
    %v4048 = vpack.c.b16 %v3718, %v3715
    %v4049 = vpack.c.b16 %v3722, %v3719
    %v4050 = vpack.c.b16 %v3723, %v3720
    %v4051 = vpack.c.b16 %v3724, %v3721
    %v4052 = vpack.c.b16 %v3728, %v3725
    %v4053 = vpack.c.b16 %v3729, %v3726
    %v4054 = vpack.c.b16 %v3730, %v3727
    %v4055 = vpack.c.b16 %v3734, %v3731
    %v4056 = vpack.c.b16 %v3735, %v3732
    %v4057 = vpack.c.b16 %v3736, %v3733
    %v4058 = vpack.c.b16 %v3740, %v3737
    %v4059 = vpack.c.b16 %v3741, %v3738
    %v4060 = vpack.c.b16 %v3742, %v3739
    %v4061 = vpack.c.b16 %v3746, %v3743
    %v4062 = vpack.c.b16 %v3747, %v3744
    %v4063 = vpack.c.b16 %v3748, %v3745
    %v4064 = vpack.c.b16 %v3752, %v3749
    %v4065 = vpack.c.b16 %v3753, %v3750
    %v4066 = vpack.c.b16 %v3754, %v3751
    %v4067 = vpack.c.b16 %v3758, %v3755
    %v4068 = vpack.c.b16 %v3759, %v3756
    %v4069 = vpack.c.b16 %v3760, %v3757
    %v4070 = vpack.c.b16 %v3764, %v3761
    %v4071 = vpack.c.b16 %v3765, %v3762
    %v4072 = vpack.c.b16 %v3766, %v3763
    %v4073 = vpack.c.b16 %v3770, %v3767
    %v4074 = vpack.c.b16 %v3771, %v3768
    %v4075 = vpack.c.b16 %v3772, %v3769
    %v4076 = vpack.c.b16 %v3776, %v3773
    %v4077 = vpack.c.b16 %v3777, %v3774
    %v4078 = vpack.c.b16 %v3778, %v3775
    %v4079 = vpack.c.b16 %v3782, %v3779
    %v4080 = vpack.c.b16 %v3783, %v3780
    %v4081 = vpack.c.b16 %v3784, %v3781
    %v4082 = vpack.c.b16 %v3788, %v3785
    %v4083 = vpack.c.b16 %v3789, %v3786
    %v4084 = vpack.c.b16 %v3790, %v3787
    %v4085 = vpack.c.b16 %v3794, %v3791
    %v4086 = vpack.c.b16 %v3795, %v3792
    %v4087 = vpack.c.b16 %v3796, %v3793
    %v4088 = vpack.c.b16 %v3800, %v3797
    %v4089 = vpack.c.b16 %v3801, %v3798
    %v4090 = vpack.c.b16 %v3802, %v3799
    %4379 = vmatprep.subr.bf16.mxu0 %v3825
    %4380 = vmatpush1.bf16.msra.mxu0 %v3824
    %4381 = vmatprep.subr.bf16.mxu0 %v3822
    %4382 = vmatpush1.bf16.msra.mxu0 %v3821
    %4383 = vmatprep.subr.bf16.mxu0 %v3819
    %4384 = vmatpush1.bf16.msra.mxu0 %v3818
    %4385 = vmatprep.subr.bf16.mxu0 %v3816
    %4386 = vmatpush1.bf16.msra.mxu0 %v3815
    %4387 = vmatprep.subr.bf16.mxu0 %v3813
    %4388 = vmatpush1.bf16.msra.mxu0 %v3812
    %4389 = vmatprep.subr.bf16.mxu0 %v3810
    %4390 = vmatpush1.bf16.msra.mxu0 %v3809
    %4391 = vmatprep.subr.bf16.mxu0 %v3807
    %4392 = vmatpush1.bf16.msra.mxu0 %v3806
    %4393 = vmatprep.subr.bf16.mxu0 %v3804
    %4394 = vmatpush1.bf16.msra.mxu0 %v3803
    %4395 = vmatprep.subr.bf16.mxu0 %v3849
    %4396 = vmatpush2.bf16.msra.mxu0 %v3848
    %4397 = vmatprep.subr.bf16.mxu0 %v3846
    %4398 = vmatpush2.bf16.msra.mxu0 %v3845
    %4399 = vmatprep.subr.bf16.mxu0 %v3843
    %4400 = vmatpush2.bf16.msra.mxu0 %v3842
    %4401 = vmatprep.subr.bf16.mxu0 %v3840
    %4402 = vmatpush2.bf16.msra.mxu0 %v3839
    %4403 = vmatprep.subr.bf16.mxu0 %v3837
    %4404 = vmatpush2.bf16.msra.mxu0 %v3836
    %4405 = vmatprep.subr.bf16.mxu0 %v3834
    %4406 = vmatpush2.bf16.msra.mxu0 %v3833
    %4407 = vmatprep.subr.bf16.mxu0 %v3831
    %4408 = vmatpush2.bf16.msra.mxu0 %v3830
    %4409 = vmatprep.subr.bf16.mxu0 %v3828
    %4410 = vmatpush2.bf16.msra.mxu0 %v3827
    %4411 = vmatprep.mubr.bf16.mxu0 %v2431
    %4412 = vmatmul.mubr.bf16.gmra.mxu0 %v2430
    %v4413 = vpop.f32.mrf.mxu0
    %v4414 = vadd.f32 %v2831, %v4413
    %v4415 = vpop.f32.mrf.mxu0
    %v4416 = vadd.f32 %v2835, %v4415
    %v4417 = vpop.f32.mrf.mxu0
    %v4418 = vadd.f32 %v2831, %v4417
    %v4419 = vpop.f32.mrf.mxu0
    %v4420 = vadd.f32 %v2835, %v4419
    %4421 = vdwg.mxu0
    %4422 = vmatprep.subr.bf16.mxu0 %v3873
    %4423 = vmatpush1.bf16.msra.mxu0 %v3872
    %4424 = vmatprep.subr.bf16.mxu0 %v3870
    %4425 = vmatpush1.bf16.msra.mxu0 %v3869
    %4426 = vmatprep.subr.bf16.mxu0 %v3867
    %4427 = vmatpush1.bf16.msra.mxu0 %v3866
    %4428 = vmatprep.subr.bf16.mxu0 %v3864
    %4429 = vmatpush1.bf16.msra.mxu0 %v3863
    %4430 = vmatprep.subr.bf16.mxu0 %v3861
    %4431 = vmatpush1.bf16.msra.mxu0 %v3860
    %4432 = vmatprep.subr.bf16.mxu0 %v3858
    %4433 = vmatpush1.bf16.msra.mxu0 %v3857
    %4434 = vmatprep.subr.bf16.mxu0 %v3855
    %4435 = vmatpush1.bf16.msra.mxu0 %v3854
    %4436 = vmatprep.subr.bf16.mxu0 %v3852
    %4437 = vmatpush1.bf16.msra.mxu0 %v3851
    %4438 = vmatprep.subr.bf16.mxu0 %v3897
    %4439 = vmatpush2.bf16.msra.mxu0 %v3896
    %4440 = vmatprep.subr.bf16.mxu0 %v3894
    %4441 = vmatpush2.bf16.msra.mxu0 %v3893
    %4442 = vmatprep.subr.bf16.mxu0 %v3891
    %4443 = vmatpush2.bf16.msra.mxu0 %v3890
    %4444 = vmatprep.subr.bf16.mxu0 %v3888
    %4445 = vmatpush2.bf16.msra.mxu0 %v3887
    %4446 = vmatprep.subr.bf16.mxu0 %v3885
    %4447 = vmatpush2.bf16.msra.mxu0 %v3884
    %4448 = vmatprep.subr.bf16.mxu0 %v3882
    %4449 = vmatpush2.bf16.msra.mxu0 %v3881
    %4450 = vmatprep.subr.bf16.mxu0 %v3879
    %4451 = vmatpush2.bf16.msra.mxu0 %v3878
    %4452 = vmatprep.subr.bf16.mxu0 %v3876
    %4453 = vmatpush2.bf16.msra.mxu0 %v3875
    %4454 = vmatprep.mubr.bf16.mxu0 %v2433
    %4455 = vmatmul.mubr.bf16.gmra.mxu0 %v2432
    %v4456 = vpop.f32.mrf.mxu0
    %v4457 = vadd.f32 %v4414, %v4456
    %v4458 = vpop.f32.mrf.mxu0
    %v4459 = vadd.f32 %v4416, %v4458
    %v4460 = vpop.f32.mrf.mxu0
    %v4461 = vadd.f32 %v4418, %v4460
    %v4462 = vpop.f32.mrf.mxu0
    %v4463 = vadd.f32 %v4420, %v4462
    %4464 = vdwg.mxu0
    %4465 = vmatprep.subr.bf16.mxu0 %v3921
    %4466 = vmatpush1.bf16.msra.mxu0 %v3920
    %4467 = vmatprep.subr.bf16.mxu0 %v3918
    %4468 = vmatpush1.bf16.msra.mxu0 %v3917
    %4469 = vmatprep.subr.bf16.mxu0 %v3915
    %4470 = vmatpush1.bf16.msra.mxu0 %v3914
    %4471 = vmatprep.subr.bf16.mxu0 %v3912
    %4472 = vmatpush1.bf16.msra.mxu0 %v3911
    %4473 = vmatprep.subr.bf16.mxu0 %v3909
    %4474 = vmatpush1.bf16.msra.mxu0 %v3908
    %4475 = vmatprep.subr.bf16.mxu0 %v3906
    %4476 = vmatpush1.bf16.msra.mxu0 %v3905
    %4477 = vmatprep.subr.bf16.mxu0 %v3903
    %4478 = vmatpush1.bf16.msra.mxu0 %v3902
    %4479 = vmatprep.subr.bf16.mxu0 %v3900
    %4480 = vmatpush1.bf16.msra.mxu0 %v3899
    %4481 = vmatprep.subr.bf16.mxu0 %v3945
    %4482 = vmatpush2.bf16.msra.mxu0 %v3944
    %4483 = vmatprep.subr.bf16.mxu0 %v3942
    %4484 = vmatpush2.bf16.msra.mxu0 %v3941
    %4485 = vmatprep.subr.bf16.mxu0 %v3939
    %4486 = vmatpush2.bf16.msra.mxu0 %v3938
    %4487 = vmatprep.subr.bf16.mxu0 %v3936
    %4488 = vmatpush2.bf16.msra.mxu0 %v3935
    %4489 = vmatprep.subr.bf16.mxu0 %v3933
    %4490 = vmatpush2.bf16.msra.mxu0 %v3932
    %4491 = vmatprep.subr.bf16.mxu0 %v3930
    %4492 = vmatpush2.bf16.msra.mxu0 %v3929
    %4493 = vmatprep.subr.bf16.mxu0 %v3927
    %4494 = vmatpush2.bf16.msra.mxu0 %v3926
    %4495 = vmatprep.subr.bf16.mxu0 %v3924
    %4496 = vmatpush2.bf16.msra.mxu0 %v3923
    %4497 = vmatprep.mubr.bf16.mxu0 %v2435
    %4498 = vmatmul.mubr.bf16.gmra.mxu0 %v2434
    %v4499 = vpop.f32.mrf.mxu0
    %v4500 = vadd.f32 %v4457, %v4499
    %v4501 = vpop.f32.mrf.mxu0
    %v4502 = vadd.f32 %v4459, %v4501
    %v4503 = vpop.f32.mrf.mxu0
    %v4504 = vadd.f32 %v4461, %v4503
    %v4505 = vpop.f32.mrf.mxu0
    %v4506 = vadd.f32 %v4463, %v4505
    %4507 = vdwg.mxu0
    %4508 = vmatprep.subr.bf16.mxu0 %v3969
    %4509 = vmatpush1.bf16.msra.mxu0 %v3968
    %4510 = vmatprep.subr.bf16.mxu0 %v3966
    %4511 = vmatpush1.bf16.msra.mxu0 %v3965
    %4512 = vmatprep.subr.bf16.mxu0 %v3963
    %4513 = vmatpush1.bf16.msra.mxu0 %v3962
    %4514 = vmatprep.subr.bf16.mxu0 %v3960
    %4515 = vmatpush1.bf16.msra.mxu0 %v3959
    %4516 = vmatprep.subr.bf16.mxu0 %v3957
    %4517 = vmatpush1.bf16.msra.mxu0 %v3956
    %4518 = vmatprep.subr.bf16.mxu0 %v3954
    %4519 = vmatpush1.bf16.msra.mxu0 %v3953
    %4520 = vmatprep.subr.bf16.mxu0 %v3951
    %4521 = vmatpush1.bf16.msra.mxu0 %v3950
    %4522 = vmatprep.subr.bf16.mxu0 %v3948
    %4523 = vmatpush1.bf16.msra.mxu0 %v3947
    %4524 = vmatprep.subr.bf16.mxu0 %v3993
    %4525 = vmatpush2.bf16.msra.mxu0 %v3992
    %4526 = vmatprep.subr.bf16.mxu0 %v3990
    %4527 = vmatpush2.bf16.msra.mxu0 %v3989
    %4528 = vmatprep.subr.bf16.mxu0 %v3987
    %4529 = vmatpush2.bf16.msra.mxu0 %v3986
    %4530 = vmatprep.subr.bf16.mxu0 %v3984
    %4531 = vmatpush2.bf16.msra.mxu0 %v3983
    %4532 = vmatprep.subr.bf16.mxu0 %v3981
    %4533 = vmatpush2.bf16.msra.mxu0 %v3980
    %4534 = vmatprep.subr.bf16.mxu0 %v3978
    %4535 = vmatpush2.bf16.msra.mxu0 %v3977
    %4536 = vmatprep.subr.bf16.mxu0 %v3975
    %4537 = vmatpush2.bf16.msra.mxu0 %v3974
    %4538 = vmatprep.subr.bf16.mxu0 %v3972
    %4539 = vmatpush2.bf16.msra.mxu0 %v3971
    %4540 = vmatprep.mubr.bf16.mxu0 %v2437
    %4541 = vmatmul.mubr.bf16.gmra.mxu0 %v2436
    %v4542 = vpop.f32.mrf.mxu0
    %v4543 = vadd.f32 %v4500, %v4542
    %v4544 = vpop.f32.mrf.mxu0
    %v4545 = vadd.f32 %v4502, %v4544
    %v4546 = vpop.f32.mrf.mxu0
    %v4547 = vadd.f32 %v4504, %v4546
    %v4548 = vpop.f32.mrf.mxu0
    %v4549 = vadd.f32 %v4506, %v4548
    %4550 = vdwg.mxu0
    %4551 = vmatprep.subr.bf16.mxu0 %v4017
    %4552 = vmatpush1.bf16.msra.mxu0 %v4016
    %4553 = vmatprep.subr.bf16.mxu0 %v4014
    %4554 = vmatpush1.bf16.msra.mxu0 %v4013
    %4555 = vmatprep.subr.bf16.mxu0 %v4011
    %4556 = vmatpush1.bf16.msra.mxu0 %v4010
    %4557 = vmatprep.subr.bf16.mxu0 %v4008
    %4558 = vmatpush1.bf16.msra.mxu0 %v4007
    %4559 = vmatprep.subr.bf16.mxu0 %v4005
    %4560 = vmatpush1.bf16.msra.mxu0 %v4004
    %4561 = vmatprep.subr.bf16.mxu0 %v4002
    %4562 = vmatpush1.bf16.msra.mxu0 %v4001
    %4563 = vmatprep.subr.bf16.mxu0 %v3999
    %4564 = vmatpush1.bf16.msra.mxu0 %v3998
    %4565 = vmatprep.subr.bf16.mxu0 %v3996
    %4566 = vmatpush1.bf16.msra.mxu0 %v3995
    %4567 = vmatprep.subr.bf16.mxu0 %v4041
    %4568 = vmatpush2.bf16.msra.mxu0 %v4040
    %4569 = vmatprep.subr.bf16.mxu0 %v4038
    %4570 = vmatpush2.bf16.msra.mxu0 %v4037
    %4571 = vmatprep.subr.bf16.mxu0 %v4035
    %4572 = vmatpush2.bf16.msra.mxu0 %v4034
    %4573 = vmatprep.subr.bf16.mxu0 %v4032
    %4574 = vmatpush2.bf16.msra.mxu0 %v4031
    %4575 = vmatprep.subr.bf16.mxu0 %v4029
    %4576 = vmatpush2.bf16.msra.mxu0 %v4028
    %4577 = vmatprep.subr.bf16.mxu0 %v4026
    %4578 = vmatpush2.bf16.msra.mxu0 %v4025
    %4579 = vmatprep.subr.bf16.mxu0 %v4023
    %4580 = vmatpush2.bf16.msra.mxu0 %v4022
    %4581 = vmatprep.subr.bf16.mxu0 %v4020
    %4582 = vmatpush2.bf16.msra.mxu0 %v4019
    %4583 = vmatprep.mubr.bf16.mxu0 %v2439
    %4584 = vmatmul.mubr.bf16.gmra.mxu0 %v2438
    %v4585 = vpop.f32.mrf.mxu0
    %v4586 = vadd.f32 %v4543, %v4585
    %v4587 = vpop.f32.mrf.mxu0
    %v4588 = vadd.f32 %v4545, %v4587
    %v4589 = vpop.f32.mrf.mxu0
    %v4590 = vadd.f32 %v4547, %v4589
    %v4591 = vpop.f32.mrf.mxu0
    %v4592 = vadd.f32 %v4549, %v4591
    %4593 = vdwg.mxu0
    %4594 = vmatprep.subr.bf16.mxu0 %v4065
    %4595 = vmatpush1.bf16.msra.mxu0 %v4064
    %4596 = vmatprep.subr.bf16.mxu0 %v4062
    %4597 = vmatpush1.bf16.msra.mxu0 %v4061
    %4598 = vmatprep.subr.bf16.mxu0 %v4059
    %4599 = vmatpush1.bf16.msra.mxu0 %v4058
    %4600 = vmatprep.subr.bf16.mxu0 %v4056
    %4601 = vmatpush1.bf16.msra.mxu0 %v4055
    %4602 = vmatprep.subr.bf16.mxu0 %v4053
    %4603 = vmatpush1.bf16.msra.mxu0 %v4052
    %4604 = vmatprep.subr.bf16.mxu0 %v4050
    %4605 = vmatpush1.bf16.msra.mxu0 %v4049
    %4606 = vmatprep.subr.bf16.mxu0 %v4047
    %4607 = vmatpush1.bf16.msra.mxu0 %v4046
    %4608 = vmatprep.subr.bf16.mxu0 %v4044
    %4609 = vmatpush1.bf16.msra.mxu0 %v4043
    %4610 = vmatprep.subr.bf16.mxu0 %v4089
    %4611 = vmatpush2.bf16.msra.mxu0 %v4088
    %4612 = vmatprep.subr.bf16.mxu0 %v4086
    %4613 = vmatpush2.bf16.msra.mxu0 %v4085
    %4614 = vmatprep.subr.bf16.mxu0 %v4083
    %4615 = vmatpush2.bf16.msra.mxu0 %v4082
    %4616 = vmatprep.subr.bf16.mxu0 %v4080
    %4617 = vmatpush2.bf16.msra.mxu0 %v4079
    %4618 = vmatprep.subr.bf16.mxu0 %v4077
    %4619 = vmatpush2.bf16.msra.mxu0 %v4076
    %4620 = vmatprep.subr.bf16.mxu0 %v4074
    %4621 = vmatpush2.bf16.msra.mxu0 %v4073
    %4622 = vmatprep.subr.bf16.mxu0 %v4071
    %4623 = vmatpush2.bf16.msra.mxu0 %v4070
    %4624 = vmatprep.subr.bf16.mxu0 %v4068
    %4625 = vmatpush2.bf16.msra.mxu0 %v4067
    %4626 = vmatprep.mubr.bf16.mxu0 %v2441
    %4627 = vmatmul.mubr.bf16.gmra.mxu0 %v2440
    %v4628 = vpop.f32.mrf.mxu0
    %v4629 = vadd.f32 %v4586, %v4628
    %v4630 = vpop.f32.mrf.mxu0
    %v4631 = vadd.f32 %v4588, %v4630
    %v4632 = vpop.f32.mrf.mxu0
    %v4633 = vadd.f32 %v4590, %v4632
    %v4634 = vpop.f32.mrf.mxu0
    %v4635 = vadd.f32 %v4592, %v4634
    %4636 = vdwg.mxu0
    %4637 = vmatprep.subr.bf16.mxu0 0
    %4638 = vmatpush1.bf16.msra.mxu0 %v3826
    %4639 = vmatprep.subr.bf16.mxu0 0
    %4640 = vmatpush1.bf16.msra.mxu0 %v3823
    %4641 = vmatprep.subr.bf16.mxu0 0
    %4642 = vmatpush1.bf16.msra.mxu0 %v3820
    %4643 = vmatprep.subr.bf16.mxu0 0
    %4644 = vmatpush1.bf16.msra.mxu0 %v3817
    %4645 = vmatprep.subr.bf16.mxu0 0
    %4646 = vmatpush1.bf16.msra.mxu0 %v3814
    %4647 = vmatprep.subr.bf16.mxu0 0
    %4648 = vmatpush1.bf16.msra.mxu0 %v3811
    %4649 = vmatprep.subr.bf16.mxu0 0
    %4650 = vmatpush1.bf16.msra.mxu0 %v3808
    %4651 = vmatprep.subr.bf16.mxu0 0
    %4652 = vmatpush1.bf16.msra.mxu0 %v3805
    %4653 = vmatprep.subr.bf16.mxu0 0
    %4654 = vmatpush2.bf16.msra.mxu0 %v3850
    %4655 = vmatprep.subr.bf16.mxu0 0
    %4656 = vmatpush2.bf16.msra.mxu0 %v3847
    %4657 = vmatprep.subr.bf16.mxu0 0
    %4658 = vmatpush2.bf16.msra.mxu0 %v3844
    %4659 = vmatprep.subr.bf16.mxu0 0
    %4660 = vmatpush2.bf16.msra.mxu0 %v3841
    %4661 = vmatprep.subr.bf16.mxu0 0
    %4662 = vmatpush2.bf16.msra.mxu0 %v3838
    %4663 = vmatprep.subr.bf16.mxu0 0
    %4664 = vmatpush2.bf16.msra.mxu0 %v3835
    %4665 = vmatprep.subr.bf16.mxu0 0
    %4666 = vmatpush2.bf16.msra.mxu0 %v3832
    %4667 = vmatprep.subr.bf16.mxu0 0
    %4668 = vmatpush2.bf16.msra.mxu0 %v3829
    %4669 = vmatprep.mubr.bf16.mxu0 %v2431
    %4670 = vmatmul.mubr.bf16.gmra.mxu0 %v2430
    %v4671 = vpop.f32.mrf.mxu0
    %v4672 = vadd.f32 %v2839, %v4671
    %v4673 = vpop.f32.mrf.mxu0
    %v4674 = vpop.f32.mrf.mxu0
    %v4675 = vadd.f32 %v2839, %v4674
    %v4676 = vpop.f32.mrf.mxu0
    %4677 = vdwg.mxu0
    %4678 = vmatprep.subr.bf16.mxu0 0
    %4679 = vmatpush1.bf16.msra.mxu0 %v3874
    %4680 = vmatprep.subr.bf16.mxu0 0
    %4681 = vmatpush1.bf16.msra.mxu0 %v3871
    %4682 = vmatprep.subr.bf16.mxu0 0
    %4683 = vmatpush1.bf16.msra.mxu0 %v3868
    %4684 = vmatprep.subr.bf16.mxu0 0
    %4685 = vmatpush1.bf16.msra.mxu0 %v3865
    %4686 = vmatprep.subr.bf16.mxu0 0
    %4687 = vmatpush1.bf16.msra.mxu0 %v3862
    %4688 = vmatprep.subr.bf16.mxu0 0
    %4689 = vmatpush1.bf16.msra.mxu0 %v3859
    %4690 = vmatprep.subr.bf16.mxu0 0
    %4691 = vmatpush1.bf16.msra.mxu0 %v3856
    %4692 = vmatprep.subr.bf16.mxu0 0
    %4693 = vmatpush1.bf16.msra.mxu0 %v3853
    %4694 = vmatprep.subr.bf16.mxu0 0
    %4695 = vmatpush2.bf16.msra.mxu0 %v3898
    %4696 = vmatprep.subr.bf16.mxu0 0
    %4697 = vmatpush2.bf16.msra.mxu0 %v3895
    %4698 = vmatprep.subr.bf16.mxu0 0
    %4699 = vmatpush2.bf16.msra.mxu0 %v3892
    %4700 = vmatprep.subr.bf16.mxu0 0
    %4701 = vmatpush2.bf16.msra.mxu0 %v3889
    %4702 = vmatprep.subr.bf16.mxu0 0
    %4703 = vmatpush2.bf16.msra.mxu0 %v3886
    %4704 = vmatprep.subr.bf16.mxu0 0
    %4705 = vmatpush2.bf16.msra.mxu0 %v3883
    %4706 = vmatprep.subr.bf16.mxu0 0
    %4707 = vmatpush2.bf16.msra.mxu0 %v3880
    %4708 = vmatprep.subr.bf16.mxu0 0
    %4709 = vmatpush2.bf16.msra.mxu0 %v3877
    %4710 = vmatprep.mubr.bf16.mxu0 %v2433
    %4711 = vmatmul.mubr.bf16.gmra.mxu0 %v2432
    %v4712 = vpop.f32.mrf.mxu0
    %v4713 = vadd.f32 %v4672, %v4712
    %v4714 = vpop.f32.mrf.mxu0
    %v4715 = vpop.f32.mrf.mxu0
    %v4716 = vadd.f32 %v4675, %v4715
    %v4717 = vpop.f32.mrf.mxu0
    %4718 = vdwg.mxu0
    %4719 = vmatprep.subr.bf16.mxu0 0
    %4720 = vmatpush1.bf16.msra.mxu0 %v3922
    %4721 = vmatprep.subr.bf16.mxu0 0
    %4722 = vmatpush1.bf16.msra.mxu0 %v3919
    %4723 = vmatprep.subr.bf16.mxu0 0
    %4724 = vmatpush1.bf16.msra.mxu0 %v3916
    %4725 = vmatprep.subr.bf16.mxu0 0
    %4726 = vmatpush1.bf16.msra.mxu0 %v3913
    %4727 = vmatprep.subr.bf16.mxu0 0
    %4728 = vmatpush1.bf16.msra.mxu0 %v3910
    %4729 = vmatprep.subr.bf16.mxu0 0
    %4730 = vmatpush1.bf16.msra.mxu0 %v3907
    %4731 = vmatprep.subr.bf16.mxu0 0
    %4732 = vmatpush1.bf16.msra.mxu0 %v3904
    %4733 = vmatprep.subr.bf16.mxu0 0
    %4734 = vmatpush1.bf16.msra.mxu0 %v3901
    %4735 = vmatprep.subr.bf16.mxu0 0
    %4736 = vmatpush2.bf16.msra.mxu0 %v3946
    %4737 = vmatprep.subr.bf16.mxu0 0
    %4738 = vmatpush2.bf16.msra.mxu0 %v3943
    %4739 = vmatprep.subr.bf16.mxu0 0
    %4740 = vmatpush2.bf16.msra.mxu0 %v3940
    %4741 = vmatprep.subr.bf16.mxu0 0
    %4742 = vmatpush2.bf16.msra.mxu0 %v3937
    %4743 = vmatprep.subr.bf16.mxu0 0
    %4744 = vmatpush2.bf16.msra.mxu0 %v3934
    %4745 = vmatprep.subr.bf16.mxu0 0
    %4746 = vmatpush2.bf16.msra.mxu0 %v3931
    %4747 = vmatprep.subr.bf16.mxu0 0
    %4748 = vmatpush2.bf16.msra.mxu0 %v3928
    %4749 = vmatprep.subr.bf16.mxu0 0
    %4750 = vmatpush2.bf16.msra.mxu0 %v3925
    %4751 = vmatprep.mubr.bf16.mxu0 %v2435
    %4752 = vmatmul.mubr.bf16.gmra.mxu0 %v2434
    %v4753 = vpop.f32.mrf.mxu0
    %v4754 = vadd.f32 %v4713, %v4753
    %v4755 = vpop.f32.mrf.mxu0
    %v4756 = vpop.f32.mrf.mxu0
    %v4757 = vadd.f32 %v4716, %v4756
    %v4758 = vpop.f32.mrf.mxu0
    %4759 = vdwg.mxu0
    %4760 = vmatprep.subr.bf16.mxu0 0
    %4761 = vmatpush1.bf16.msra.mxu0 %v3970
    %4762 = vmatprep.subr.bf16.mxu0 0
    %4763 = vmatpush1.bf16.msra.mxu0 %v3967
    %4764 = vmatprep.subr.bf16.mxu0 0
    %4765 = vmatpush1.bf16.msra.mxu0 %v3964
    %4766 = vmatprep.subr.bf16.mxu0 0
    %4767 = vmatpush1.bf16.msra.mxu0 %v3961
    %4768 = vmatprep.subr.bf16.mxu0 0
    %4769 = vmatpush1.bf16.msra.mxu0 %v3958
    %4770 = vmatprep.subr.bf16.mxu0 0
    %4771 = vmatpush1.bf16.msra.mxu0 %v3955
    %4772 = vmatprep.subr.bf16.mxu0 0
    %4773 = vmatpush1.bf16.msra.mxu0 %v3952
    %4774 = vmatprep.subr.bf16.mxu0 0
    %4775 = vmatpush1.bf16.msra.mxu0 %v3949
    %4776 = vmatprep.subr.bf16.mxu0 0
    %4777 = vmatpush2.bf16.msra.mxu0 %v3994
    %4778 = vmatprep.subr.bf16.mxu0 0
    %4779 = vmatpush2.bf16.msra.mxu0 %v3991
    %4780 = vmatprep.subr.bf16.mxu0 0
    %4781 = vmatpush2.bf16.msra.mxu0 %v3988
    %4782 = vmatprep.subr.bf16.mxu0 0
    %4783 = vmatpush2.bf16.msra.mxu0 %v3985
    %4784 = vmatprep.subr.bf16.mxu0 0
    %4785 = vmatpush2.bf16.msra.mxu0 %v3982
    %4786 = vmatprep.subr.bf16.mxu0 0
    %4787 = vmatpush2.bf16.msra.mxu0 %v3979
    %4788 = vmatprep.subr.bf16.mxu0 0
    %4789 = vmatpush2.bf16.msra.mxu0 %v3976
    %4790 = vmatprep.subr.bf16.mxu0 0
    %4791 = vmatpush2.bf16.msra.mxu0 %v3973
    %4792 = vmatprep.mubr.bf16.mxu0 %v2437
    %4793 = vmatmul.mubr.bf16.gmra.mxu0 %v2436
    %v4794 = vpop.f32.mrf.mxu0
    %v4795 = vadd.f32 %v4754, %v4794
    %v4796 = vpop.f32.mrf.mxu0
    %v4797 = vpop.f32.mrf.mxu0
    %v4798 = vadd.f32 %v4757, %v4797
    %v4799 = vpop.f32.mrf.mxu0
    %4800 = vdwg.mxu0
    %4801 = vmatprep.subr.bf16.mxu0 0
    %4802 = vmatpush1.bf16.msra.mxu0 %v4018
    %4803 = vmatprep.subr.bf16.mxu0 0
    %4804 = vmatpush1.bf16.msra.mxu0 %v4015
    %4805 = vmatprep.subr.bf16.mxu0 0
    %4806 = vmatpush1.bf16.msra.mxu0 %v4012
    %4807 = vmatprep.subr.bf16.mxu0 0
    %4808 = vmatpush1.bf16.msra.mxu0 %v4009
    %4809 = vmatprep.subr.bf16.mxu0 0
    %4810 = vmatpush1.bf16.msra.mxu0 %v4006
    %4811 = vmatprep.subr.bf16.mxu0 0
    %4812 = vmatpush1.bf16.msra.mxu0 %v4003
    %4813 = vmatprep.subr.bf16.mxu0 0
    %4814 = vmatpush1.bf16.msra.mxu0 %v4000
    %4815 = vmatprep.subr.bf16.mxu0 0
    %4816 = vmatpush1.bf16.msra.mxu0 %v3997
    %4817 = vmatprep.subr.bf16.mxu0 0
    %4818 = vmatpush2.bf16.msra.mxu0 %v4042
    %4819 = vmatprep.subr.bf16.mxu0 0
    %4820 = vmatpush2.bf16.msra.mxu0 %v4039
    %4821 = vmatprep.subr.bf16.mxu0 0
    %4822 = vmatpush2.bf16.msra.mxu0 %v4036
    %4823 = vmatprep.subr.bf16.mxu0 0
    %4824 = vmatpush2.bf16.msra.mxu0 %v4033
    %4825 = vmatprep.subr.bf16.mxu0 0
    %4826 = vmatpush2.bf16.msra.mxu0 %v4030
    %4827 = vmatprep.subr.bf16.mxu0 0
    %4828 = vmatpush2.bf16.msra.mxu0 %v4027
    %4829 = vmatprep.subr.bf16.mxu0 0
    %4830 = vmatpush2.bf16.msra.mxu0 %v4024
    %4831 = vmatprep.subr.bf16.mxu0 0
    %4832 = vmatpush2.bf16.msra.mxu0 %v4021
    %4833 = vmatprep.mubr.bf16.mxu0 %v2439
    %4834 = vmatmul.mubr.bf16.gmra.mxu0 %v2438
    %v4835 = vpop.f32.mrf.mxu0
    %v4836 = vadd.f32 %v4795, %v4835
    %v4837 = vpop.f32.mrf.mxu0
    %v4838 = vpop.f32.mrf.mxu0
    %v4839 = vadd.f32 %v4798, %v4838
    %v4840 = vpop.f32.mrf.mxu0
    %4841 = vdwg.mxu0
    %4842 = vmatprep.subr.bf16.mxu0 0
    %4843 = vmatpush1.bf16.msra.mxu0 %v4066
    %4844 = vmatprep.subr.bf16.mxu0 0
    %4845 = vmatpush1.bf16.msra.mxu0 %v4063
    %4846 = vmatprep.subr.bf16.mxu0 0
    %4847 = vmatpush1.bf16.msra.mxu0 %v4060
    %4848 = vmatprep.subr.bf16.mxu0 0
    %4849 = vmatpush1.bf16.msra.mxu0 %v4057
    %4850 = vmatprep.subr.bf16.mxu0 0
    %4851 = vmatpush1.bf16.msra.mxu0 %v4054
    %4852 = vmatprep.subr.bf16.mxu0 0
    %4853 = vmatpush1.bf16.msra.mxu0 %v4051
    %4854 = vmatprep.subr.bf16.mxu0 0
    %4855 = vmatpush1.bf16.msra.mxu0 %v4048
    %4856 = vmatprep.subr.bf16.mxu0 0
    %4857 = vmatpush1.bf16.msra.mxu0 %v4045
    %4858 = vmatprep.subr.bf16.mxu0 0
    %4859 = vmatpush2.bf16.msra.mxu0 %v4090
    %4860 = vmatprep.subr.bf16.mxu0 0
    %4861 = vmatpush2.bf16.msra.mxu0 %v4087
    %4862 = vmatprep.subr.bf16.mxu0 0
    %4863 = vmatpush2.bf16.msra.mxu0 %v4084
    %4864 = vmatprep.subr.bf16.mxu0 0
    %4865 = vmatpush2.bf16.msra.mxu0 %v4081
    %4866 = vmatprep.subr.bf16.mxu0 0
    %4867 = vmatpush2.bf16.msra.mxu0 %v4078
    %4868 = vmatprep.subr.bf16.mxu0 0
    %4869 = vmatpush2.bf16.msra.mxu0 %v4075
    %4870 = vmatprep.subr.bf16.mxu0 0
    %4871 = vmatpush2.bf16.msra.mxu0 %v4072
    %4872 = vmatprep.subr.bf16.mxu0 0
    %4873 = vmatpush2.bf16.msra.mxu0 %v4069
    %4874 = vmatprep.mubr.bf16.mxu0 %v2441
    %4875 = vmatmul.mubr.bf16.gmra.mxu0 %v2440
    %v4876 = vpop.f32.mrf.mxu0
    %v4877 = vadd.f32 %v4836, %v4876
    %v4878 = vpop.f32.mrf.mxu0
    %v4879 = vpop.f32.mrf.mxu0
    %v4880 = vadd.f32 %v4839, %v4879
    %v4881 = vpop.f32.mrf.mxu0
    %4882 = vdwg.mxu0
    %s4883 = sld [smem:[#allocation3]]
    %v4884 = vlaneseq
    %v4885 = vshrl.u32 %v4884, 7
    %v4886 = vadd.s32 %v4885, 8
    %v4887 = vstv %s88
    %v4888 = vadd.s32 %v4885, %v4887
    %v4889 = vadd.s32 %v4886, %v4887
    %v4890 = vlaneseq
    %v4891 = vand.u32 %v4890, 127
    %v4892 = vadd.s32 %v4891, 128
    %v4893 = vadd.s32 %v4891, 256
    %v4894 = vmul.u32 %v4888, 2654435761
    %v4895 = vmul.u32 %v4889, 2654435761
    %v4896 = vmul.u32 %v4891, 2246822507
    %v4897 = vmul.u32 %v4892, 2246822507
    %v4898 = vmul.u32 %v4893, 2246822507
    %v4899 = vxor.u32 %v4894, %v4896
    %v4900 = vxor.u32 %v4894, %v4897
    %v4901 = vxor.u32 %v4894, %v4898
    %v4902 = vxor.u32 %v4895, %v4896
    %v4903 = vxor.u32 %v4895, %v4897
    %v4904 = vxor.u32 %v4895, %v4898
    %v4905 = vstv %s4883
    %v4906 = vxor.u32 %v4899, %v4905
    %v4907 = vxor.u32 %v4900, %v4905
    %v4908 = vxor.u32 %v4901, %v4905
    %v4909 = vxor.u32 %v4902, %v4905
    %v4910 = vxor.u32 %v4903, %v4905
    %v4911 = vxor.u32 %v4904, %v4905
    %v4912 = vshrl.u32 %v4906, 16
    %v4913 = vshrl.u32 %v4907, 16
    %v4914 = vshrl.u32 %v4908, 16
    %v4915 = vshrl.u32 %v4909, 16
    %v4916 = vshrl.u32 %v4910, 16
    %v4917 = vshrl.u32 %v4911, 16
    %v4918 = vxor.u32 %v4906, %v4912
    %v4919 = vxor.u32 %v4907, %v4913
    %v4920 = vxor.u32 %v4908, %v4914
    %v4921 = vxor.u32 %v4909, %v4915
    %v4922 = vxor.u32 %v4910, %v4916
    %v4923 = vxor.u32 %v4911, %v4917
    %v4924 = vmul.u32 %v4918, 2146121005
    %v4925 = vmul.u32 %v4919, 2146121005
    %v4926 = vmul.u32 %v4920, 2146121005
    %v4927 = vmul.u32 %v4921, 2146121005
    %v4928 = vmul.u32 %v4922, 2146121005
    %v4929 = vmul.u32 %v4923, 2146121005
    %v4930 = vshrl.u32 %v4924, 15
    %v4931 = vshrl.u32 %v4925, 15
    %v4932 = vshrl.u32 %v4926, 15
    %v4933 = vshrl.u32 %v4927, 15
    %v4934 = vshrl.u32 %v4928, 15
    %v4935 = vshrl.u32 %v4929, 15
    %v4936 = vxor.u32 %v4924, %v4930
    %v4937 = vxor.u32 %v4925, %v4931
    %v4938 = vxor.u32 %v4926, %v4932
    %v4939 = vxor.u32 %v4927, %v4933
    %v4940 = vxor.u32 %v4928, %v4934
    %v4941 = vxor.u32 %v4929, %v4935
    %v4942 = vmul.u32 %v4936, 2221713035
    %v4943 = vmul.u32 %v4937, 2221713035
    %v4944 = vmul.u32 %v4938, 2221713035
    %v4945 = vmul.u32 %v4939, 2221713035
    %v4946 = vmul.u32 %v4940, 2221713035
    %v4947 = vmul.u32 %v4941, 2221713035
    %v4948 = vshrl.u32 %v4942, 16
    %v4949 = vshrl.u32 %v4943, 16
    %v4950 = vshrl.u32 %v4944, 16
    %v4951 = vshrl.u32 %v4945, 16
    %v4952 = vshrl.u32 %v4946, 16
    %v4953 = vshrl.u32 %v4947, 16
    %v4954 = vxor.u32 %v4942, %v4948
    %v4955 = vxor.u32 %v4943, %v4949
    %v4956 = vxor.u32 %v4944, %v4950
    %v4957 = vxor.u32 %v4945, %v4951
    %v4958 = vxor.u32 %v4946, %v4952
    %v4959 = vxor.u32 %v4947, %v4953
    %vm4960 = vcmp.ge.u32.totalorder %v4954, 858993459
    %vm4961 = vcmp.ge.u32.totalorder %v4955, 858993459
    %vm4962 = vcmp.ge.u32.totalorder %v4956, 858993459
    %vm4963 = vcmp.ge.u32.totalorder %v4957, 858993459
    %vm4964 = vcmp.ge.u32.totalorder %v4958, 858993459
    %vm4965 = vcmp.ge.u32.totalorder %v4959, 858993459
    %v4966 = vmul.f32 %v4629, 1.25
    %v4967 = vmul.f32 %v4631, 1.25
    %v4968 = vmul.f32 %v4877, 1.25
    %v4969 = vmul.f32 %v4633, 1.25
    %v4970 = vmul.f32 %v4635, 1.25
    %v4971 = vmul.f32 %v4880, 1.25
    %v4972 = vsel %vm4960, %v4966, 0.0
    %v4973 = vsel %vm4961, %v4967, 0.0
    %v4974 = vsel %vm4962, %v4968, 0.0
    %v4975 = vsel %vm4963, %v4969, 0.0
    %v4976 = vsel %vm4964, %v4970, 0.0
    %v4977 = vsel %vm4965, %v4971, 0.0
    %v4978 = vpack.c.bf16 %v4975, %v4972
    %v4979 = vpack.c.bf16 %v4976, %v4973
    %v4980 = vpack.c.bf16 %v4977, %v4974
    %v4984 = vunpack.c.l.b16 %v4978
    %v4985 = vunpack.c.l.b16 %v4979
    %v4986 = vunpack.c.l.b16 %v4980
    %v4987 = vunpack.c.h.b16 %v4978
    %v4988 = vunpack.c.h.b16 %v4979
    %v4989 = vunpack.c.h.b16 %v4980
    %v4990 = vpack.c.b16 %v4985, %v4984
    %v4991 = vpack.c.b16 %v4986, %v4986
    %v4992 = vpack.c.b16 %v4988, %v4987
    %v4993 = vpack.c.b16 %v4989, %v4989
    %4998 = vst [vmem:[#allocation13] sm:$0xff] %v4990
    %4999 = vst [vmem:[#allocation13 + $0x8] sm:$0xf] %v4991
    %5000 = vst [vmem:[#allocation13 + $0xc] sm:$0xff] %v4992
    %5001 = vst [vmem:[#allocation13 + $0x14] sm:$0xf] %v4993
    // Predicated region
    $region42: #{tpu_custom_call.1} parent=1 // pred_check
      _
    $region43: #{tpu_custom_call.1} parent=1 // pred_check_branch
      %5003 = sbr.rel (0) target = $region45
    $region44: #{tpu_custom_call.1} parent=1 // pred_region
      %s5005 = ssub.s32 384, 384
      %5006 = vsyncadd [#allocation6], %s5005
      %s5007 = sshll.u32 [#allocation13], 4
      %s5008 = int_to_ptr.vmem [resolvable:$true] %s5007
      %5013 = dma.vmem_to_hbm [thread:$0]  %s5008, 384, %s6, [#allocation6], 192, 192, 12
    $region45: #{tpu_custom_call.1} parent=1 // pred_fallthru
      _
    // Predicated region
    $region46: #{tpu_custom_call.1} parent=1 // pred_check
      _
    $region47: #{tpu_custom_call.1} parent=1 // pred_check_branch
      %5015 = sbr.rel (0) target = $region49
    $region48: #{tpu_custom_call.1} parent=1 // pred_region
      %5016 = dma.done [#allocation6], 384
    $region49: #{tpu_custom_call.1} parent=1 // pred_fallthru
      _
    %5017 = vsyncpa [#allocation5], 1
    %5018 = vsyncpa [#allocation8], 1
    %5019 = vsyncpa [#allocation11], 1
    %5020 = vsyncpa [#allocation6], 1

</llo_original>
